<compile_context>
chip_gen: v6e
topology: v6e:2x2x1
jax: 0.10.0
libtpu: 0.0.40
codegen_flags: <defaults>
</compile_context>

<pallas_src>
import functools

import numpy as np
import jax
import jax.numpy as jnp
from jax.experimental import pallas as pl
from jax.experimental.pallas import tpu as pltpu

H = W = 14
C_IN = 256
C_OUT = 256
KH = KW = 3            # h-taps (j) and w-taps (l)
C_HALF = 128
M_DIM = H * W          # 196 output rows (n, o)
K_CAT = KW * C_HALF    # 384  contraction (l, k) of the big dot
N_CAT = KH * C_OUT     # 768  output lanes (j, i) of the big dot

# TODO(synk): the PyTorch module picks shift_direction = +/-1 at construction
# time via an unseeded random.random(); we fix it deterministically to +1
# (the factory below accepts shift=-1 as well).
SHIFT_DIRECTION = 1


# ----------------------------------------------------------------------------
# Constant row-mixing operators (built once, in numpy).
#   Rows of all 2-D tensors are m = h*14 + w  (h-major).
# ----------------------------------------------------------------------------
def _roll_w_mat(s):
    """Cyclic roll by s along w within each group of 14 rows (torch.roll)."""
    m = np.zeros((M_DIM, M_DIM), np.float32)
    for h in range(H):
        for w in range(W):
            m[h * W + w, h * W + (w - s) % W] = 1.0
    return m


def _shift_w_mat(d):
    """Zero-padded shift by d along w: out[w] = in[w - d] if in range else 0."""
    m = np.zeros((M_DIM, M_DIM), np.float32)
    for h in range(H):
        for w in range(W):
            if 0 <= w - d < W:
                m[h * W + w, h * W + (w - d)] = 1.0
    return m


def _shift_h_mat(d):
    """Zero-padded shift by d along h: out[n] = in[n - d] if in range else 0."""
    m = np.zeros((M_DIM, M_DIM), np.float32)
    for h in range(H):
        if 0 <= h - d < H:
            for w in range(W):
                m[h * W + w, (h - d) * W + w] = 1.0
    return m


def _build_row_operators(shift):
    """8 operators of shape (196,196):
       [lo_0, hi_0, lo_1, hi_1, lo_2, hi_2, M_j0, M_j2]
       S_l = lo_l @ X_lo + hi_l @ X_hi       (patch extraction along w)
       y   = M_j0 @ P_0 + P_1 + M_j2 @ P_2   (second unfold along h)
    """
    rw = _roll_w_mat(shift)                       # initial torch.roll along w
    ops = []
    for l in range(KW):
        u_op = _shift_w_mat(1 - l) @ rw           # X -> U_l (first unfold tap l)
        if shift > 0:
            ops.append(u_op)                      # low channel half, as-is
            ops.append(_roll_w_mat(shift) @ u_op)  # high half: extra roll by +1
        else:
            ops.append(_roll_w_mat(shift) @ u_op)  # low half: extra roll by -1
            ops.append(u_op)                      # high channel half, as-is
    ops.append(_shift_h_mat(1))                   # j = 0 tap (rows n-1)
    ops.append(_shift_h_mat(-1))                  # j = 2 tap (rows n+1)
    return np.stack(ops, axis=0)                  # (8, 196, 196)


def _prepare_weights(weights):
    """(256,3,3,128) -> (384,768) with B[l*128+k, j*256+i] = weights[i,j,l,k]."""
    w = jnp.asarray(weights, jnp.float32)
    return jnp.transpose(w, (2, 3, 1, 0)).reshape(K_CAT, N_CAT)


# ----------------------------------------------------------------------------
# Fused Pallas kernel: single invocation, everything resident in VMEM.
# ----------------------------------------------------------------------------
def _fused_kernel(x_ref, ops_ref, b_ref, o_ref):
    x = x_ref[...]                                # (196, 256) NHWC-flattened
    x_lo = x[:, :C_HALF]
    x_hi = x[:, C_HALF:]

    # w-direction patch extraction (roll + unfold + channel-pair shuffle/sum)
    # as constant row-mixing operators on the MXU.
    s_parts = []
    for l in range(KW):
        s_l = (jnp.dot(ops_ref[2 * l], x_lo, preferred_element_type=jnp.float32)
               + jnp.dot(ops_ref[2 * l + 1], x_hi,
                         preferred_element_type=jnp.float32))
        s_parts.append(s_l)                       # (196, 128) each
    s_cat = jnp.concatenate(s_parts, axis=1)      # (196, 384)

    # Contraction over (l, k) against all three h-taps of the weights at once.
    p = jnp.dot(s_cat, b_ref[...], preferred_element_type=jnp.float32)  # (196, 768)

    # Second unfold (h direction) folded into the output combination.
    p0 = p[:, 0 * C_OUT:1 * C_OUT]
    p1 = p[:, 1 * C_OUT:2 * C_OUT]
    p2 = p[:, 2 * C_OUT:3 * C_OUT]
    o_ref[...] = (jnp.dot(ops_ref[6], p0, preferred_element_type=jnp.float32)
                  + p1
                  + jnp.dot(ops_ref[7], p2, preferred_element_type=jnp.float32))


@jax.jit
def _fused_forward(x, ops, b_mat):
    # x: (1, 256, 14, 14) NCHW -> (196, 256) h-major NHWC rows.
    x_hwc = jnp.transpose(x[0], (1, 2, 0)).reshape(M_DIM, C_IN)
    y_mat = pl.pallas_call(
        _fused_kernel,
        out_shape=jax.ShapeDtypeStruct((M_DIM, C_OUT), jnp.float32),
        grid=(1,),
        in_specs=[
            pl.BlockSpec((M_DIM, C_IN), lambda i: (0, 0)),
            pl.BlockSpec((8, M_DIM, M_DIM), lambda i: (0, 0, 0)),
            pl.BlockSpec((K_CAT, N_CAT), lambda i: (0, 0)),
        ],
        out_specs=pl.BlockSpec((M_DIM, C_OUT), lambda i: (0, 0)),
        compiler_params=pltpu.CompilerParams(
            dimension_semantics=("arbitrary",)),
    )(x_hwc, ops, b_mat)
    # (196, 256) rows (n, o), lanes i  ->  (1, 256, 14, 14)
    return jnp.transpose(y_mat.reshape(H, W, C_OUT), (2, 0, 1))[None]


def make_kernel_generated_4(weights, shift=SHIFT_DIRECTION):
    """Mirrors kernel_generated_4.__init__: all weight/operator prep is hoisted
    out of the per-call path."""
    ops = jnp.asarray(_build_row_operators(shift))   # (8, 196, 196) constants
    b_mat = _prepare_weights(weights)                # (384, 768)

    def forward(x):
        return _fused_forward(x, ops, b_mat)

    return forward


# ----------------------------------------------------------------------------
# Pure-JAX reference replicating the torch ops step by step (for validation).
# ----------------------------------------------------------------------------
def torch_style_reference(x, weights, shift=SHIFT_DIRECTION):
    t2 = jnp.transpose(x, (0, 2, 3, 1))                          # ilkj -> ikjl
    t2 = jnp.roll(t2, shift, axis=2)
    t2 = t2.reshape(1, 14, 14, 256)
    # unfold((3,1), padding=(1,0)) on (N=1, C=14, H=14, W=256)
    t2p = jnp.pad(t2, ((0, 0), (0, 0), (1, 1), (0, 0)))
    t2 = jnp.stack([t2p[:, :, d:d + 14, :] for d in range(3)], axis=2)
    t2 = t2.reshape(1, 14, 3, 14, 2, 128).reshape(1, 14, 3, 28, 128)
    t2 = jnp.roll(t2, shift, axis=3)
    t2 = t2.reshape(1, 14, 3, 14, 2, 128).sum(axis=4)            # (1,14,3,14,128)
    t3 = t2.reshape(1, 1, 14, 5376)
    # unfold((3,1), padding=(1,0)) on (N=1, C=1, H=14, W=5376)
    t3p = jnp.pad(t3, ((0, 0), (0, 0), (1, 1), (0, 0)))
    t3 = jnp.stack([t3p[:, 0, d:d + 14, :] for d in range(3)], axis=1)
    t3 = t3.reshape(1, 3, 14, 3, 14, 128)
    return jnp.einsum('mjnlok,ijlk->mino', t3, weights,
                      precision=jax.lax.Precision.HIGHEST)


if __name__ == "__main__":
    key = jax.random.PRNGKey(0)
    kx, kw = jax.random.split(key)
    x = jax.random.normal(kx, (1, C_IN, H, W), dtype=jnp.float32)
    weights = jax.random.normal(kw, (C_OUT, KH, KW, C_HALF), dtype=jnp.float32)

    forward = make_kernel_generated_4(weights)
    y = jax.block_until_ready(forward(x))

    y_ref = torch_style_reference(x, weights)
    assert y.shape == (1, C_OUT, H, W), y.shape
    max_err = float(jnp.max(jnp.abs(y - y_ref)))
    assert jnp.allclose(y, y_ref, rtol=1e-3, atol=3e-3), max_err
    print("KERNEL_OK")
</pallas_src>

<mosaic_0001>
module attributes {stable_mosaic.version = 11 : i64} {
  func.func @_fused_kernel(%arg0: i32, %arg1: memref<196x256xf32, #tpu.memory_space<vmem>>, %arg2: memref<8x196x196xf32, #tpu.memory_space<vmem>>, %arg3: memref<384x768xf32, #tpu.memory_space<vmem>>, %arg4: memref<196x256xf32, #tpu.memory_space<vmem>>) attributes {dimension_semantics = [#tpu.dimension_semantics<arbitrary>], iteration_bounds = array<i64: 1>, scalar_prefetch = 0 : i64, scratch_operands = 0 : i64, tpu.core_type = #tpu.core_type<tc>, window_params = [{pipeline_mode = #tpu.pipeline_mode<synchronous>, transform_indices = @transform_0, window_bounds = array<i64: 196, 256>}, {pipeline_mode = #tpu.pipeline_mode<synchronous>, transform_indices = @transform_1, window_bounds = array<i64: 8, 196, 196>}, {pipeline_mode = #tpu.pipeline_mode<synchronous>, transform_indices = @transform_2, window_bounds = array<i64: 384, 768>}, {pipeline_mode = #tpu.pipeline_mode<synchronous>, transform_indices = @transform_3, window_bounds = array<i64: 196, 256>}]} {
    %c0 = arith.constant 0 : index
    %c0_0 = arith.constant 0 : index
    %0 = vector.load %arg1[%c0, %c0_0] : memref<196x256xf32, #tpu.memory_space<vmem>>, vector<196x256xf32>
    %1 = vector.extract_strided_slice %0 {offsets = [0, 0], sizes = [196, 128], strides = [1, 1]} : vector<196x256xf32> to vector<196x128xf32>
    %2 = vector.extract_strided_slice %0 {offsets = [0, 128], sizes = [196, 128], strides = [1, 1]} : vector<196x256xf32> to vector<196x128xf32>
    %c0_1 = arith.constant 0 : index
    %c0_2 = arith.constant 0 : index
    %c0_3 = arith.constant 0 : index
    %3 = vector.load %arg2[%c0_1, %c0_2, %c0_3] : memref<8x196x196xf32, #tpu.memory_space<vmem>>, vector<1x196x196xf32>
    %4 = vector.shape_cast %3 : vector<1x196x196xf32> to vector<196x196xf32>
    %cst = arith.constant dense<0.000000e+00> : vector<196x128xf32>
    %5 = tpu.matmul %4, %1, %cst {dimension_numbers = #tpu.dot_dimension_numbers<[1], [0], [0], [1], [0, 0, 1, 1], [], []>} : vector<196x196xf32>, vector<196x128xf32>, vector<196x128xf32> -> vector<196x128xf32>
    %c1 = arith.constant 1 : index
    %c0_4 = arith.constant 0 : index
    %c0_5 = arith.constant 0 : index
    %6 = vector.load %arg2[%c1, %c0_4, %c0_5] : memref<8x196x196xf32, #tpu.memory_space<vmem>>, vector<1x196x196xf32>
    %7 = vector.shape_cast %6 : vector<1x196x196xf32> to vector<196x196xf32>
    %cst_6 = arith.constant dense<0.000000e+00> : vector<196x128xf32>
    %8 = tpu.matmul %7, %2, %cst_6 {dimension_numbers = #tpu.dot_dimension_numbers<[1], [0], [0], [1], [0, 0, 1, 1], [], []>} : vector<196x196xf32>, vector<196x128xf32>, vector<196x128xf32> -> vector<196x128xf32>
    %9 = arith.addf %5, %8 : vector<196x128xf32>
    %c2 = arith.constant 2 : index
    %c0_7 = arith.constant 0 : index
    %c0_8 = arith.constant 0 : index
    %10 = vector.load %arg2[%c2, %c0_7, %c0_8] : memref<8x196x196xf32, #tpu.memory_space<vmem>>, vector<1x196x196xf32>
    %11 = vector.shape_cast %10 : vector<1x196x196xf32> to vector<196x196xf32>
    %cst_9 = arith.constant dense<0.000000e+00> : vector<196x128xf32>
    %12 = tpu.matmul %11, %1, %cst_9 {dimension_numbers = #tpu.dot_dimension_numbers<[1], [0], [0], [1], [0, 0, 1, 1], [], []>} : vector<196x196xf32>, vector<196x128xf32>, vector<196x128xf32> -> vector<196x128xf32>
    %c3 = arith.constant 3 : index
    %c0_10 = arith.constant 0 : index
    %c0_11 = arith.constant 0 : index
    %13 = vector.load %arg2[%c3, %c0_10, %c0_11] : memref<8x196x196xf32, #tpu.memory_space<vmem>>, vector<1x196x196xf32>
    %14 = vector.shape_cast %13 : vector<1x196x196xf32> to vector<196x196xf32>
    %cst_12 = arith.constant dense<0.000000e+00> : vector<196x128xf32>
    %15 = tpu.matmul %14, %2, %cst_12 {dimension_numbers = #tpu.dot_dimension_numbers<[1], [0], [0], [1], [0, 0, 1, 1], [], []>} : vector<196x196xf32>, vector<196x128xf32>, vector<196x128xf32> -> vector<196x128xf32>
    %16 = arith.addf %12, %15 : vector<196x128xf32>
    %c4 = arith.constant 4 : index
    %c0_13 = arith.constant 0 : index
    %c0_14 = arith.constant 0 : index
    %17 = vector.load %arg2[%c4, %c0_13, %c0_14] : memref<8x196x196xf32, #tpu.memory_space<vmem>>, vector<1x196x196xf32>
    %18 = vector.shape_cast %17 : vector<1x196x196xf32> to vector<196x196xf32>
    %cst_15 = arith.constant dense<0.000000e+00> : vector<196x128xf32>
    %19 = tpu.matmul %18, %1, %cst_15 {dimension_numbers = #tpu.dot_dimension_numbers<[1], [0], [0], [1], [0, 0, 1, 1], [], []>} : vector<196x196xf32>, vector<196x128xf32>, vector<196x128xf32> -> vector<196x128xf32>
    %c5 = arith.constant 5 : index
    %c0_16 = arith.constant 0 : index
    %c0_17 = arith.constant 0 : index
    %20 = vector.load %arg2[%c5, %c0_16, %c0_17] : memref<8x196x196xf32, #tpu.memory_space<vmem>>, vector<1x196x196xf32>
    %21 = vector.shape_cast %20 : vector<1x196x196xf32> to vector<196x196xf32>
    %cst_18 = arith.constant dense<0.000000e+00> : vector<196x128xf32>
    %22 = tpu.matmul %21, %2, %cst_18 {dimension_numbers = #tpu.dot_dimension_numbers<[1], [0], [0], [1], [0, 0, 1, 1], [], []>} : vector<196x196xf32>, vector<196x128xf32>, vector<196x128xf32> -> vector<196x128xf32>
    %23 = arith.addf %19, %22 : vector<196x128xf32>
    %24 = tpu.concatenate %9, %16, %23 in 1 : vector<196x128xf32>, vector<196x128xf32>, vector<196x128xf32> -> vector<196x384xf32>
    %c0_19 = arith.constant 0 : index
    %c0_20 = arith.constant 0 : index
    %25 = vector.load %arg3[%c0_19, %c0_20] : memref<384x768xf32, #tpu.memory_space<vmem>>, vector<384x768xf32>
    %cst_21 = arith.constant dense<0.000000e+00> : vector<196x768xf32>
    %26 = tpu.matmul %24, %25, %cst_21 {dimension_numbers = #tpu.dot_dimension_numbers<[1], [0], [0], [1], [0, 0, 1, 1], [], []>} : vector<196x384xf32>, vector<384x768xf32>, vector<196x768xf32> -> vector<196x768xf32>
    %27 = vector.extract_strided_slice %26 {offsets = [0, 0], sizes = [196, 256], strides = [1, 1]} : vector<196x768xf32> to vector<196x256xf32>
    %28 = vector.extract_strided_slice %26 {offsets = [0, 256], sizes = [196, 256], strides = [1, 1]} : vector<196x768xf32> to vector<196x256xf32>
    %29 = vector.extract_strided_slice %26 {offsets = [0, 512], sizes = [196, 256], strides = [1, 1]} : vector<196x768xf32> to vector<196x256xf32>
    %c6 = arith.constant 6 : index
    %c0_22 = arith.constant 0 : index
    %c0_23 = arith.constant 0 : index
    %30 = vector.load %arg2[%c6, %c0_22, %c0_23] : memref<8x196x196xf32, #tpu.memory_space<vmem>>, vector<1x196x196xf32>
    %31 = vector.shape_cast %30 : vector<1x196x196xf32> to vector<196x196xf32>
    %cst_24 = arith.constant dense<0.000000e+00> : vector<196x256xf32>
    %32 = tpu.matmul %31, %27, %cst_24 {dimension_numbers = #tpu.dot_dimension_numbers<[1], [0], [0], [1], [0, 0, 1, 1], [], []>} : vector<196x196xf32>, vector<196x256xf32>, vector<196x256xf32> -> vector<196x256xf32>
    %33 = arith.addf %32, %28 : vector<196x256xf32>
    %c7 = arith.constant 7 : index
    %c0_25 = arith.constant 0 : index
    %c0_26 = arith.constant 0 : index
    %34 = vector.load %arg2[%c7, %c0_25, %c0_26] : memref<8x196x196xf32, #tpu.memory_space<vmem>>, vector<1x196x196xf32>
    %35 = vector.shape_cast %34 : vector<1x196x196xf32> to vector<196x196xf32>
    %cst_27 = arith.constant dense<0.000000e+00> : vector<196x256xf32>
    %36 = tpu.matmul %35, %29, %cst_27 {dimension_numbers = #tpu.dot_dimension_numbers<[1], [0], [0], [1], [0, 0, 1, 1], [], []>} : vector<196x196xf32>, vector<196x256xf32>, vector<196x256xf32> -> vector<196x256xf32>
    %37 = arith.addf %33, %36 : vector<196x256xf32>
    %c0_28 = arith.constant 0 : index
    %c0_29 = arith.constant 0 : index
    %38 = vector.load %arg4[%c0_28, %c0_29] : memref<196x256xf32, #tpu.memory_space<vmem>>, vector<196x256xf32>
    tpu.vector_store %arg4[%c0_28, %c0_29], %37 {strides = array<i32>} : memref<196x256xf32, #tpu.memory_space<vmem>>, vector<196x256xf32>,
    return
  }
  func.func @transform_0(%arg0: i32) -> (i32, i32) {
    %c0_i32 = arith.constant 0 : i32
    %c0_i32_0 = arith.constant 0 : i32
    %c0_i32_1 = arith.constant 0 : i32
    return %c0_i32, %c0_i32_0 : i32, i32
  }
  func.func @transform_1(%arg0: i32) -> (i32, i32, i32) {
    %c0_i32 = arith.constant 0 : i32
    %c0_i32_0 = arith.constant 0 : i32
    %c0_i32_1 = arith.constant 0 : i32
    %c0_i32_2 = arith.constant 0 : i32
    return %c0_i32, %c0_i32_0, %c0_i32_1 : i32, i32, i32
  }
  func.func @transform_2(%arg0: i32) -> (i32, i32) {
    %c0_i32 = arith.constant 0 : i32
    %c0_i32_0 = arith.constant 0 : i32
    %c0_i32_1 = arith.constant 0 : i32
    return %c0_i32, %c0_i32_0 : i32, i32
  }
  func.func @transform_3(%arg0: i32) -> (i32, i32) {
    %c0_i32 = arith.constant 0 : i32
    %c0_i32_0 = arith.constant 0 : i32
    %c0_i32_1 = arith.constant 0 : i32
    return %c0_i32, %c0_i32_0 : i32, i32
  }
}

</mosaic_0001>

<llo_original>
// kernel: _fused_forward.1
$region0: #{_fused_forward.1}
  #allocation0 [shape = 'u32[]', space=smem, size = 0x4, offset = 0x4, fixed_abs, tag = 'smem constant byte address 0x4 - core index']
  #allocation1 [shape = 'u32[144,128]{1,0:T(1,128)}', space=vmem, size = 0x12000, scoped, tag = 'internal scratch']
  %s0 = inlined_call_operand.vmem [shape: f32[196,256], index: 0, kind: input, shape index: {}]
  %s1 = inlined_call_operand.vmem [shape: f32[8,196,196], index: 1, kind: input, shape index: {}]
  %s2 = inlined_call_operand.vmem [shape: f32[384,768], index: 2, kind: input, shape index: {}]
  %s3 = inlined_call_operand.vmem [shape: f32[196,256], index: 3, kind: output, shape index: {}]
  %s4 = sld [smem:[#allocation0]]
  $region22: #{_fused_forward.1} parent=0
    _
  %s6 = ssub.s32 1, %s4
  %s7 = scalar_select 0, %s6, %s4
  // Predicated region
  $region2: #{_fused_forward.1} parent=0 // pred_check
    _
  $region3: #{_fused_forward.1} parent=0 // pred_check_branch
    %9 = sbr.rel (0) target = $region5
  $region4: #{_fused_forward.1} parent=0 // pred_region
    _
  $region5: #{_fused_forward.1} parent=0 // pred_fallthru
    _
  // Predicated region
  $region6: #{_fused_forward.1} parent=0 // pred_check
    _
  $region7: #{_fused_forward.1} parent=0 // pred_check_branch
    %11 = sbr.rel (0) target = $region9
  $region8: #{_fused_forward.1} parent=0 // pred_region
    _
  $region9: #{_fused_forward.1} parent=0 // pred_fallthru
    _
  // Predicated region
  $region10: #{_fused_forward.1} parent=0 // pred_check
    _
  $region11: #{_fused_forward.1} parent=0 // pred_check_branch
    %13 = sbr.rel (0) target = $region13
  $region12: #{_fused_forward.1} parent=0 // pred_region
    _
  $region13: #{_fused_forward.1} parent=0 // pred_fallthru
    _
  %v14 = vld [vmem:[%s0] sm:$0xff]
  %v15 = vld [vmem:[%s0 + $0x8] sm:$0xff]
  %v16 = vld [vmem:[%s0 + $0x10] sm:$0xff]
  %v17 = vld [vmem:[%s0 + $0x18] sm:$0xff]
  %v18 = vld [vmem:[%s0 + $0x20] sm:$0xff]
  %v19 = vld [vmem:[%s0 + $0x28] sm:$0xff]
  %v20 = vld [vmem:[%s0 + $0x30] sm:$0xff]
  %v21 = vld [vmem:[%s0 + $0x38] sm:$0xff]
  %v22 = vld [vmem:[%s0 + $0x40] sm:$0xff]
  %v23 = vld [vmem:[%s0 + $0x48] sm:$0xff]
  %v24 = vld [vmem:[%s0 + $0x50] sm:$0xff]
  %v25 = vld [vmem:[%s0 + $0x58] sm:$0xff]
  %v26 = vld [vmem:[%s0 + $0x60] sm:$0xff]
  %v27 = vld [vmem:[%s0 + $0x68] sm:$0xff]
  %v28 = vld [vmem:[%s0 + $0x70] sm:$0xff]
  %v29 = vld [vmem:[%s0 + $0x78] sm:$0xff]
  %v30 = vld [vmem:[%s0 + $0x80] sm:$0xff]
  %v31 = vld [vmem:[%s0 + $0x88] sm:$0xff]
  %v32 = vld [vmem:[%s0 + $0x90] sm:$0xff]
  %v33 = vld [vmem:[%s0 + $0x98] sm:$0xff]
  %v34 = vld [vmem:[%s0 + $0xa0] sm:$0xff]
  %v35 = vld [vmem:[%s0 + $0xa8] sm:$0xff]
  %v36 = vld [vmem:[%s0 + $0xb0] sm:$0xff]
  %v37 = vld [vmem:[%s0 + $0xb8] sm:$0xff]
  %v38 = vld [vmem:[%s0 + $0xc0] sm:$0xff]
  %v39 = vld [vmem:[%s0 + $0xc8] sm:$0xff]
  %v40 = vld [vmem:[%s0 + $0xd0] sm:$0xff]
  %v41 = vld [vmem:[%s0 + $0xd8] sm:$0xff]
  %v42 = vld [vmem:[%s0 + $0xe0] sm:$0xff]
  %v43 = vld [vmem:[%s0 + $0xe8] sm:$0xff]
  %v44 = vld [vmem:[%s0 + $0xf0] sm:$0xff]
  %v45 = vld [vmem:[%s0 + $0xf8] sm:$0xff]
  %v46 = vld [vmem:[%s0 + $0x100] sm:$0xff]
  %v47 = vld [vmem:[%s0 + $0x108] sm:$0xff]
  %v48 = vld [vmem:[%s0 + $0x110] sm:$0xff]
  %v49 = vld [vmem:[%s0 + $0x118] sm:$0xff]
  %v50 = vld [vmem:[%s0 + $0x120] sm:$0xff]
  %v51 = vld [vmem:[%s0 + $0x128] sm:$0xff]
  %v52 = vld [vmem:[%s0 + $0x130] sm:$0xff]
  %v53 = vld [vmem:[%s0 + $0x138] sm:$0xff]
  %v54 = vld [vmem:[%s0 + $0x140] sm:$0xff]
  %v55 = vld [vmem:[%s0 + $0x148] sm:$0xff]
  %v56 = vld [vmem:[%s0 + $0x150] sm:$0xff]
  %v57 = vld [vmem:[%s0 + $0x158] sm:$0xff]
  %v58 = vld [vmem:[%s0 + $0x160] sm:$0xff]
  %v59 = vld [vmem:[%s0 + $0x168] sm:$0xff]
  %v60 = vld [vmem:[%s0 + $0x170] sm:$0xff]
  %v61 = vld [vmem:[%s0 + $0x178] sm:$0xff]
  %v62 = vld [vmem:[%s0 + $0x180] sm:$0xf]
  %v63 = vld [vmem:[%s0 + $0x188] sm:$0xf]
  %v64 = vld [vmem:[%s1] sm:$0xff]
  %v65 = vld [vmem:[%s1 + $0x8] sm:$0xff]
  %v66 = vld [vmem:[%s1 + $0x10] sm:$0xff]
  %v67 = vld [vmem:[%s1 + $0x18] sm:$0xff]
  %v68 = vld [vmem:[%s1 + $0x20] sm:$0xff]
  %v69 = vld [vmem:[%s1 + $0x28] sm:$0xff]
  %v70 = vld [vmem:[%s1 + $0x30] sm:$0xff]
  %v71 = vld [vmem:[%s1 + $0x38] sm:$0xff]
  %v72 = vld [vmem:[%s1 + $0x40] sm:$0xff]
  %v73 = vld [vmem:[%s1 + $0x48] sm:$0xff]
  %v74 = vld [vmem:[%s1 + $0x50] sm:$0xff]
  %v75 = vld [vmem:[%s1 + $0x58] sm:$0xff]
  %v76 = vld [vmem:[%s1 + $0x60] sm:$0xff]
  %v77 = vld [vmem:[%s1 + $0x68] sm:$0xff]
  %v78 = vld [vmem:[%s1 + $0x70] sm:$0xff]
  %v79 = vld [vmem:[%s1 + $0x78] sm:$0xff]
  %v80 = vld [vmem:[%s1 + $0x80] sm:$0xff]
  %v81 = vld [vmem:[%s1 + $0x88] sm:$0xff]
  %v82 = vld [vmem:[%s1 + $0x90] sm:$0xff]
  %v83 = vld [vmem:[%s1 + $0x98] sm:$0xff]
  %v84 = vld [vmem:[%s1 + $0xa0] sm:$0xff]
  %v85 = vld [vmem:[%s1 + $0xa8] sm:$0xff]
  %v86 = vld [vmem:[%s1 + $0xb0] sm:$0xff]
  %v87 = vld [vmem:[%s1 + $0xb8] sm:$0xff]
  %v88 = vld [vmem:[%s1 + $0xc0] sm:$0xff]
  %v89 = vld [vmem:[%s1 + $0xc8] sm:$0xff]
  %v90 = vld [vmem:[%s1 + $0xd0] sm:$0xff]
  %v91 = vld [vmem:[%s1 + $0xd8] sm:$0xff]
  %v92 = vld [vmem:[%s1 + $0xe0] sm:$0xff]
  %v93 = vld [vmem:[%s1 + $0xe8] sm:$0xff]
  %v94 = vld [vmem:[%s1 + $0xf0] sm:$0xff]
  %v95 = vld [vmem:[%s1 + $0xf8] sm:$0xff]
  %v96 = vld [vmem:[%s1 + $0x100] sm:$0xff]
  %v97 = vld [vmem:[%s1 + $0x108] sm:$0xff]
  %v98 = vld [vmem:[%s1 + $0x110] sm:$0xff]
  %v99 = vld [vmem:[%s1 + $0x118] sm:$0xff]
  %v100 = vld [vmem:[%s1 + $0x120] sm:$0xff]
  %v101 = vld [vmem:[%s1 + $0x128] sm:$0xff]
  %v102 = vld [vmem:[%s1 + $0x130] sm:$0xff]
  %v103 = vld [vmem:[%s1 + $0x138] sm:$0xff]
  %v104 = vld [vmem:[%s1 + $0x140] sm:$0xff]
  %v105 = vld [vmem:[%s1 + $0x148] sm:$0xff]
  %v106 = vld [vmem:[%s1 + $0x150] sm:$0xff]
  %v107 = vld [vmem:[%s1 + $0x158] sm:$0xff]
  %v108 = vld [vmem:[%s1 + $0x160] sm:$0xff]
  %v109 = vld [vmem:[%s1 + $0x168] sm:$0xff]
  %v110 = vld [vmem:[%s1 + $0x170] sm:$0xff]
  %v111 = vld [vmem:[%s1 + $0x178] sm:$0xff]
  %v112 = vld [vmem:[%s1 + $0x180] sm:$0xf]
  %v113 = vld [vmem:[%s1 + $0x188] sm:$0xf]
  %s114 = scalar_lea.vmem %s1, 400
  %v115 = vld [vmem:[%s114] sm:$0xff]
  %v116 = vld [vmem:[%s114 + $0x8] sm:$0xff]
  %v117 = vld [vmem:[%s114 + $0x10] sm:$0xff]
  %v118 = vld [vmem:[%s114 + $0x18] sm:$0xff]
  %v119 = vld [vmem:[%s114 + $0x20] sm:$0xff]
  %v120 = vld [vmem:[%s114 + $0x28] sm:$0xff]
  %v121 = vld [vmem:[%s114 + $0x30] sm:$0xff]
  %v122 = vld [vmem:[%s114 + $0x38] sm:$0xff]
  %v123 = vld [vmem:[%s114 + $0x40] sm:$0xff]
  %v124 = vld [vmem:[%s114 + $0x48] sm:$0xff]
  %v125 = vld [vmem:[%s114 + $0x50] sm:$0xff]
  %v126 = vld [vmem:[%s114 + $0x58] sm:$0xff]
  %v127 = vld [vmem:[%s114 + $0x60] sm:$0xff]
  %v128 = vld [vmem:[%s114 + $0x68] sm:$0xff]
  %v129 = vld [vmem:[%s114 + $0x70] sm:$0xff]
  %v130 = vld [vmem:[%s114 + $0x78] sm:$0xff]
  %v131 = vld [vmem:[%s114 + $0x80] sm:$0xff]
  %v132 = vld [vmem:[%s114 + $0x88] sm:$0xff]
  %v133 = vld [vmem:[%s114 + $0x90] sm:$0xff]
  %v134 = vld [vmem:[%s114 + $0x98] sm:$0xff]
  %v135 = vld [vmem:[%s114 + $0xa0] sm:$0xff]
  %v136 = vld [vmem:[%s114 + $0xa8] sm:$0xff]
  %v137 = vld [vmem:[%s114 + $0xb0] sm:$0xff]
  %v138 = vld [vmem:[%s114 + $0xb8] sm:$0xff]
  %v139 = vld [vmem:[%s114 + $0xc0] sm:$0xff]
  %v140 = vld [vmem:[%s114 + $0xc8] sm:$0xff]
  %v141 = vld [vmem:[%s114 + $0xd0] sm:$0xff]
  %v142 = vld [vmem:[%s114 + $0xd8] sm:$0xff]
  %v143 = vld [vmem:[%s114 + $0xe0] sm:$0xff]
  %v144 = vld [vmem:[%s114 + $0xe8] sm:$0xff]
  %v145 = vld [vmem:[%s114 + $0xf0] sm:$0xff]
  %v146 = vld [vmem:[%s114 + $0xf8] sm:$0xff]
  %v147 = vld [vmem:[%s114 + $0x100] sm:$0xff]
  %v148 = vld [vmem:[%s114 + $0x108] sm:$0xff]
  %v149 = vld [vmem:[%s114 + $0x110] sm:$0xff]
  %v150 = vld [vmem:[%s114 + $0x118] sm:$0xff]
  %v151 = vld [vmem:[%s114 + $0x120] sm:$0xff]
  %v152 = vld [vmem:[%s114 + $0x128] sm:$0xff]
  %v153 = vld [vmem:[%s114 + $0x130] sm:$0xff]
  %v154 = vld [vmem:[%s114 + $0x138] sm:$0xff]
  %v155 = vld [vmem:[%s114 + $0x140] sm:$0xff]
  %v156 = vld [vmem:[%s114 + $0x148] sm:$0xff]
  %v157 = vld [vmem:[%s114 + $0x150] sm:$0xff]
  %v158 = vld [vmem:[%s114 + $0x158] sm:$0xff]
  %v159 = vld [vmem:[%s114 + $0x160] sm:$0xff]
  %v160 = vld [vmem:[%s114 + $0x168] sm:$0xff]
  %v161 = vld [vmem:[%s114 + $0x170] sm:$0xff]
  %v162 = vld [vmem:[%s114 + $0x178] sm:$0xff]
  %v163 = vld [vmem:[%s114 + $0x180] sm:$0xf]
  %v164 = vld [vmem:[%s114 + $0x188] sm:$0xf]
  %vm165 = vcmask 556032
  %v167 = vsel %vm165, %v116, 0
  %v170 = vsel %vm165, %v118, 0
  %v173 = vsel %vm165, %v120, 0
  %v176 = vsel %vm165, %v122, 0
  %v179 = vsel %vm165, %v124, 0
  %v182 = vsel %vm165, %v126, 0
  %v185 = vsel %vm165, %v128, 0
  %v188 = vsel %vm165, %v130, 0
  %v191 = vsel %vm165, %v132, 0
  %v194 = vsel %vm165, %v134, 0
  %v197 = vsel %vm165, %v136, 0
  %v200 = vsel %vm165, %v138, 0
  %v203 = vsel %vm165, %v140, 0
  %v206 = vsel %vm165, %v142, 0
  %v209 = vsel %vm165, %v144, 0
  %v212 = vsel %vm165, %v146, 0
  %v215 = vsel %vm165, %v148, 0
  %v218 = vsel %vm165, %v150, 0
  %v221 = vsel %vm165, %v152, 0
  %v224 = vsel %vm165, %v154, 0
  %v227 = vsel %vm165, %v156, 0
  %v230 = vsel %vm165, %v158, 0
  %v233 = vsel %vm165, %v160, 0
  %v236 = vsel %vm165, %v162, 0
  %v239 = vsel %vm165, %v164, 0
  %vm241 = vcmask 1043456
  %v243 = vsel %vm241, %v63, 0
  %245 = vmatprep.subr.mxu0 0.0
  %246 = vmatpush1.msra.mxu0 %v45
  %247 = vmatprep.subr.mxu0 0.0
  %248 = vmatpush1.msra.mxu0 %v43
  %249 = vmatprep.subr.mxu0 0.0
  %250 = vmatpush1.msra.mxu0 %v41
  %251 = vmatprep.subr.mxu0 0.0
  %252 = vmatpush1.msra.mxu0 %v39
  %253 = vmatprep.subr.mxu0 0.0
  %254 = vmatpush1.msra.mxu0 %v37
  %255 = vmatprep.subr.mxu0 0.0
  %256 = vmatpush1.msra.mxu0 %v35
  %257 = vmatprep.subr.mxu0 0.0
  %258 = vmatpush1.msra.mxu0 %v33
  %259 = vmatprep.subr.mxu0 0.0
  %260 = vmatpush1.msra.mxu0 %v31
  %261 = vmatprep.subr.mxu0 0.0
  %262 = vmatpush1.msra.mxu0 %v29
  %263 = vmatprep.subr.mxu0 0.0
  %264 = vmatpush1.msra.mxu0 %v27
  %265 = vmatprep.subr.mxu0 0.0
  %266 = vmatpush1.msra.mxu0 %v25
  %267 = vmatprep.subr.mxu0 0.0
  %268 = vmatpush1.msra.mxu0 %v23
  %269 = vmatprep.subr.mxu0 0.0
  %270 = vmatpush1.msra.mxu0 %v21
  %271 = vmatprep.subr.mxu0 0.0
  %272 = vmatpush1.msra.mxu0 %v19
  %273 = vmatprep.subr.mxu0 0.0
  %274 = vmatpush1.msra.mxu0 %v17
  %275 = vmatprep.subr.mxu0 0.0
  %276 = vmatpush1.msra.mxu0 %v15
  %277 = vmatprep.subr.mxu0 0.0
  %278 = vmatpush2.msra.mxu0 0.0
  %279 = vmatprep.subr.mxu0 0.0
  %280 = vmatpush2.msra.mxu0 0.0
  %281 = vmatprep.subr.mxu0 0.0
  %282 = vmatpush2.msra.mxu0 0.0
  %283 = vmatprep.subr.mxu0 0.0
  %284 = vmatpush2.msra.mxu0 0.0
  %285 = vmatprep.subr.mxu0 0.0
  %286 = vmatpush2.msra.mxu0 0.0
  %287 = vmatprep.subr.mxu0 0.0
  %288 = vmatpush2.msra.mxu0 0.0
  %289 = vmatprep.subr.mxu0 0.0
  %290 = vmatpush2.msra.mxu0 0.0
  %291 = vmatprep.subr.mxu0 0.0
  %292 = vmatpush2.msra.mxu0 %v243
  %293 = vmatprep.subr.mxu0 0.0
  %294 = vmatpush2.msra.mxu0 %v61
  %295 = vmatprep.subr.mxu0 0.0
  %296 = vmatpush2.msra.mxu0 %v59
  %297 = vmatprep.subr.mxu0 0.0
  %298 = vmatpush2.msra.mxu0 %v57
  %299 = vmatprep.subr.mxu0 0.0
  %300 = vmatpush2.msra.mxu0 %v55
  %301 = vmatprep.subr.mxu0 0.0
  %302 = vmatpush2.msra.mxu0 %v53
  %303 = vmatprep.subr.mxu0 0.0
  %304 = vmatpush2.msra.mxu0 %v51
  %305 = vmatprep.subr.mxu0 0.0
  %306 = vmatpush2.msra.mxu0 %v49
  %307 = vmatprep.subr.mxu0 0.0
  %308 = vmatpush2.msra.mxu0 %v47
  %309 = vmatprep.mubr.f32.mxu0 %v167
  %310 = vmatmul.mubr.f32.gmra.mxu0 %v115
  %v311 = vpop.f32.mrf.mxu0
  %v312 = vadd.f32 0.0, %v311
  %v313 = vpop.f32.mrf.mxu0
  %314 = vmatprep.mubr.f32.mxu0 %v170
  %315 = vmatmul.mubr.f32.gmra.mxu0 %v117
  %v316 = vpop.f32.mrf.mxu0
  %v317 = vadd.f32 0.0, %v316
  %v318 = vpop.f32.mrf.mxu0
  %319 = vmatprep.mubr.f32.mxu0 %v173
  %320 = vmatmul.mubr.f32.gmra.mxu0 %v119
  %v321 = vpop.f32.mrf.mxu0
  %v322 = vadd.f32 0.0, %v321
  %v323 = vpop.f32.mrf.mxu0
  %324 = vmatprep.mubr.f32.mxu0 %v176
  %325 = vmatmul.mubr.f32.gmra.mxu0 %v121
  %v326 = vpop.f32.mrf.mxu0
  %v327 = vadd.f32 0.0, %v326
  %v328 = vpop.f32.mrf.mxu0
  %329 = vmatprep.mubr.f32.mxu0 %v179
  %330 = vmatmul.mubr.f32.gmra.mxu0 %v123
  %v331 = vpop.f32.mrf.mxu0
  %v332 = vadd.f32 0.0, %v331
  %v333 = vpop.f32.mrf.mxu0
  %334 = vmatprep.mubr.f32.mxu0 %v182
  %335 = vmatmul.mubr.f32.gmra.mxu0 %v125
  %v336 = vpop.f32.mrf.mxu0
  %v337 = vadd.f32 0.0, %v336
  %v338 = vpop.f32.mrf.mxu0
  %339 = vmatprep.mubr.f32.mxu0 %v185
  %340 = vmatmul.mubr.f32.gmra.mxu0 %v127
  %v341 = vpop.f32.mrf.mxu0
  %v342 = vadd.f32 0.0, %v341
  %v343 = vpop.f32.mrf.mxu0
  %344 = vmatprep.mubr.f32.mxu0 %v188
  %345 = vmatmul.mubr.f32.gmra.mxu0 %v129
  %v346 = vpop.f32.mrf.mxu0
  %v347 = vadd.f32 0.0, %v346
  %v348 = vpop.f32.mrf.mxu0
  %349 = vmatprep.mubr.f32.mxu0 %v191
  %350 = vmatmul.mubr.f32.gmra.mxu0 %v131
  %v351 = vpop.f32.mrf.mxu0
  %v352 = vadd.f32 0.0, %v351
  %v353 = vpop.f32.mrf.mxu0
  %354 = vmatprep.mubr.f32.mxu0 %v194
  %355 = vmatmul.mubr.f32.gmra.mxu0 %v133
  %v356 = vpop.f32.mrf.mxu0
  %v357 = vadd.f32 0.0, %v356
  %v358 = vpop.f32.mrf.mxu0
  %359 = vmatprep.mubr.f32.mxu0 %v197
  %360 = vmatmul.mubr.f32.gmra.mxu0 %v135
  %v361 = vpop.f32.mrf.mxu0
  %v362 = vadd.f32 0.0, %v361
  %v363 = vpop.f32.mrf.mxu0
  %364 = vmatprep.mubr.f32.mxu0 %v200
  %365 = vmatmul.mubr.f32.gmra.mxu0 %v137
  %v366 = vpop.f32.mrf.mxu0
  %v367 = vadd.f32 0.0, %v366
  %v368 = vpop.f32.mrf.mxu0
  %369 = vmatprep.mubr.f32.mxu0 %v203
  %370 = vmatmul.mubr.f32.gmra.mxu0 %v139
  %v371 = vpop.f32.mrf.mxu0
  %v372 = vadd.f32 0.0, %v371
  %v373 = vpop.f32.mrf.mxu0
  %374 = vmatprep.mubr.f32.mxu0 %v206
  %375 = vmatmul.mubr.f32.gmra.mxu0 %v141
  %v376 = vpop.f32.mrf.mxu0
  %v377 = vadd.f32 0.0, %v376
  %v378 = vpop.f32.mrf.mxu0
  %379 = vmatprep.mubr.f32.mxu0 %v209
  %380 = vmatmul.mubr.f32.gmra.mxu0 %v143
  %v381 = vpop.f32.mrf.mxu0
  %v382 = vadd.f32 0.0, %v381
  %v383 = vpop.f32.mrf.mxu0
  %384 = vmatprep.mubr.f32.mxu0 %v212
  %385 = vmatmul.mubr.f32.gmra.mxu0 %v145
  %v386 = vpop.f32.mrf.mxu0
  %v387 = vadd.f32 0.0, %v386
  %v388 = vpop.f32.mrf.mxu0
  %389 = vmatprep.mubr.f32.mxu0 %v215
  %390 = vmatmul.mubr.f32.gmra.mxu0 %v147
  %v391 = vpop.f32.mrf.mxu0
  %v392 = vadd.f32 0.0, %v391
  %v393 = vpop.f32.mrf.mxu0
  %394 = vmatprep.mubr.f32.mxu0 %v218
  %395 = vmatmul.mubr.f32.gmra.mxu0 %v149
  %v396 = vpop.f32.mrf.mxu0
  %v397 = vadd.f32 0.0, %v396
  %v398 = vpop.f32.mrf.mxu0
  %399 = vmatprep.mubr.f32.mxu0 %v221
  %400 = vmatmul.mubr.f32.gmra.mxu0 %v151
  %v401 = vpop.f32.mrf.mxu0
  %v402 = vadd.f32 0.0, %v401
  %v403 = vpop.f32.mrf.mxu0
  %404 = vmatprep.mubr.f32.mxu0 %v224
  %405 = vmatmul.mubr.f32.gmra.mxu0 %v153
  %v406 = vpop.f32.mrf.mxu0
  %v407 = vadd.f32 0.0, %v406
  %v408 = vpop.f32.mrf.mxu0
  %409 = vmatprep.mubr.f32.mxu0 %v227
  %410 = vmatmul.mubr.f32.gmra.mxu0 %v155
  %v411 = vpop.f32.mrf.mxu0
  %v412 = vadd.f32 0.0, %v411
  %v413 = vpop.f32.mrf.mxu0
  %414 = vmatprep.mubr.f32.mxu0 %v230
  %415 = vmatmul.mubr.f32.gmra.mxu0 %v157
  %v416 = vpop.f32.mrf.mxu0
  %v417 = vadd.f32 0.0, %v416
  %v418 = vpop.f32.mrf.mxu0
  %419 = vmatprep.mubr.f32.mxu0 %v233
  %420 = vmatmul.mubr.f32.gmra.mxu0 %v159
  %v421 = vpop.f32.mrf.mxu0
  %v422 = vadd.f32 0.0, %v421
  %v423 = vpop.f32.mrf.mxu0
  %424 = vmatprep.mubr.f32.mxu0 %v236
  %425 = vmatmul.mubr.f32.gmra.mxu0 %v161
  %v426 = vpop.f32.mrf.mxu0
  %v427 = vadd.f32 0.0, %v426
  %v428 = vpop.f32.mrf.mxu0
  %429 = vmatprep.mubr.f32.mxu0 %v239
  %430 = vmatmul.mubr.f32.gmra.mxu0 %v163
  %v431 = vpop.f32.mrf.mxu0
  %v432 = vadd.f32 0.0, %v431
  %v433 = vpop.f32.mrf.mxu0
  %434 = vdwg.mxu0
  %v436 = vsel %vm165, %v65, 0
  %v439 = vsel %vm165, %v67, 0
  %v442 = vsel %vm165, %v69, 0
  %v445 = vsel %vm165, %v71, 0
  %v448 = vsel %vm165, %v73, 0
  %v451 = vsel %vm165, %v75, 0
  %v454 = vsel %vm165, %v77, 0
  %v457 = vsel %vm165, %v79, 0
  %v460 = vsel %vm165, %v81, 0
  %v463 = vsel %vm165, %v83, 0
  %v466 = vsel %vm165, %v85, 0
  %v469 = vsel %vm165, %v87, 0
  %v472 = vsel %vm165, %v89, 0
  %v475 = vsel %vm165, %v91, 0
  %v478 = vsel %vm165, %v93, 0
  %v481 = vsel %vm165, %v95, 0
  %v484 = vsel %vm165, %v97, 0
  %v487 = vsel %vm165, %v99, 0
  %v490 = vsel %vm165, %v101, 0
  %v493 = vsel %vm165, %v103, 0
  %v496 = vsel %vm165, %v105, 0
  %v499 = vsel %vm165, %v107, 0
  %v502 = vsel %vm165, %v109, 0
  %v505 = vsel %vm165, %v111, 0
  %v508 = vsel %vm165, %v113, 0
  %v511 = vsel %vm241, %v62, 0
  %513 = vmatprep.subr.mxu0 0.0
  %514 = vmatpush1.msra.mxu0 %v44
  %515 = vmatprep.subr.mxu0 0.0
  %516 = vmatpush1.msra.mxu0 %v42
  %517 = vmatprep.subr.mxu0 0.0
  %518 = vmatpush1.msra.mxu0 %v40
  %519 = vmatprep.subr.mxu0 0.0
  %520 = vmatpush1.msra.mxu0 %v38
  %521 = vmatprep.subr.mxu0 0.0
  %522 = vmatpush1.msra.mxu0 %v36
  %523 = vmatprep.subr.mxu0 0.0
  %524 = vmatpush1.msra.mxu0 %v34
  %525 = vmatprep.subr.mxu0 0.0
  %526 = vmatpush1.msra.mxu0 %v32
  %527 = vmatprep.subr.mxu0 0.0
  %528 = vmatpush1.msra.mxu0 %v30
  %529 = vmatprep.subr.mxu0 0.0
  %530 = vmatpush1.msra.mxu0 %v28
  %531 = vmatprep.subr.mxu0 0.0
  %532 = vmatpush1.msra.mxu0 %v26
  %533 = vmatprep.subr.mxu0 0.0
  %534 = vmatpush1.msra.mxu0 %v24
  %535 = vmatprep.subr.mxu0 0.0
  %536 = vmatpush1.msra.mxu0 %v22
  %537 = vmatprep.subr.mxu0 0.0
  %538 = vmatpush1.msra.mxu0 %v20
  %539 = vmatprep.subr.mxu0 0.0
  %540 = vmatpush1.msra.mxu0 %v18
  %541 = vmatprep.subr.mxu0 0.0
  %542 = vmatpush1.msra.mxu0 %v16
  %543 = vmatprep.subr.mxu0 0.0
  %544 = vmatpush1.msra.mxu0 %v14
  %545 = vmatprep.subr.mxu0 0.0
  %546 = vmatpush2.msra.mxu0 0.0
  %547 = vmatprep.subr.mxu0 0.0
  %548 = vmatpush2.msra.mxu0 0.0
  %549 = vmatprep.subr.mxu0 0.0
  %550 = vmatpush2.msra.mxu0 0.0
  %551 = vmatprep.subr.mxu0 0.0
  %552 = vmatpush2.msra.mxu0 0.0
  %553 = vmatprep.subr.mxu0 0.0
  %554 = vmatpush2.msra.mxu0 0.0
  %555 = vmatprep.subr.mxu0 0.0
  %556 = vmatpush2.msra.mxu0 0.0
  %557 = vmatprep.subr.mxu0 0.0
  %558 = vmatpush2.msra.mxu0 0.0
  %559 = vmatprep.subr.mxu0 0.0
  %560 = vmatpush2.msra.mxu0 %v511
  %561 = vmatprep.subr.mxu0 0.0
  %562 = vmatpush2.msra.mxu0 %v60
  %563 = vmatprep.subr.mxu0 0.0
  %564 = vmatpush2.msra.mxu0 %v58
  %565 = vmatprep.subr.mxu0 0.0
  %566 = vmatpush2.msra.mxu0 %v56
  %567 = vmatprep.subr.mxu0 0.0
  %568 = vmatpush2.msra.mxu0 %v54
  %569 = vmatprep.subr.mxu0 0.0
  %570 = vmatpush2.msra.mxu0 %v52
  %571 = vmatprep.subr.mxu0 0.0
  %572 = vmatpush2.msra.mxu0 %v50
  %573 = vmatprep.subr.mxu0 0.0
  %574 = vmatpush2.msra.mxu0 %v48
  %575 = vmatprep.subr.mxu0 0.0
  %576 = vmatpush2.msra.mxu0 %v46
  %577 = vmatprep.mubr.f32.mxu0 %v436
  %578 = vmatmul.mubr.f32.gmra.mxu0 %v64
  %v579 = vpop.f32.mrf.mxu0
  %v580 = vadd.f32 %v312, %v579
  %v581 = vpop.f32.mrf.mxu0
  %582 = vmatprep.mubr.f32.mxu0 %v439
  %583 = vmatmul.mubr.f32.gmra.mxu0 %v66
  %v584 = vpop.f32.mrf.mxu0
  %v585 = vadd.f32 %v317, %v584
  %v586 = vpop.f32.mrf.mxu0
  %587 = vmatprep.mubr.f32.mxu0 %v442
  %588 = vmatmul.mubr.f32.gmra.mxu0 %v68
  %v589 = vpop.f32.mrf.mxu0
  %v590 = vadd.f32 %v322, %v589
  %v591 = vpop.f32.mrf.mxu0
  %592 = vmatprep.mubr.f32.mxu0 %v445
  %593 = vmatmul.mubr.f32.gmra.mxu0 %v70
  %v594 = vpop.f32.mrf.mxu0
  %v595 = vadd.f32 %v327, %v594
  %v596 = vpop.f32.mrf.mxu0
  %597 = vmatprep.mubr.f32.mxu0 %v448
  %598 = vmatmul.mubr.f32.gmra.mxu0 %v72
  %v599 = vpop.f32.mrf.mxu0
  %v600 = vadd.f32 %v332, %v599
  %v601 = vpop.f32.mrf.mxu0
  %602 = vmatprep.mubr.f32.mxu0 %v451
  %603 = vmatmul.mubr.f32.gmra.mxu0 %v74
  %v604 = vpop.f32.mrf.mxu0
  %v605 = vadd.f32 %v337, %v604
  %v606 = vpop.f32.mrf.mxu0
  %607 = vmatprep.mubr.f32.mxu0 %v454
  %608 = vmatmul.mubr.f32.gmra.mxu0 %v76
  %v609 = vpop.f32.mrf.mxu0
  %v610 = vadd.f32 %v342, %v609
  %v611 = vpop.f32.mrf.mxu0
  %612 = vmatprep.mubr.f32.mxu0 %v457
  %613 = vmatmul.mubr.f32.gmra.mxu0 %v78
  %v614 = vpop.f32.mrf.mxu0
  %v615 = vadd.f32 %v347, %v614
  %v616 = vpop.f32.mrf.mxu0
  %617 = vmatprep.mubr.f32.mxu0 %v460
  %618 = vmatmul.mubr.f32.gmra.mxu0 %v80
  %v619 = vpop.f32.mrf.mxu0
  %v620 = vadd.f32 %v352, %v619
  %v621 = vpop.f32.mrf.mxu0
  %622 = vmatprep.mubr.f32.mxu0 %v463
  %623 = vmatmul.mubr.f32.gmra.mxu0 %v82
  %v624 = vpop.f32.mrf.mxu0
  %v625 = vadd.f32 %v357, %v624
  %v626 = vpop.f32.mrf.mxu0
  %627 = vmatprep.mubr.f32.mxu0 %v466
  %628 = vmatmul.mubr.f32.gmra.mxu0 %v84
  %v629 = vpop.f32.mrf.mxu0
  %v630 = vadd.f32 %v362, %v629
  %v631 = vpop.f32.mrf.mxu0
  %632 = vmatprep.mubr.f32.mxu0 %v469
  %633 = vmatmul.mubr.f32.gmra.mxu0 %v86
  %v634 = vpop.f32.mrf.mxu0
  %v635 = vadd.f32 %v367, %v634
  %v636 = vpop.f32.mrf.mxu0
  %637 = vmatprep.mubr.f32.mxu0 %v472
  %638 = vmatmul.mubr.f32.gmra.mxu0 %v88
  %v639 = vpop.f32.mrf.mxu0
  %v640 = vadd.f32 %v372, %v639
  %v641 = vpop.f32.mrf.mxu0
  %642 = vmatprep.mubr.f32.mxu0 %v475
  %643 = vmatmul.mubr.f32.gmra.mxu0 %v90
  %v644 = vpop.f32.mrf.mxu0
  %v645 = vadd.f32 %v377, %v644
  %v646 = vpop.f32.mrf.mxu0
  %647 = vmatprep.mubr.f32.mxu0 %v478
  %648 = vmatmul.mubr.f32.gmra.mxu0 %v92
  %v649 = vpop.f32.mrf.mxu0
  %v650 = vadd.f32 %v382, %v649
  %v651 = vpop.f32.mrf.mxu0
  %652 = vmatprep.mubr.f32.mxu0 %v481
  %653 = vmatmul.mubr.f32.gmra.mxu0 %v94
  %v654 = vpop.f32.mrf.mxu0
  %v655 = vadd.f32 %v387, %v654
  %v656 = vpop.f32.mrf.mxu0
  %657 = vmatprep.mubr.f32.mxu0 %v484
  %658 = vmatmul.mubr.f32.gmra.mxu0 %v96
  %v659 = vpop.f32.mrf.mxu0
  %v660 = vadd.f32 %v392, %v659
  %v661 = vpop.f32.mrf.mxu0
  %662 = vmatprep.mubr.f32.mxu0 %v487
  %663 = vmatmul.mubr.f32.gmra.mxu0 %v98
  %v664 = vpop.f32.mrf.mxu0
  %v665 = vadd.f32 %v397, %v664
  %v666 = vpop.f32.mrf.mxu0
  %667 = vmatprep.mubr.f32.mxu0 %v490
  %668 = vmatmul.mubr.f32.gmra.mxu0 %v100
  %v669 = vpop.f32.mrf.mxu0
  %v670 = vadd.f32 %v402, %v669
  %v671 = vpop.f32.mrf.mxu0
  %672 = vmatprep.mubr.f32.mxu0 %v493
  %673 = vmatmul.mubr.f32.gmra.mxu0 %v102
  %v674 = vpop.f32.mrf.mxu0
  %v675 = vadd.f32 %v407, %v674
  %v676 = vpop.f32.mrf.mxu0
  %677 = vmatprep.mubr.f32.mxu0 %v496
  %678 = vmatmul.mubr.f32.gmra.mxu0 %v104
  %v679 = vpop.f32.mrf.mxu0
  %v680 = vadd.f32 %v412, %v679
  %v681 = vpop.f32.mrf.mxu0
  %682 = vmatprep.mubr.f32.mxu0 %v499
  %683 = vmatmul.mubr.f32.gmra.mxu0 %v106
  %v684 = vpop.f32.mrf.mxu0
  %v685 = vadd.f32 %v417, %v684
  %v686 = vpop.f32.mrf.mxu0
  %687 = vmatprep.mubr.f32.mxu0 %v502
  %688 = vmatmul.mubr.f32.gmra.mxu0 %v108
  %v689 = vpop.f32.mrf.mxu0
  %v690 = vadd.f32 %v422, %v689
  %v691 = vpop.f32.mrf.mxu0
  %692 = vmatprep.mubr.f32.mxu0 %v505
  %693 = vmatmul.mubr.f32.gmra.mxu0 %v110
  %v694 = vpop.f32.mrf.mxu0
  %v695 = vadd.f32 %v427, %v694
  %v696 = vpop.f32.mrf.mxu0
  %697 = vmatprep.mubr.f32.mxu0 %v508
  %698 = vmatmul.mubr.f32.gmra.mxu0 %v112
  %v699 = vpop.f32.mrf.mxu0
  %v700 = vadd.f32 %v432, %v699
  %v701 = vpop.f32.mrf.mxu0
  %702 = vdwg.mxu0
  %s703 = scalar_lea.vmem %s1, 800
  %v704 = vld [vmem:[%s703] sm:$0xff]
  %v705 = vld [vmem:[%s703 + $0x8] sm:$0xff]
  %v706 = vld [vmem:[%s703 + $0x10] sm:$0xff]
  %v707 = vld [vmem:[%s703 + $0x18] sm:$0xff]
  %v708 = vld [vmem:[%s703 + $0x20] sm:$0xff]
  %v709 = vld [vmem:[%s703 + $0x28] sm:$0xff]
  %v710 = vld [vmem:[%s703 + $0x30] sm:$0xff]
  %v711 = vld [vmem:[%s703 + $0x38] sm:$0xff]
  %v712 = vld [vmem:[%s703 + $0x40] sm:$0xff]
  %v713 = vld [vmem:[%s703 + $0x48] sm:$0xff]
  %v714 = vld [vmem:[%s703 + $0x50] sm:$0xff]
  %v715 = vld [vmem:[%s703 + $0x58] sm:$0xff]
  %v716 = vld [vmem:[%s703 + $0x60] sm:$0xff]
  %v717 = vld [vmem:[%s703 + $0x68] sm:$0xff]
  %v718 = vld [vmem:[%s703 + $0x70] sm:$0xff]
  %v719 = vld [vmem:[%s703 + $0x78] sm:$0xff]
  %v720 = vld [vmem:[%s703 + $0x80] sm:$0xff]
  %v721 = vld [vmem:[%s703 + $0x88] sm:$0xff]
  %v722 = vld [vmem:[%s703 + $0x90] sm:$0xff]
  %v723 = vld [vmem:[%s703 + $0x98] sm:$0xff]
  %v724 = vld [vmem:[%s703 + $0xa0] sm:$0xff]
  %v725 = vld [vmem:[%s703 + $0xa8] sm:$0xff]
  %v726 = vld [vmem:[%s703 + $0xb0] sm:$0xff]
  %v727 = vld [vmem:[%s703 + $0xb8] sm:$0xff]
  %v728 = vld [vmem:[%s703 + $0xc0] sm:$0xff]
  %v729 = vld [vmem:[%s703 + $0xc8] sm:$0xff]
  %v730 = vld [vmem:[%s703 + $0xd0] sm:$0xff]
  %v731 = vld [vmem:[%s703 + $0xd8] sm:$0xff]
  %v732 = vld [vmem:[%s703 + $0xe0] sm:$0xff]
  %v733 = vld [vmem:[%s703 + $0xe8] sm:$0xff]
  %v734 = vld [vmem:[%s703 + $0xf0] sm:$0xff]
  %v735 = vld [vmem:[%s703 + $0xf8] sm:$0xff]
  %v736 = vld [vmem:[%s703 + $0x100] sm:$0xff]
  %v737 = vld [vmem:[%s703 + $0x108] sm:$0xff]
  %v738 = vld [vmem:[%s703 + $0x110] sm:$0xff]
  %v739 = vld [vmem:[%s703 + $0x118] sm:$0xff]
  %v740 = vld [vmem:[%s703 + $0x120] sm:$0xff]
  %v741 = vld [vmem:[%s703 + $0x128] sm:$0xff]
  %v742 = vld [vmem:[%s703 + $0x130] sm:$0xff]
  %v743 = vld [vmem:[%s703 + $0x138] sm:$0xff]
  %v744 = vld [vmem:[%s703 + $0x140] sm:$0xff]
  %v745 = vld [vmem:[%s703 + $0x148] sm:$0xff]
  %v746 = vld [vmem:[%s703 + $0x150] sm:$0xff]
  %v747 = vld [vmem:[%s703 + $0x158] sm:$0xff]
  %v748 = vld [vmem:[%s703 + $0x160] sm:$0xff]
  %v749 = vld [vmem:[%s703 + $0x168] sm:$0xff]
  %v750 = vld [vmem:[%s703 + $0x170] sm:$0xff]
  %v751 = vld [vmem:[%s703 + $0x178] sm:$0xff]
  %v752 = vld [vmem:[%s703 + $0x180] sm:$0xf]
  %v753 = vld [vmem:[%s703 + $0x188] sm:$0xf]
  %s754 = scalar_lea.vmem %s1, 1200
  %v755 = vld [vmem:[%s754] sm:$0xff]
  %v756 = vld [vmem:[%s754 + $0x8] sm:$0xff]
  %v757 = vld [vmem:[%s754 + $0x10] sm:$0xff]
  %v758 = vld [vmem:[%s754 + $0x18] sm:$0xff]
  %v759 = vld [vmem:[%s754 + $0x20] sm:$0xff]
  %v760 = vld [vmem:[%s754 + $0x28] sm:$0xff]
  %v761 = vld [vmem:[%s754 + $0x30] sm:$0xff]
  %v762 = vld [vmem:[%s754 + $0x38] sm:$0xff]
  %v763 = vld [vmem:[%s754 + $0x40] sm:$0xff]
  %v764 = vld [vmem:[%s754 + $0x48] sm:$0xff]
  %v765 = vld [vmem:[%s754 + $0x50] sm:$0xff]
  %v766 = vld [vmem:[%s754 + $0x58] sm:$0xff]
  %v767 = vld [vmem:[%s754 + $0x60] sm:$0xff]
  %v768 = vld [vmem:[%s754 + $0x68] sm:$0xff]
  %v769 = vld [vmem:[%s754 + $0x70] sm:$0xff]
  %v770 = vld [vmem:[%s754 + $0x78] sm:$0xff]
  %v771 = vld [vmem:[%s754 + $0x80] sm:$0xff]
  %v772 = vld [vmem:[%s754 + $0x88] sm:$0xff]
  %v773 = vld [vmem:[%s754 + $0x90] sm:$0xff]
  %v774 = vld [vmem:[%s754 + $0x98] sm:$0xff]
  %v775 = vld [vmem:[%s754 + $0xa0] sm:$0xff]
  %v776 = vld [vmem:[%s754 + $0xa8] sm:$0xff]
  %v777 = vld [vmem:[%s754 + $0xb0] sm:$0xff]
  %v778 = vld [vmem:[%s754 + $0xb8] sm:$0xff]
  %v779 = vld [vmem:[%s754 + $0xc0] sm:$0xff]
  %v780 = vld [vmem:[%s754 + $0xc8] sm:$0xff]
  %v781 = vld [vmem:[%s754 + $0xd0] sm:$0xff]
  %v782 = vld [vmem:[%s754 + $0xd8] sm:$0xff]
  %v783 = vld [vmem:[%s754 + $0xe0] sm:$0xff]
  %v784 = vld [vmem:[%s754 + $0xe8] sm:$0xff]
  %v785 = vld [vmem:[%s754 + $0xf0] sm:$0xff]
  %v786 = vld [vmem:[%s754 + $0xf8] sm:$0xff]
  %v787 = vld [vmem:[%s754 + $0x100] sm:$0xff]
  %v788 = vld [vmem:[%s754 + $0x108] sm:$0xff]
  %v789 = vld [vmem:[%s754 + $0x110] sm:$0xff]
  %v790 = vld [vmem:[%s754 + $0x118] sm:$0xff]
  %v791 = vld [vmem:[%s754 + $0x120] sm:$0xff]
  %v792 = vld [vmem:[%s754 + $0x128] sm:$0xff]
  %v793 = vld [vmem:[%s754 + $0x130] sm:$0xff]
  %v794 = vld [vmem:[%s754 + $0x138] sm:$0xff]
  %v795 = vld [vmem:[%s754 + $0x140] sm:$0xff]
  %v796 = vld [vmem:[%s754 + $0x148] sm:$0xff]
  %v797 = vld [vmem:[%s754 + $0x150] sm:$0xff]
  %v798 = vld [vmem:[%s754 + $0x158] sm:$0xff]
  %v799 = vld [vmem:[%s754 + $0x160] sm:$0xff]
  %v800 = vld [vmem:[%s754 + $0x168] sm:$0xff]
  %v801 = vld [vmem:[%s754 + $0x170] sm:$0xff]
  %v802 = vld [vmem:[%s754 + $0x178] sm:$0xff]
  %v803 = vld [vmem:[%s754 + $0x180] sm:$0xf]
  %v804 = vld [vmem:[%s754 + $0x188] sm:$0xf]
  %v806 = vsel %vm165, %v756, 0
  %v809 = vsel %vm165, %v758, 0
  %v812 = vsel %vm165, %v760, 0
  %v815 = vsel %vm165, %v762, 0
  %v818 = vsel %vm165, %v764, 0
  %v821 = vsel %vm165, %v766, 0
  %v824 = vsel %vm165, %v768, 0
  %v827 = vsel %vm165, %v770, 0
  %v830 = vsel %vm165, %v772, 0
  %v833 = vsel %vm165, %v774, 0
  %v836 = vsel %vm165, %v776, 0
  %v839 = vsel %vm165, %v778, 0
  %v842 = vsel %vm165, %v780, 0
  %v845 = vsel %vm165, %v782, 0
  %v848 = vsel %vm165, %v784, 0
  %v851 = vsel %vm165, %v786, 0
  %v854 = vsel %vm165, %v788, 0
  %v857 = vsel %vm165, %v790, 0
  %v860 = vsel %vm165, %v792, 0
  %v863 = vsel %vm165, %v794, 0
  %v866 = vsel %vm165, %v796, 0
  %v869 = vsel %vm165, %v798, 0
  %v872 = vsel %vm165, %v800, 0
  %v875 = vsel %vm165, %v802, 0
  %v878 = vsel %vm165, %v804, 0
  %880 = vmatprep.subr.mxu0 0.0
  %881 = vmatpush1.msra.mxu0 %v45
  %882 = vmatprep.subr.mxu0 0.0
  %883 = vmatpush1.msra.mxu0 %v43
  %884 = vmatprep.subr.mxu0 0.0
  %885 = vmatpush1.msra.mxu0 %v41
  %886 = vmatprep.subr.mxu0 0.0
  %887 = vmatpush1.msra.mxu0 %v39
  %888 = vmatprep.subr.mxu0 0.0
  %889 = vmatpush1.msra.mxu0 %v37
  %890 = vmatprep.subr.mxu0 0.0
  %891 = vmatpush1.msra.mxu0 %v35
  %892 = vmatprep.subr.mxu0 0.0
  %893 = vmatpush1.msra.mxu0 %v33
  %894 = vmatprep.subr.mxu0 0.0
  %895 = vmatpush1.msra.mxu0 %v31
  %896 = vmatprep.subr.mxu0 0.0
  %897 = vmatpush1.msra.mxu0 %v29
  %898 = vmatprep.subr.mxu0 0.0
  %899 = vmatpush1.msra.mxu0 %v27
  %900 = vmatprep.subr.mxu0 0.0
  %901 = vmatpush1.msra.mxu0 %v25
  %902 = vmatprep.subr.mxu0 0.0
  %903 = vmatpush1.msra.mxu0 %v23
  %904 = vmatprep.subr.mxu0 0.0
  %905 = vmatpush1.msra.mxu0 %v21
  %906 = vmatprep.subr.mxu0 0.0
  %907 = vmatpush1.msra.mxu0 %v19
  %908 = vmatprep.subr.mxu0 0.0
  %909 = vmatpush1.msra.mxu0 %v17
  %910 = vmatprep.subr.mxu0 0.0
  %911 = vmatpush1.msra.mxu0 %v15
  %912 = vmatprep.subr.mxu0 0.0
  %913 = vmatpush2.msra.mxu0 0.0
  %914 = vmatprep.subr.mxu0 0.0
  %915 = vmatpush2.msra.mxu0 0.0
  %916 = vmatprep.subr.mxu0 0.0
  %917 = vmatpush2.msra.mxu0 0.0
  %918 = vmatprep.subr.mxu0 0.0
  %919 = vmatpush2.msra.mxu0 0.0
  %920 = vmatprep.subr.mxu0 0.0
  %921 = vmatpush2.msra.mxu0 0.0
  %922 = vmatprep.subr.mxu0 0.0
  %923 = vmatpush2.msra.mxu0 0.0
  %924 = vmatprep.subr.mxu0 0.0
  %925 = vmatpush2.msra.mxu0 0.0
  %926 = vmatprep.subr.mxu0 0.0
  %927 = vmatpush2.msra.mxu0 %v243
  %928 = vmatprep.subr.mxu0 0.0
  %929 = vmatpush2.msra.mxu0 %v61
  %930 = vmatprep.subr.mxu0 0.0
  %931 = vmatpush2.msra.mxu0 %v59
  %932 = vmatprep.subr.mxu0 0.0
  %933 = vmatpush2.msra.mxu0 %v57
  %934 = vmatprep.subr.mxu0 0.0
  %935 = vmatpush2.msra.mxu0 %v55
  %936 = vmatprep.subr.mxu0 0.0
  %937 = vmatpush2.msra.mxu0 %v53
  %938 = vmatprep.subr.mxu0 0.0
  %939 = vmatpush2.msra.mxu0 %v51
  %940 = vmatprep.subr.mxu0 0.0
  %941 = vmatpush2.msra.mxu0 %v49
  %942 = vmatprep.subr.mxu0 0.0
  %943 = vmatpush2.msra.mxu0 %v47
  %944 = vmatprep.mubr.f32.mxu0 %v806
  %945 = vmatmul.mubr.f32.gmra.mxu0 %v755
  %v946 = vpop.f32.mrf.mxu0
  %v947 = vadd.f32 0.0, %v946
  %v948 = vpop.f32.mrf.mxu0
  %949 = vmatprep.mubr.f32.mxu0 %v809
  %950 = vmatmul.mubr.f32.gmra.mxu0 %v757
  %v951 = vpop.f32.mrf.mxu0
  %v952 = vadd.f32 0.0, %v951
  %v953 = vpop.f32.mrf.mxu0
  %954 = vmatprep.mubr.f32.mxu0 %v812
  %955 = vmatmul.mubr.f32.gmra.mxu0 %v759
  %v956 = vpop.f32.mrf.mxu0
  %v957 = vadd.f32 0.0, %v956
  %v958 = vpop.f32.mrf.mxu0
  %959 = vmatprep.mubr.f32.mxu0 %v815
  %960 = vmatmul.mubr.f32.gmra.mxu0 %v761
  %v961 = vpop.f32.mrf.mxu0
  %v962 = vadd.f32 0.0, %v961
  %v963 = vpop.f32.mrf.mxu0
  %964 = vmatprep.mubr.f32.mxu0 %v818
  %965 = vmatmul.mubr.f32.gmra.mxu0 %v763
  %v966 = vpop.f32.mrf.mxu0
  %v967 = vadd.f32 0.0, %v966
  %v968 = vpop.f32.mrf.mxu0
  %969 = vmatprep.mubr.f32.mxu0 %v821
  %970 = vmatmul.mubr.f32.gmra.mxu0 %v765
  %v971 = vpop.f32.mrf.mxu0
  %v972 = vadd.f32 0.0, %v971
  %v973 = vpop.f32.mrf.mxu0
  %974 = vmatprep.mubr.f32.mxu0 %v824
  %975 = vmatmul.mubr.f32.gmra.mxu0 %v767
  %v976 = vpop.f32.mrf.mxu0
  %v977 = vadd.f32 0.0, %v976
  %v978 = vpop.f32.mrf.mxu0
  %979 = vmatprep.mubr.f32.mxu0 %v827
  %980 = vmatmul.mubr.f32.gmra.mxu0 %v769
  %v981 = vpop.f32.mrf.mxu0
  %v982 = vadd.f32 0.0, %v981
  %v983 = vpop.f32.mrf.mxu0
  %984 = vmatprep.mubr.f32.mxu0 %v830
  %985 = vmatmul.mubr.f32.gmra.mxu0 %v771
  %v986 = vpop.f32.mrf.mxu0
  %v987 = vadd.f32 0.0, %v986
  %v988 = vpop.f32.mrf.mxu0
  %989 = vmatprep.mubr.f32.mxu0 %v833
  %990 = vmatmul.mubr.f32.gmra.mxu0 %v773
  %v991 = vpop.f32.mrf.mxu0
  %v992 = vadd.f32 0.0, %v991
  %v993 = vpop.f32.mrf.mxu0
  %994 = vmatprep.mubr.f32.mxu0 %v836
  %995 = vmatmul.mubr.f32.gmra.mxu0 %v775
  %v996 = vpop.f32.mrf.mxu0
  %v997 = vadd.f32 0.0, %v996
  %v998 = vpop.f32.mrf.mxu0
  %999 = vmatprep.mubr.f32.mxu0 %v839
  %1000 = vmatmul.mubr.f32.gmra.mxu0 %v777
  %v1001 = vpop.f32.mrf.mxu0
  %v1002 = vadd.f32 0.0, %v1001
  %v1003 = vpop.f32.mrf.mxu0
  %1004 = vmatprep.mubr.f32.mxu0 %v842
  %1005 = vmatmul.mubr.f32.gmra.mxu0 %v779
  %v1006 = vpop.f32.mrf.mxu0
  %v1007 = vadd.f32 0.0, %v1006
  %v1008 = vpop.f32.mrf.mxu0
  %1009 = vmatprep.mubr.f32.mxu0 %v845
  %1010 = vmatmul.mubr.f32.gmra.mxu0 %v781
  %v1011 = vpop.f32.mrf.mxu0
  %v1012 = vadd.f32 0.0, %v1011
  %v1013 = vpop.f32.mrf.mxu0
  %1014 = vmatprep.mubr.f32.mxu0 %v848
  %1015 = vmatmul.mubr.f32.gmra.mxu0 %v783
  %v1016 = vpop.f32.mrf.mxu0
  %v1017 = vadd.f32 0.0, %v1016
  %v1018 = vpop.f32.mrf.mxu0
  %1019 = vmatprep.mubr.f32.mxu0 %v851
  %1020 = vmatmul.mubr.f32.gmra.mxu0 %v785
  %v1021 = vpop.f32.mrf.mxu0
  %v1022 = vadd.f32 0.0, %v1021
  %v1023 = vpop.f32.mrf.mxu0
  %1024 = vmatprep.mubr.f32.mxu0 %v854
  %1025 = vmatmul.mubr.f32.gmra.mxu0 %v787
  %v1026 = vpop.f32.mrf.mxu0
  %v1027 = vadd.f32 0.0, %v1026
  %v1028 = vpop.f32.mrf.mxu0
  %1029 = vmatprep.mubr.f32.mxu0 %v857
  %1030 = vmatmul.mubr.f32.gmra.mxu0 %v789
  %v1031 = vpop.f32.mrf.mxu0
  %v1032 = vadd.f32 0.0, %v1031
  %v1033 = vpop.f32.mrf.mxu0
  %1034 = vmatprep.mubr.f32.mxu0 %v860
  %1035 = vmatmul.mubr.f32.gmra.mxu0 %v791
  %v1036 = vpop.f32.mrf.mxu0
  %v1037 = vadd.f32 0.0, %v1036
  %v1038 = vpop.f32.mrf.mxu0
  %1039 = vmatprep.mubr.f32.mxu0 %v863
  %1040 = vmatmul.mubr.f32.gmra.mxu0 %v793
  %v1041 = vpop.f32.mrf.mxu0
  %v1042 = vadd.f32 0.0, %v1041
  %v1043 = vpop.f32.mrf.mxu0
  %1044 = vmatprep.mubr.f32.mxu0 %v866
  %1045 = vmatmul.mubr.f32.gmra.mxu0 %v795
  %v1046 = vpop.f32.mrf.mxu0
  %v1047 = vadd.f32 0.0, %v1046
  %v1048 = vpop.f32.mrf.mxu0
  %1049 = vmatprep.mubr.f32.mxu0 %v869
  %1050 = vmatmul.mubr.f32.gmra.mxu0 %v797
  %v1051 = vpop.f32.mrf.mxu0
  %v1052 = vadd.f32 0.0, %v1051
  %v1053 = vpop.f32.mrf.mxu0
  %1054 = vmatprep.mubr.f32.mxu0 %v872
  %1055 = vmatmul.mubr.f32.gmra.mxu0 %v799
  %v1056 = vpop.f32.mrf.mxu0
  %v1057 = vadd.f32 0.0, %v1056
  %v1058 = vpop.f32.mrf.mxu0
  %1059 = vmatprep.mubr.f32.mxu0 %v875
  %1060 = vmatmul.mubr.f32.gmra.mxu0 %v801
  %v1061 = vpop.f32.mrf.mxu0
  %v1062 = vadd.f32 0.0, %v1061
  %v1063 = vpop.f32.mrf.mxu0
  %1064 = vmatprep.mubr.f32.mxu0 %v878
  %1065 = vmatmul.mubr.f32.gmra.mxu0 %v803
  %v1066 = vpop.f32.mrf.mxu0
  %v1067 = vadd.f32 0.0, %v1066
  %v1068 = vpop.f32.mrf.mxu0
  %1069 = vdwg.mxu0
  %v1071 = vsel %vm165, %v705, 0
  %v1074 = vsel %vm165, %v707, 0
  %v1077 = vsel %vm165, %v709, 0
  %v1080 = vsel %vm165, %v711, 0
  %v1083 = vsel %vm165, %v713, 0
  %v1086 = vsel %vm165, %v715, 0
  %v1089 = vsel %vm165, %v717, 0
  %v1092 = vsel %vm165, %v719, 0
  %v1095 = vsel %vm165, %v721, 0
  %v1098 = vsel %vm165, %v723, 0
  %v1101 = vsel %vm165, %v725, 0
  %v1104 = vsel %vm165, %v727, 0
  %v1107 = vsel %vm165, %v729, 0
  %v1110 = vsel %vm165, %v731, 0
  %v1113 = vsel %vm165, %v733, 0
  %v1116 = vsel %vm165, %v735, 0
  %v1119 = vsel %vm165, %v737, 0
  %v1122 = vsel %vm165, %v739, 0
  %v1125 = vsel %vm165, %v741, 0
  %v1128 = vsel %vm165, %v743, 0
  %v1131 = vsel %vm165, %v745, 0
  %v1134 = vsel %vm165, %v747, 0
  %v1137 = vsel %vm165, %v749, 0
  %v1140 = vsel %vm165, %v751, 0
  %v1143 = vsel %vm165, %v753, 0
  %1145 = vmatprep.subr.mxu0 0.0
  %1146 = vmatpush1.msra.mxu0 %v44
  %1147 = vmatprep.subr.mxu0 0.0
  %1148 = vmatpush1.msra.mxu0 %v42
  %1149 = vmatprep.subr.mxu0 0.0
  %1150 = vmatpush1.msra.mxu0 %v40
  %1151 = vmatprep.subr.mxu0 0.0
  %1152 = vmatpush1.msra.mxu0 %v38
  %1153 = vmatprep.subr.mxu0 0.0
  %1154 = vmatpush1.msra.mxu0 %v36
  %1155 = vmatprep.subr.mxu0 0.0
  %1156 = vmatpush1.msra.mxu0 %v34
  %1157 = vmatprep.subr.mxu0 0.0
  %1158 = vmatpush1.msra.mxu0 %v32
  %1159 = vmatprep.subr.mxu0 0.0
  %1160 = vmatpush1.msra.mxu0 %v30
  %1161 = vmatprep.subr.mxu0 0.0
  %1162 = vmatpush1.msra.mxu0 %v28
  %1163 = vmatprep.subr.mxu0 0.0
  %1164 = vmatpush1.msra.mxu0 %v26
  %1165 = vmatprep.subr.mxu0 0.0
  %1166 = vmatpush1.msra.mxu0 %v24
  %1167 = vmatprep.subr.mxu0 0.0
  %1168 = vmatpush1.msra.mxu0 %v22
  %1169 = vmatprep.subr.mxu0 0.0
  %1170 = vmatpush1.msra.mxu0 %v20
  %1171 = vmatprep.subr.mxu0 0.0
  %1172 = vmatpush1.msra.mxu0 %v18
  %1173 = vmatprep.subr.mxu0 0.0
  %1174 = vmatpush1.msra.mxu0 %v16
  %1175 = vmatprep.subr.mxu0 0.0
  %1176 = vmatpush1.msra.mxu0 %v14
  %1177 = vmatprep.subr.mxu0 0.0
  %1178 = vmatpush2.msra.mxu0 0.0
  %1179 = vmatprep.subr.mxu0 0.0
  %1180 = vmatpush2.msra.mxu0 0.0
  %1181 = vmatprep.subr.mxu0 0.0
  %1182 = vmatpush2.msra.mxu0 0.0
  %1183 = vmatprep.subr.mxu0 0.0
  %1184 = vmatpush2.msra.mxu0 0.0
  %1185 = vmatprep.subr.mxu0 0.0
  %1186 = vmatpush2.msra.mxu0 0.0
  %1187 = vmatprep.subr.mxu0 0.0
  %1188 = vmatpush2.msra.mxu0 0.0
  %1189 = vmatprep.subr.mxu0 0.0
  %1190 = vmatpush2.msra.mxu0 0.0
  %1191 = vmatprep.subr.mxu0 0.0
  %1192 = vmatpush2.msra.mxu0 %v511
  %1193 = vmatprep.subr.mxu0 0.0
  %1194 = vmatpush2.msra.mxu0 %v60
  %1195 = vmatprep.subr.mxu0 0.0
  %1196 = vmatpush2.msra.mxu0 %v58
  %1197 = vmatprep.subr.mxu0 0.0
  %1198 = vmatpush2.msra.mxu0 %v56
  %1199 = vmatprep.subr.mxu0 0.0
  %1200 = vmatpush2.msra.mxu0 %v54
  %1201 = vmatprep.subr.mxu0 0.0
  %1202 = vmatpush2.msra.mxu0 %v52
  %1203 = vmatprep.subr.mxu0 0.0
  %1204 = vmatpush2.msra.mxu0 %v50
  %1205 = vmatprep.subr.mxu0 0.0
  %1206 = vmatpush2.msra.mxu0 %v48
  %1207 = vmatprep.subr.mxu0 0.0
  %1208 = vmatpush2.msra.mxu0 %v46
  %1209 = vmatprep.mubr.f32.mxu0 %v1071
  %1210 = vmatmul.mubr.f32.gmra.mxu0 %v704
  %v1211 = vpop.f32.mrf.mxu0
  %v1212 = vadd.f32 %v947, %v1211
  %v1213 = vpop.f32.mrf.mxu0
  %1214 = vmatprep.mubr.f32.mxu0 %v1074
  %1215 = vmatmul.mubr.f32.gmra.mxu0 %v706
  %v1216 = vpop.f32.mrf.mxu0
  %v1217 = vadd.f32 %v952, %v1216
  %v1218 = vpop.f32.mrf.mxu0
  %1219 = vmatprep.mubr.f32.mxu0 %v1077
  %1220 = vmatmul.mubr.f32.gmra.mxu0 %v708
  %v1221 = vpop.f32.mrf.mxu0
  %v1222 = vadd.f32 %v957, %v1221
  %v1223 = vpop.f32.mrf.mxu0
  %1224 = vmatprep.mubr.f32.mxu0 %v1080
  %1225 = vmatmul.mubr.f32.gmra.mxu0 %v710
  %v1226 = vpop.f32.mrf.mxu0
  %v1227 = vadd.f32 %v962, %v1226
  %v1228 = vpop.f32.mrf.mxu0
  %1229 = vmatprep.mubr.f32.mxu0 %v1083
  %1230 = vmatmul.mubr.f32.gmra.mxu0 %v712
  %v1231 = vpop.f32.mrf.mxu0
  %v1232 = vadd.f32 %v967, %v1231
  %v1233 = vpop.f32.mrf.mxu0
  %1234 = vmatprep.mubr.f32.mxu0 %v1086
  %1235 = vmatmul.mubr.f32.gmra.mxu0 %v714
  %v1236 = vpop.f32.mrf.mxu0
  %v1237 = vadd.f32 %v972, %v1236
  %v1238 = vpop.f32.mrf.mxu0
  %1239 = vmatprep.mubr.f32.mxu0 %v1089
  %1240 = vmatmul.mubr.f32.gmra.mxu0 %v716
  %v1241 = vpop.f32.mrf.mxu0
  %v1242 = vadd.f32 %v977, %v1241
  %v1243 = vpop.f32.mrf.mxu0
  %1244 = vmatprep.mubr.f32.mxu0 %v1092
  %1245 = vmatmul.mubr.f32.gmra.mxu0 %v718
  %v1246 = vpop.f32.mrf.mxu0
  %v1247 = vadd.f32 %v982, %v1246
  %v1248 = vpop.f32.mrf.mxu0
  %1249 = vmatprep.mubr.f32.mxu0 %v1095
  %1250 = vmatmul.mubr.f32.gmra.mxu0 %v720
  %v1251 = vpop.f32.mrf.mxu0
  %v1252 = vadd.f32 %v987, %v1251
  %v1253 = vpop.f32.mrf.mxu0
  %1254 = vmatprep.mubr.f32.mxu0 %v1098
  %1255 = vmatmul.mubr.f32.gmra.mxu0 %v722
  %v1256 = vpop.f32.mrf.mxu0
  %v1257 = vadd.f32 %v992, %v1256
  %v1258 = vpop.f32.mrf.mxu0
  %1259 = vmatprep.mubr.f32.mxu0 %v1101
  %1260 = vmatmul.mubr.f32.gmra.mxu0 %v724
  %v1261 = vpop.f32.mrf.mxu0
  %v1262 = vadd.f32 %v997, %v1261
  %v1263 = vpop.f32.mrf.mxu0
  %1264 = vmatprep.mubr.f32.mxu0 %v1104
  %1265 = vmatmul.mubr.f32.gmra.mxu0 %v726
  %v1266 = vpop.f32.mrf.mxu0
  %v1267 = vadd.f32 %v1002, %v1266
  %v1268 = vpop.f32.mrf.mxu0
  %1269 = vmatprep.mubr.f32.mxu0 %v1107
  %1270 = vmatmul.mubr.f32.gmra.mxu0 %v728
  %v1271 = vpop.f32.mrf.mxu0
  %v1272 = vadd.f32 %v1007, %v1271
  %v1273 = vpop.f32.mrf.mxu0
  %1274 = vmatprep.mubr.f32.mxu0 %v1110
  %1275 = vmatmul.mubr.f32.gmra.mxu0 %v730
  %v1276 = vpop.f32.mrf.mxu0
  %v1277 = vadd.f32 %v1012, %v1276
  %v1278 = vpop.f32.mrf.mxu0
  %1279 = vmatprep.mubr.f32.mxu0 %v1113
  %1280 = vmatmul.mubr.f32.gmra.mxu0 %v732
  %v1281 = vpop.f32.mrf.mxu0
  %v1282 = vadd.f32 %v1017, %v1281
  %v1283 = vpop.f32.mrf.mxu0
  %1284 = vmatprep.mubr.f32.mxu0 %v1116
  %1285 = vmatmul.mubr.f32.gmra.mxu0 %v734
  %v1286 = vpop.f32.mrf.mxu0
  %v1287 = vadd.f32 %v1022, %v1286
  %v1288 = vpop.f32.mrf.mxu0
  %1289 = vmatprep.mubr.f32.mxu0 %v1119
  %1290 = vmatmul.mubr.f32.gmra.mxu0 %v736
  %v1291 = vpop.f32.mrf.mxu0
  %v1292 = vadd.f32 %v1027, %v1291
  %v1293 = vpop.f32.mrf.mxu0
  %1294 = vmatprep.mubr.f32.mxu0 %v1122
  %1295 = vmatmul.mubr.f32.gmra.mxu0 %v738
  %v1296 = vpop.f32.mrf.mxu0
  %v1297 = vadd.f32 %v1032, %v1296
  %v1298 = vpop.f32.mrf.mxu0
  %1299 = vmatprep.mubr.f32.mxu0 %v1125
  %1300 = vmatmul.mubr.f32.gmra.mxu0 %v740
  %v1301 = vpop.f32.mrf.mxu0
  %v1302 = vadd.f32 %v1037, %v1301
  %v1303 = vpop.f32.mrf.mxu0
  %1304 = vmatprep.mubr.f32.mxu0 %v1128
  %1305 = vmatmul.mubr.f32.gmra.mxu0 %v742
  %v1306 = vpop.f32.mrf.mxu0
  %v1307 = vadd.f32 %v1042, %v1306
  %v1308 = vpop.f32.mrf.mxu0
  %1309 = vmatprep.mubr.f32.mxu0 %v1131
  %1310 = vmatmul.mubr.f32.gmra.mxu0 %v744
  %v1311 = vpop.f32.mrf.mxu0
  %v1312 = vadd.f32 %v1047, %v1311
  %v1313 = vpop.f32.mrf.mxu0
  %1314 = vmatprep.mubr.f32.mxu0 %v1134
  %1315 = vmatmul.mubr.f32.gmra.mxu0 %v746
  %v1316 = vpop.f32.mrf.mxu0
  %v1317 = vadd.f32 %v1052, %v1316
  %v1318 = vpop.f32.mrf.mxu0
  %1319 = vmatprep.mubr.f32.mxu0 %v1137
  %1320 = vmatmul.mubr.f32.gmra.mxu0 %v748
  %v1321 = vpop.f32.mrf.mxu0
  %v1322 = vadd.f32 %v1057, %v1321
  %v1323 = vpop.f32.mrf.mxu0
  %1324 = vmatprep.mubr.f32.mxu0 %v1140
  %1325 = vmatmul.mubr.f32.gmra.mxu0 %v750
  %v1326 = vpop.f32.mrf.mxu0
  %v1327 = vadd.f32 %v1062, %v1326
  %v1328 = vpop.f32.mrf.mxu0
  %1329 = vmatprep.mubr.f32.mxu0 %v1143
  %1330 = vmatmul.mubr.f32.gmra.mxu0 %v752
  %v1331 = vpop.f32.mrf.mxu0
  %v1332 = vadd.f32 %v1067, %v1331
  %v1333 = vpop.f32.mrf.mxu0
  %1334 = vdwg.mxu0
  %s1335 = scalar_lea.vmem %s1, 1600
  %v1336 = vld [vmem:[%s1335] sm:$0xff]
  %v1337 = vld [vmem:[%s1335 + $0x8] sm:$0xff]
  %v1338 = vld [vmem:[%s1335 + $0x10] sm:$0xff]
  %v1339 = vld [vmem:[%s1335 + $0x18] sm:$0xff]
  %v1340 = vld [vmem:[%s1335 + $0x20] sm:$0xff]
  %v1341 = vld [vmem:[%s1335 + $0x28] sm:$0xff]
  %v1342 = vld [vmem:[%s1335 + $0x30] sm:$0xff]
  %v1343 = vld [vmem:[%s1335 + $0x38] sm:$0xff]
  %v1344 = vld [vmem:[%s1335 + $0x40] sm:$0xff]
  %v1345 = vld [vmem:[%s1335 + $0x48] sm:$0xff]
  %v1346 = vld [vmem:[%s1335 + $0x50] sm:$0xff]
  %v1347 = vld [vmem:[%s1335 + $0x58] sm:$0xff]
  %v1348 = vld [vmem:[%s1335 + $0x60] sm:$0xff]
  %v1349 = vld [vmem:[%s1335 + $0x68] sm:$0xff]
  %v1350 = vld [vmem:[%s1335 + $0x70] sm:$0xff]
  %v1351 = vld [vmem:[%s1335 + $0x78] sm:$0xff]
  %v1352 = vld [vmem:[%s1335 + $0x80] sm:$0xff]
  %v1353 = vld [vmem:[%s1335 + $0x88] sm:$0xff]
  %v1354 = vld [vmem:[%s1335 + $0x90] sm:$0xff]
  %v1355 = vld [vmem:[%s1335 + $0x98] sm:$0xff]
  %v1356 = vld [vmem:[%s1335 + $0xa0] sm:$0xff]
  %v1357 = vld [vmem:[%s1335 + $0xa8] sm:$0xff]
  %v1358 = vld [vmem:[%s1335 + $0xb0] sm:$0xff]
  %v1359 = vld [vmem:[%s1335 + $0xb8] sm:$0xff]
  %v1360 = vld [vmem:[%s1335 + $0xc0] sm:$0xff]
  %v1361 = vld [vmem:[%s1335 + $0xc8] sm:$0xff]
  %v1362 = vld [vmem:[%s1335 + $0xd0] sm:$0xff]
  %v1363 = vld [vmem:[%s1335 + $0xd8] sm:$0xff]
  %v1364 = vld [vmem:[%s1335 + $0xe0] sm:$0xff]
  %v1365 = vld [vmem:[%s1335 + $0xe8] sm:$0xff]
  %v1366 = vld [vmem:[%s1335 + $0xf0] sm:$0xff]
  %v1367 = vld [vmem:[%s1335 + $0xf8] sm:$0xff]
  %v1368 = vld [vmem:[%s1335 + $0x100] sm:$0xff]
  %v1369 = vld [vmem:[%s1335 + $0x108] sm:$0xff]
  %v1370 = vld [vmem:[%s1335 + $0x110] sm:$0xff]
  %v1371 = vld [vmem:[%s1335 + $0x118] sm:$0xff]
  %v1372 = vld [vmem:[%s1335 + $0x120] sm:$0xff]
  %v1373 = vld [vmem:[%s1335 + $0x128] sm:$0xff]
  %v1374 = vld [vmem:[%s1335 + $0x130] sm:$0xff]
  %v1375 = vld [vmem:[%s1335 + $0x138] sm:$0xff]
  %v1376 = vld [vmem:[%s1335 + $0x140] sm:$0xff]
  %v1377 = vld [vmem:[%s1335 + $0x148] sm:$0xff]
  %v1378 = vld [vmem:[%s1335 + $0x150] sm:$0xff]
  %v1379 = vld [vmem:[%s1335 + $0x158] sm:$0xff]
  %v1380 = vld [vmem:[%s1335 + $0x160] sm:$0xff]
  %v1381 = vld [vmem:[%s1335 + $0x168] sm:$0xff]
  %v1382 = vld [vmem:[%s1335 + $0x170] sm:$0xff]
  %v1383 = vld [vmem:[%s1335 + $0x178] sm:$0xff]
  %v1384 = vld [vmem:[%s1335 + $0x180] sm:$0xf]
  %v1385 = vld [vmem:[%s1335 + $0x188] sm:$0xf]
  %s1386 = scalar_lea.vmem %s1, 2000
  %v1387 = vld [vmem:[%s1386] sm:$0xff]
  %v1388 = vld [vmem:[%s1386 + $0x8] sm:$0xff]
  %v1389 = vld [vmem:[%s1386 + $0x10] sm:$0xff]
  %v1390 = vld [vmem:[%s1386 + $0x18] sm:$0xff]
  %v1391 = vld [vmem:[%s1386 + $0x20] sm:$0xff]
  %v1392 = vld [vmem:[%s1386 + $0x28] sm:$0xff]
  %v1393 = vld [vmem:[%s1386 + $0x30] sm:$0xff]
  %v1394 = vld [vmem:[%s1386 + $0x38] sm:$0xff]
  %v1395 = vld [vmem:[%s1386 + $0x40] sm:$0xff]
  %v1396 = vld [vmem:[%s1386 + $0x48] sm:$0xff]
  %v1397 = vld [vmem:[%s1386 + $0x50] sm:$0xff]
  %v1398 = vld [vmem:[%s1386 + $0x58] sm:$0xff]
  %v1399 = vld [vmem:[%s1386 + $0x60] sm:$0xff]
  %v1400 = vld [vmem:[%s1386 + $0x68] sm:$0xff]
  %v1401 = vld [vmem:[%s1386 + $0x70] sm:$0xff]
  %v1402 = vld [vmem:[%s1386 + $0x78] sm:$0xff]
  %v1403 = vld [vmem:[%s1386 + $0x80] sm:$0xff]
  %v1404 = vld [vmem:[%s1386 + $0x88] sm:$0xff]
  %v1405 = vld [vmem:[%s1386 + $0x90] sm:$0xff]
  %v1406 = vld [vmem:[%s1386 + $0x98] sm:$0xff]
  %v1407 = vld [vmem:[%s1386 + $0xa0] sm:$0xff]
  %v1408 = vld [vmem:[%s1386 + $0xa8] sm:$0xff]
  %v1409 = vld [vmem:[%s1386 + $0xb0] sm:$0xff]
  %v1410 = vld [vmem:[%s1386 + $0xb8] sm:$0xff]
  %v1411 = vld [vmem:[%s1386 + $0xc0] sm:$0xff]
  %v1412 = vld [vmem:[%s1386 + $0xc8] sm:$0xff]
  %v1413 = vld [vmem:[%s1386 + $0xd0] sm:$0xff]
  %v1414 = vld [vmem:[%s1386 + $0xd8] sm:$0xff]
  %v1415 = vld [vmem:[%s1386 + $0xe0] sm:$0xff]
  %v1416 = vld [vmem:[%s1386 + $0xe8] sm:$0xff]
  %v1417 = vld [vmem:[%s1386 + $0xf0] sm:$0xff]
  %v1418 = vld [vmem:[%s1386 + $0xf8] sm:$0xff]
  %v1419 = vld [vmem:[%s1386 + $0x100] sm:$0xff]
  %v1420 = vld [vmem:[%s1386 + $0x108] sm:$0xff]
  %v1421 = vld [vmem:[%s1386 + $0x110] sm:$0xff]
  %v1422 = vld [vmem:[%s1386 + $0x118] sm:$0xff]
  %v1423 = vld [vmem:[%s1386 + $0x120] sm:$0xff]
  %v1424 = vld [vmem:[%s1386 + $0x128] sm:$0xff]
  %v1425 = vld [vmem:[%s1386 + $0x130] sm:$0xff]
  %v1426 = vld [vmem:[%s1386 + $0x138] sm:$0xff]
  %v1427 = vld [vmem:[%s1386 + $0x140] sm:$0xff]
  %v1428 = vld [vmem:[%s1386 + $0x148] sm:$0xff]
  %v1429 = vld [vmem:[%s1386 + $0x150] sm:$0xff]
  %v1430 = vld [vmem:[%s1386 + $0x158] sm:$0xff]
  %v1431 = vld [vmem:[%s1386 + $0x160] sm:$0xff]
  %v1432 = vld [vmem:[%s1386 + $0x168] sm:$0xff]
  %v1433 = vld [vmem:[%s1386 + $0x170] sm:$0xff]
  %v1434 = vld [vmem:[%s1386 + $0x178] sm:$0xff]
  %v1435 = vld [vmem:[%s1386 + $0x180] sm:$0xf]
  %v1436 = vld [vmem:[%s1386 + $0x188] sm:$0xf]
  %v1438 = vsel %vm165, %v1388, 0
  %v1441 = vsel %vm165, %v1390, 0
  %v1444 = vsel %vm165, %v1392, 0
  %v1447 = vsel %vm165, %v1394, 0
  %v1450 = vsel %vm165, %v1396, 0
  %v1453 = vsel %vm165, %v1398, 0
  %v1456 = vsel %vm165, %v1400, 0
  %v1459 = vsel %vm165, %v1402, 0
  %v1462 = vsel %vm165, %v1404, 0
  %v1465 = vsel %vm165, %v1406, 0
  %v1468 = vsel %vm165, %v1408, 0
  %v1471 = vsel %vm165, %v1410, 0
  %v1474 = vsel %vm165, %v1412, 0
  %v1477 = vsel %vm165, %v1414, 0
  %v1480 = vsel %vm165, %v1416, 0
  %v1483 = vsel %vm165, %v1418, 0
  %v1486 = vsel %vm165, %v1420, 0
  %v1489 = vsel %vm165, %v1422, 0
  %v1492 = vsel %vm165, %v1424, 0
  %v1495 = vsel %vm165, %v1426, 0
  %v1498 = vsel %vm165, %v1428, 0
  %v1501 = vsel %vm165, %v1430, 0
  %v1504 = vsel %vm165, %v1432, 0
  %v1507 = vsel %vm165, %v1434, 0
  %v1510 = vsel %vm165, %v1436, 0
  %1512 = vmatprep.subr.mxu0 0.0
  %1513 = vmatpush1.msra.mxu0 %v45
  %1514 = vmatprep.subr.mxu0 0.0
  %1515 = vmatpush1.msra.mxu0 %v43
  %1516 = vmatprep.subr.mxu0 0.0
  %1517 = vmatpush1.msra.mxu0 %v41
  %1518 = vmatprep.subr.mxu0 0.0
  %1519 = vmatpush1.msra.mxu0 %v39
  %1520 = vmatprep.subr.mxu0 0.0
  %1521 = vmatpush1.msra.mxu0 %v37
  %1522 = vmatprep.subr.mxu0 0.0
  %1523 = vmatpush1.msra.mxu0 %v35
  %1524 = vmatprep.subr.mxu0 0.0
  %1525 = vmatpush1.msra.mxu0 %v33
  %1526 = vmatprep.subr.mxu0 0.0
  %1527 = vmatpush1.msra.mxu0 %v31
  %1528 = vmatprep.subr.mxu0 0.0
  %1529 = vmatpush1.msra.mxu0 %v29
  %1530 = vmatprep.subr.mxu0 0.0
  %1531 = vmatpush1.msra.mxu0 %v27
  %1532 = vmatprep.subr.mxu0 0.0
  %1533 = vmatpush1.msra.mxu0 %v25
  %1534 = vmatprep.subr.mxu0 0.0
  %1535 = vmatpush1.msra.mxu0 %v23
  %1536 = vmatprep.subr.mxu0 0.0
  %1537 = vmatpush1.msra.mxu0 %v21
  %1538 = vmatprep.subr.mxu0 0.0
  %1539 = vmatpush1.msra.mxu0 %v19
  %1540 = vmatprep.subr.mxu0 0.0
  %1541 = vmatpush1.msra.mxu0 %v17
  %1542 = vmatprep.subr.mxu0 0.0
  %1543 = vmatpush1.msra.mxu0 %v15
  %1544 = vmatprep.subr.mxu0 0.0
  %1545 = vmatpush2.msra.mxu0 0.0
  %1546 = vmatprep.subr.mxu0 0.0
  %1547 = vmatpush2.msra.mxu0 0.0
  %1548 = vmatprep.subr.mxu0 0.0
  %1549 = vmatpush2.msra.mxu0 0.0
  %1550 = vmatprep.subr.mxu0 0.0
  %1551 = vmatpush2.msra.mxu0 0.0
  %1552 = vmatprep.subr.mxu0 0.0
  %1553 = vmatpush2.msra.mxu0 0.0
  %1554 = vmatprep.subr.mxu0 0.0
  %1555 = vmatpush2.msra.mxu0 0.0
  %1556 = vmatprep.subr.mxu0 0.0
  %1557 = vmatpush2.msra.mxu0 0.0
  %1558 = vmatprep.subr.mxu0 0.0
  %1559 = vmatpush2.msra.mxu0 %v243
  %1560 = vmatprep.subr.mxu0 0.0
  %1561 = vmatpush2.msra.mxu0 %v61
  %1562 = vmatprep.subr.mxu0 0.0
  %1563 = vmatpush2.msra.mxu0 %v59
  %1564 = vmatprep.subr.mxu0 0.0
  %1565 = vmatpush2.msra.mxu0 %v57
  %1566 = vmatprep.subr.mxu0 0.0
  %1567 = vmatpush2.msra.mxu0 %v55
  %1568 = vmatprep.subr.mxu0 0.0
  %1569 = vmatpush2.msra.mxu0 %v53
  %1570 = vmatprep.subr.mxu0 0.0
  %1571 = vmatpush2.msra.mxu0 %v51
  %1572 = vmatprep.subr.mxu0 0.0
  %1573 = vmatpush2.msra.mxu0 %v49
  %1574 = vmatprep.subr.mxu0 0.0
  %1575 = vmatpush2.msra.mxu0 %v47
  %1576 = vmatprep.mubr.f32.mxu0 %v1438
  %1577 = vmatmul.mubr.f32.gmra.mxu0 %v1387
  %v1578 = vpop.f32.mrf.mxu0
  %v1579 = vadd.f32 0.0, %v1578
  %v1580 = vpop.f32.mrf.mxu0
  %1581 = vmatprep.mubr.f32.mxu0 %v1441
  %1582 = vmatmul.mubr.f32.gmra.mxu0 %v1389
  %v1583 = vpop.f32.mrf.mxu0
  %v1584 = vadd.f32 0.0, %v1583
  %v1585 = vpop.f32.mrf.mxu0
  %1586 = vmatprep.mubr.f32.mxu0 %v1444
  %1587 = vmatmul.mubr.f32.gmra.mxu0 %v1391
  %v1588 = vpop.f32.mrf.mxu0
  %v1589 = vadd.f32 0.0, %v1588
  %v1590 = vpop.f32.mrf.mxu0
  %1591 = vmatprep.mubr.f32.mxu0 %v1447
  %1592 = vmatmul.mubr.f32.gmra.mxu0 %v1393
  %v1593 = vpop.f32.mrf.mxu0
  %v1594 = vadd.f32 0.0, %v1593
  %v1595 = vpop.f32.mrf.mxu0
  %1596 = vmatprep.mubr.f32.mxu0 %v1450
  %1597 = vmatmul.mubr.f32.gmra.mxu0 %v1395
  %v1598 = vpop.f32.mrf.mxu0
  %v1599 = vadd.f32 0.0, %v1598
  %v1600 = vpop.f32.mrf.mxu0
  %1601 = vmatprep.mubr.f32.mxu0 %v1453
  %1602 = vmatmul.mubr.f32.gmra.mxu0 %v1397
  %v1603 = vpop.f32.mrf.mxu0
  %v1604 = vadd.f32 0.0, %v1603
  %v1605 = vpop.f32.mrf.mxu0
  %1606 = vmatprep.mubr.f32.mxu0 %v1456
  %1607 = vmatmul.mubr.f32.gmra.mxu0 %v1399
  %v1608 = vpop.f32.mrf.mxu0
  %v1609 = vadd.f32 0.0, %v1608
  %v1610 = vpop.f32.mrf.mxu0
  %1611 = vmatprep.mubr.f32.mxu0 %v1459
  %1612 = vmatmul.mubr.f32.gmra.mxu0 %v1401
  %v1613 = vpop.f32.mrf.mxu0
  %v1614 = vadd.f32 0.0, %v1613
  %v1615 = vpop.f32.mrf.mxu0
  %1616 = vmatprep.mubr.f32.mxu0 %v1462
  %1617 = vmatmul.mubr.f32.gmra.mxu0 %v1403
  %v1618 = vpop.f32.mrf.mxu0
  %v1619 = vadd.f32 0.0, %v1618
  %v1620 = vpop.f32.mrf.mxu0
  %1621 = vmatprep.mubr.f32.mxu0 %v1465
  %1622 = vmatmul.mubr.f32.gmra.mxu0 %v1405
  %v1623 = vpop.f32.mrf.mxu0
  %v1624 = vadd.f32 0.0, %v1623
  %v1625 = vpop.f32.mrf.mxu0
  %1626 = vmatprep.mubr.f32.mxu0 %v1468
  %1627 = vmatmul.mubr.f32.gmra.mxu0 %v1407
  %v1628 = vpop.f32.mrf.mxu0
  %v1629 = vadd.f32 0.0, %v1628
  %v1630 = vpop.f32.mrf.mxu0
  %1631 = vmatprep.mubr.f32.mxu0 %v1471
  %1632 = vmatmul.mubr.f32.gmra.mxu0 %v1409
  %v1633 = vpop.f32.mrf.mxu0
  %v1634 = vadd.f32 0.0, %v1633
  %v1635 = vpop.f32.mrf.mxu0
  %1636 = vmatprep.mubr.f32.mxu0 %v1474
  %1637 = vmatmul.mubr.f32.gmra.mxu0 %v1411
  %v1638 = vpop.f32.mrf.mxu0
  %v1639 = vadd.f32 0.0, %v1638
  %v1640 = vpop.f32.mrf.mxu0
  %1641 = vmatprep.mubr.f32.mxu0 %v1477
  %1642 = vmatmul.mubr.f32.gmra.mxu0 %v1413
  %v1643 = vpop.f32.mrf.mxu0
  %v1644 = vadd.f32 0.0, %v1643
  %v1645 = vpop.f32.mrf.mxu0
  %1646 = vmatprep.mubr.f32.mxu0 %v1480
  %1647 = vmatmul.mubr.f32.gmra.mxu0 %v1415
  %v1648 = vpop.f32.mrf.mxu0
  %v1649 = vadd.f32 0.0, %v1648
  %v1650 = vpop.f32.mrf.mxu0
  %1651 = vmatprep.mubr.f32.mxu0 %v1483
  %1652 = vmatmul.mubr.f32.gmra.mxu0 %v1417
  %v1653 = vpop.f32.mrf.mxu0
  %v1654 = vadd.f32 0.0, %v1653
  %v1655 = vpop.f32.mrf.mxu0
  %1656 = vmatprep.mubr.f32.mxu0 %v1486
  %1657 = vmatmul.mubr.f32.gmra.mxu0 %v1419
  %v1658 = vpop.f32.mrf.mxu0
  %v1659 = vadd.f32 0.0, %v1658
  %v1660 = vpop.f32.mrf.mxu0
  %1661 = vmatprep.mubr.f32.mxu0 %v1489
  %1662 = vmatmul.mubr.f32.gmra.mxu0 %v1421
  %v1663 = vpop.f32.mrf.mxu0
  %v1664 = vadd.f32 0.0, %v1663
  %v1665 = vpop.f32.mrf.mxu0
  %1666 = vmatprep.mubr.f32.mxu0 %v1492
  %1667 = vmatmul.mubr.f32.gmra.mxu0 %v1423
  %v1668 = vpop.f32.mrf.mxu0
  %v1669 = vadd.f32 0.0, %v1668
  %v1670 = vpop.f32.mrf.mxu0
  %1671 = vmatprep.mubr.f32.mxu0 %v1495
  %1672 = vmatmul.mubr.f32.gmra.mxu0 %v1425
  %v1673 = vpop.f32.mrf.mxu0
  %v1674 = vadd.f32 0.0, %v1673
  %v1675 = vpop.f32.mrf.mxu0
  %1676 = vmatprep.mubr.f32.mxu0 %v1498
  %1677 = vmatmul.mubr.f32.gmra.mxu0 %v1427
  %v1678 = vpop.f32.mrf.mxu0
  %v1679 = vadd.f32 0.0, %v1678
  %v1680 = vpop.f32.mrf.mxu0
  %1681 = vmatprep.mubr.f32.mxu0 %v1501
  %1682 = vmatmul.mubr.f32.gmra.mxu0 %v1429
  %v1683 = vpop.f32.mrf.mxu0
  %v1684 = vadd.f32 0.0, %v1683
  %v1685 = vpop.f32.mrf.mxu0
  %1686 = vmatprep.mubr.f32.mxu0 %v1504
  %1687 = vmatmul.mubr.f32.gmra.mxu0 %v1431
  %v1688 = vpop.f32.mrf.mxu0
  %v1689 = vadd.f32 0.0, %v1688
  %v1690 = vpop.f32.mrf.mxu0
  %1691 = vmatprep.mubr.f32.mxu0 %v1507
  %1692 = vmatmul.mubr.f32.gmra.mxu0 %v1433
  %v1693 = vpop.f32.mrf.mxu0
  %v1694 = vadd.f32 0.0, %v1693
  %v1695 = vpop.f32.mrf.mxu0
  %1696 = vmatprep.mubr.f32.mxu0 %v1510
  %1697 = vmatmul.mubr.f32.gmra.mxu0 %v1435
  %v1698 = vpop.f32.mrf.mxu0
  %v1699 = vadd.f32 0.0, %v1698
  %v1700 = vpop.f32.mrf.mxu0
  %1701 = vdwg.mxu0
  %v1703 = vsel %vm165, %v1337, 0
  %v1706 = vsel %vm165, %v1339, 0
  %v1709 = vsel %vm165, %v1341, 0
  %v1712 = vsel %vm165, %v1343, 0
  %v1715 = vsel %vm165, %v1345, 0
  %v1718 = vsel %vm165, %v1347, 0
  %v1721 = vsel %vm165, %v1349, 0
  %v1724 = vsel %vm165, %v1351, 0
  %v1727 = vsel %vm165, %v1353, 0
  %v1730 = vsel %vm165, %v1355, 0
  %v1733 = vsel %vm165, %v1357, 0
  %v1736 = vsel %vm165, %v1359, 0
  %v1739 = vsel %vm165, %v1361, 0
  %v1742 = vsel %vm165, %v1363, 0
  %v1745 = vsel %vm165, %v1365, 0
  %v1748 = vsel %vm165, %v1367, 0
  %v1751 = vsel %vm165, %v1369, 0
  %v1754 = vsel %vm165, %v1371, 0
  %v1757 = vsel %vm165, %v1373, 0
  %v1760 = vsel %vm165, %v1375, 0
  %v1763 = vsel %vm165, %v1377, 0
  %v1766 = vsel %vm165, %v1379, 0
  %v1769 = vsel %vm165, %v1381, 0
  %v1772 = vsel %vm165, %v1383, 0
  %v1775 = vsel %vm165, %v1385, 0
  %1777 = vmatprep.subr.mxu0 0.0
  %1778 = vmatpush1.msra.mxu0 %v44
  %1779 = vmatprep.subr.mxu0 0.0
  %1780 = vmatpush1.msra.mxu0 %v42
  %1781 = vmatprep.subr.mxu0 0.0
  %1782 = vmatpush1.msra.mxu0 %v40
  %1783 = vmatprep.subr.mxu0 0.0
  %1784 = vmatpush1.msra.mxu0 %v38
  %1785 = vmatprep.subr.mxu0 0.0
  %1786 = vmatpush1.msra.mxu0 %v36
  %1787 = vmatprep.subr.mxu0 0.0
  %1788 = vmatpush1.msra.mxu0 %v34
  %1789 = vmatprep.subr.mxu0 0.0
  %1790 = vmatpush1.msra.mxu0 %v32
  %1791 = vmatprep.subr.mxu0 0.0
  %1792 = vmatpush1.msra.mxu0 %v30
  %1793 = vmatprep.subr.mxu0 0.0
  %1794 = vmatpush1.msra.mxu0 %v28
  %1795 = vmatprep.subr.mxu0 0.0
  %1796 = vmatpush1.msra.mxu0 %v26
  %1797 = vmatprep.subr.mxu0 0.0
  %1798 = vmatpush1.msra.mxu0 %v24
  %1799 = vmatprep.subr.mxu0 0.0
  %1800 = vmatpush1.msra.mxu0 %v22
  %1801 = vmatprep.subr.mxu0 0.0
  %1802 = vmatpush1.msra.mxu0 %v20
  %1803 = vmatprep.subr.mxu0 0.0
  %1804 = vmatpush1.msra.mxu0 %v18
  %1805 = vmatprep.subr.mxu0 0.0
  %1806 = vmatpush1.msra.mxu0 %v16
  %1807 = vmatprep.subr.mxu0 0.0
  %1808 = vmatpush1.msra.mxu0 %v14
  %1809 = vmatprep.subr.mxu0 0.0
  %1810 = vmatpush2.msra.mxu0 0.0
  %1811 = vmatprep.subr.mxu0 0.0
  %1812 = vmatpush2.msra.mxu0 0.0
  %1813 = vmatprep.subr.mxu0 0.0
  %1814 = vmatpush2.msra.mxu0 0.0
  %1815 = vmatprep.subr.mxu0 0.0
  %1816 = vmatpush2.msra.mxu0 0.0
  %1817 = vmatprep.subr.mxu0 0.0
  %1818 = vmatpush2.msra.mxu0 0.0
  %1819 = vmatprep.subr.mxu0 0.0
  %1820 = vmatpush2.msra.mxu0 0.0
  %1821 = vmatprep.subr.mxu0 0.0
  %1822 = vmatpush2.msra.mxu0 0.0
  %1823 = vmatprep.subr.mxu0 0.0
  %1824 = vmatpush2.msra.mxu0 %v511
  %1825 = vmatprep.subr.mxu0 0.0
  %1826 = vmatpush2.msra.mxu0 %v60
  %1827 = vmatprep.subr.mxu0 0.0
  %1828 = vmatpush2.msra.mxu0 %v58
  %1829 = vmatprep.subr.mxu0 0.0
  %1830 = vmatpush2.msra.mxu0 %v56
  %1831 = vmatprep.subr.mxu0 0.0
  %1832 = vmatpush2.msra.mxu0 %v54
  %1833 = vmatprep.subr.mxu0 0.0
  %1834 = vmatpush2.msra.mxu0 %v52
  %1835 = vmatprep.subr.mxu0 0.0
  %1836 = vmatpush2.msra.mxu0 %v50
  %1837 = vmatprep.subr.mxu0 0.0
  %1838 = vmatpush2.msra.mxu0 %v48
  %1839 = vmatprep.subr.mxu0 0.0
  %1840 = vmatpush2.msra.mxu0 %v46
  %1841 = vmatprep.mubr.f32.mxu0 %v1703
  %1842 = vmatmul.mubr.f32.gmra.mxu0 %v1336
  %v1843 = vpop.f32.mrf.mxu0
  %v1844 = vadd.f32 %v1579, %v1843
  %v1845 = vpop.f32.mrf.mxu0
  %1846 = vmatprep.mubr.f32.mxu0 %v1706
  %1847 = vmatmul.mubr.f32.gmra.mxu0 %v1338
  %v1848 = vpop.f32.mrf.mxu0
  %v1849 = vadd.f32 %v1584, %v1848
  %v1850 = vpop.f32.mrf.mxu0
  %1851 = vmatprep.mubr.f32.mxu0 %v1709
  %1852 = vmatmul.mubr.f32.gmra.mxu0 %v1340
  %v1853 = vpop.f32.mrf.mxu0
  %v1854 = vadd.f32 %v1589, %v1853
  %v1855 = vpop.f32.mrf.mxu0
  %1856 = vmatprep.mubr.f32.mxu0 %v1712
  %1857 = vmatmul.mubr.f32.gmra.mxu0 %v1342
  %v1858 = vpop.f32.mrf.mxu0
  %v1859 = vadd.f32 %v1594, %v1858
  %v1860 = vpop.f32.mrf.mxu0
  %1861 = vmatprep.mubr.f32.mxu0 %v1715
  %1862 = vmatmul.mubr.f32.gmra.mxu0 %v1344
  %v1863 = vpop.f32.mrf.mxu0
  %v1864 = vadd.f32 %v1599, %v1863
  %v1865 = vpop.f32.mrf.mxu0
  %1866 = vmatprep.mubr.f32.mxu0 %v1718
  %1867 = vmatmul.mubr.f32.gmra.mxu0 %v1346
  %v1868 = vpop.f32.mrf.mxu0
  %v1869 = vadd.f32 %v1604, %v1868
  %v1870 = vpop.f32.mrf.mxu0
  %1871 = vmatprep.mubr.f32.mxu0 %v1721
  %1872 = vmatmul.mubr.f32.gmra.mxu0 %v1348
  %v1873 = vpop.f32.mrf.mxu0
  %v1874 = vadd.f32 %v1609, %v1873
  %v1875 = vpop.f32.mrf.mxu0
  %1876 = vmatprep.mubr.f32.mxu0 %v1724
  %1877 = vmatmul.mubr.f32.gmra.mxu0 %v1350
  %v1878 = vpop.f32.mrf.mxu0
  %v1879 = vadd.f32 %v1614, %v1878
  %v1880 = vpop.f32.mrf.mxu0
  %1881 = vmatprep.mubr.f32.mxu0 %v1727
  %1882 = vmatmul.mubr.f32.gmra.mxu0 %v1352
  %v1883 = vpop.f32.mrf.mxu0
  %v1884 = vadd.f32 %v1619, %v1883
  %v1885 = vpop.f32.mrf.mxu0
  %1886 = vmatprep.mubr.f32.mxu0 %v1730
  %1887 = vmatmul.mubr.f32.gmra.mxu0 %v1354
  %v1888 = vpop.f32.mrf.mxu0
  %v1889 = vadd.f32 %v1624, %v1888
  %v1890 = vpop.f32.mrf.mxu0
  %1891 = vmatprep.mubr.f32.mxu0 %v1733
  %1892 = vmatmul.mubr.f32.gmra.mxu0 %v1356
  %v1893 = vpop.f32.mrf.mxu0
  %v1894 = vadd.f32 %v1629, %v1893
  %v1895 = vpop.f32.mrf.mxu0
  %1896 = vmatprep.mubr.f32.mxu0 %v1736
  %1897 = vmatmul.mubr.f32.gmra.mxu0 %v1358
  %v1898 = vpop.f32.mrf.mxu0
  %v1899 = vadd.f32 %v1634, %v1898
  %v1900 = vpop.f32.mrf.mxu0
  %1901 = vmatprep.mubr.f32.mxu0 %v1739
  %1902 = vmatmul.mubr.f32.gmra.mxu0 %v1360
  %v1903 = vpop.f32.mrf.mxu0
  %v1904 = vadd.f32 %v1639, %v1903
  %v1905 = vpop.f32.mrf.mxu0
  %1906 = vmatprep.mubr.f32.mxu0 %v1742
  %1907 = vmatmul.mubr.f32.gmra.mxu0 %v1362
  %v1908 = vpop.f32.mrf.mxu0
  %v1909 = vadd.f32 %v1644, %v1908
  %v1910 = vpop.f32.mrf.mxu0
  %1911 = vmatprep.mubr.f32.mxu0 %v1745
  %1912 = vmatmul.mubr.f32.gmra.mxu0 %v1364
  %v1913 = vpop.f32.mrf.mxu0
  %v1914 = vadd.f32 %v1649, %v1913
  %v1915 = vpop.f32.mrf.mxu0
  %1916 = vmatprep.mubr.f32.mxu0 %v1748
  %1917 = vmatmul.mubr.f32.gmra.mxu0 %v1366
  %v1918 = vpop.f32.mrf.mxu0
  %v1919 = vadd.f32 %v1654, %v1918
  %v1920 = vpop.f32.mrf.mxu0
  %1921 = vmatprep.mubr.f32.mxu0 %v1751
  %1922 = vmatmul.mubr.f32.gmra.mxu0 %v1368
  %v1923 = vpop.f32.mrf.mxu0
  %v1924 = vadd.f32 %v1659, %v1923
  %v1925 = vpop.f32.mrf.mxu0
  %1926 = vmatprep.mubr.f32.mxu0 %v1754
  %1927 = vmatmul.mubr.f32.gmra.mxu0 %v1370
  %v1928 = vpop.f32.mrf.mxu0
  %v1929 = vadd.f32 %v1664, %v1928
  %v1930 = vpop.f32.mrf.mxu0
  %1931 = vmatprep.mubr.f32.mxu0 %v1757
  %1932 = vmatmul.mubr.f32.gmra.mxu0 %v1372
  %v1933 = vpop.f32.mrf.mxu0
  %v1934 = vadd.f32 %v1669, %v1933
  %v1935 = vpop.f32.mrf.mxu0
  %1936 = vmatprep.mubr.f32.mxu0 %v1760
  %1937 = vmatmul.mubr.f32.gmra.mxu0 %v1374
  %v1938 = vpop.f32.mrf.mxu0
  %v1939 = vadd.f32 %v1674, %v1938
  %v1940 = vpop.f32.mrf.mxu0
  %1941 = vmatprep.mubr.f32.mxu0 %v1763
  %1942 = vmatmul.mubr.f32.gmra.mxu0 %v1376
  %v1943 = vpop.f32.mrf.mxu0
  %v1944 = vadd.f32 %v1679, %v1943
  %v1945 = vpop.f32.mrf.mxu0
  %1946 = vmatprep.mubr.f32.mxu0 %v1766
  %1947 = vmatmul.mubr.f32.gmra.mxu0 %v1378
  %v1948 = vpop.f32.mrf.mxu0
  %v1949 = vadd.f32 %v1684, %v1948
  %v1950 = vpop.f32.mrf.mxu0
  %1951 = vmatprep.mubr.f32.mxu0 %v1769
  %1952 = vmatmul.mubr.f32.gmra.mxu0 %v1380
  %v1953 = vpop.f32.mrf.mxu0
  %v1954 = vadd.f32 %v1689, %v1953
  %v1955 = vpop.f32.mrf.mxu0
  %1956 = vmatprep.mubr.f32.mxu0 %v1772
  %1957 = vmatmul.mubr.f32.gmra.mxu0 %v1382
  %v1958 = vpop.f32.mrf.mxu0
  %v1959 = vadd.f32 %v1694, %v1958
  %v1960 = vpop.f32.mrf.mxu0
  %1961 = vmatprep.mubr.f32.mxu0 %v1775
  %1962 = vmatmul.mubr.f32.gmra.mxu0 %v1384
  %v1963 = vpop.f32.mrf.mxu0
  %v1964 = vadd.f32 %v1699, %v1963
  %v1965 = vpop.f32.mrf.mxu0
  %1966 = vdwg.mxu0
  %v1967 = vld [vmem:[%s2] sm:$0xff]
  %v1968 = vld [vmem:[%s2 + $0x8] sm:$0xff]
  %v1969 = vld [vmem:[%s2 + $0x10] sm:$0xff]
  %v1970 = vld [vmem:[%s2 + $0x18] sm:$0xff]
  %v1971 = vld [vmem:[%s2 + $0x20] sm:$0xff]
  %v1972 = vld [vmem:[%s2 + $0x28] sm:$0xff]
  %v1973 = vld [vmem:[%s2 + $0x30] sm:$0xff]
  %v1974 = vld [vmem:[%s2 + $0x38] sm:$0xff]
  %v1975 = vld [vmem:[%s2 + $0x40] sm:$0xff]
  %v1976 = vld [vmem:[%s2 + $0x48] sm:$0xff]
  %v1977 = vld [vmem:[%s2 + $0x50] sm:$0xff]
  %v1978 = vld [vmem:[%s2 + $0x58] sm:$0xff]
  %v1979 = vld [vmem:[%s2 + $0x60] sm:$0xff]
  %v1980 = vld [vmem:[%s2 + $0x68] sm:$0xff]
  %v1981 = vld [vmem:[%s2 + $0x70] sm:$0xff]
  %v1982 = vld [vmem:[%s2 + $0x78] sm:$0xff]
  %v1983 = vld [vmem:[%s2 + $0x80] sm:$0xff]
  %v1984 = vld [vmem:[%s2 + $0x88] sm:$0xff]
  %v1985 = vld [vmem:[%s2 + $0x90] sm:$0xff]
  %v1986 = vld [vmem:[%s2 + $0x98] sm:$0xff]
  %v1987 = vld [vmem:[%s2 + $0xa0] sm:$0xff]
  %v1988 = vld [vmem:[%s2 + $0xa8] sm:$0xff]
  %v1989 = vld [vmem:[%s2 + $0xb0] sm:$0xff]
  %v1990 = vld [vmem:[%s2 + $0xb8] sm:$0xff]
  %v1991 = vld [vmem:[%s2 + $0xc0] sm:$0xff]
  %v1992 = vld [vmem:[%s2 + $0xc8] sm:$0xff]
  %v1993 = vld [vmem:[%s2 + $0xd0] sm:$0xff]
  %v1994 = vld [vmem:[%s2 + $0xd8] sm:$0xff]
  %v1995 = vld [vmem:[%s2 + $0xe0] sm:$0xff]
  %v1996 = vld [vmem:[%s2 + $0xe8] sm:$0xff]
  %v1997 = vld [vmem:[%s2 + $0xf0] sm:$0xff]
  %v1998 = vld [vmem:[%s2 + $0xf8] sm:$0xff]
  %v1999 = vld [vmem:[%s2 + $0x100] sm:$0xff]
  %v2000 = vld [vmem:[%s2 + $0x108] sm:$0xff]
  %v2001 = vld [vmem:[%s2 + $0x110] sm:$0xff]
  %v2002 = vld [vmem:[%s2 + $0x118] sm:$0xff]
  %v2003 = vld [vmem:[%s2 + $0x120] sm:$0xff]
  %v2004 = vld [vmem:[%s2 + $0x128] sm:$0xff]
  %v2005 = vld [vmem:[%s2 + $0x130] sm:$0xff]
  %v2006 = vld [vmem:[%s2 + $0x138] sm:$0xff]
  %v2007 = vld [vmem:[%s2 + $0x140] sm:$0xff]
  %v2008 = vld [vmem:[%s2 + $0x148] sm:$0xff]
  %v2009 = vld [vmem:[%s2 + $0x150] sm:$0xff]
  %v2010 = vld [vmem:[%s2 + $0x158] sm:$0xff]
  %v2011 = vld [vmem:[%s2 + $0x160] sm:$0xff]
  %v2012 = vld [vmem:[%s2 + $0x168] sm:$0xff]
  %v2013 = vld [vmem:[%s2 + $0x170] sm:$0xff]
  %v2014 = vld [vmem:[%s2 + $0x178] sm:$0xff]
  %v2015 = vld [vmem:[%s2 + $0x180] sm:$0xff]
  %v2016 = vld [vmem:[%s2 + $0x188] sm:$0xff]
  %v2017 = vld [vmem:[%s2 + $0x190] sm:$0xff]
  %v2018 = vld [vmem:[%s2 + $0x198] sm:$0xff]
  %v2019 = vld [vmem:[%s2 + $0x1a0] sm:$0xff]
  %v2020 = vld [vmem:[%s2 + $0x1a8] sm:$0xff]
  %v2021 = vld [vmem:[%s2 + $0x1b0] sm:$0xff]
  %v2022 = vld [vmem:[%s2 + $0x1b8] sm:$0xff]
  %v2023 = vld [vmem:[%s2 + $0x1c0] sm:$0xff]
  %v2024 = vld [vmem:[%s2 + $0x1c8] sm:$0xff]
  %v2025 = vld [vmem:[%s2 + $0x1d0] sm:$0xff]
  %v2026 = vld [vmem:[%s2 + $0x1d8] sm:$0xff]
  %v2027 = vld [vmem:[%s2 + $0x1e0] sm:$0xff]
  %v2028 = vld [vmem:[%s2 + $0x1e8] sm:$0xff]
  %v2029 = vld [vmem:[%s2 + $0x1f0] sm:$0xff]
  %v2030 = vld [vmem:[%s2 + $0x1f8] sm:$0xff]
  %v2031 = vld [vmem:[%s2 + $0x200] sm:$0xff]
  %v2032 = vld [vmem:[%s2 + $0x208] sm:$0xff]
  %v2033 = vld [vmem:[%s2 + $0x210] sm:$0xff]
  %v2034 = vld [vmem:[%s2 + $0x218] sm:$0xff]
  %v2035 = vld [vmem:[%s2 + $0x220] sm:$0xff]
  %v2036 = vld [vmem:[%s2 + $0x228] sm:$0xff]
  %v2037 = vld [vmem:[%s2 + $0x230] sm:$0xff]
  %v2038 = vld [vmem:[%s2 + $0x238] sm:$0xff]
  %v2039 = vld [vmem:[%s2 + $0x240] sm:$0xff]
  %v2040 = vld [vmem:[%s2 + $0x248] sm:$0xff]
  %v2041 = vld [vmem:[%s2 + $0x250] sm:$0xff]
  %v2042 = vld [vmem:[%s2 + $0x258] sm:$0xff]
  %v2043 = vld [vmem:[%s2 + $0x260] sm:$0xff]
  %v2044 = vld [vmem:[%s2 + $0x268] sm:$0xff]
  %v2045 = vld [vmem:[%s2 + $0x270] sm:$0xff]
  %v2046 = vld [vmem:[%s2 + $0x278] sm:$0xff]
  %v2047 = vld [vmem:[%s2 + $0x280] sm:$0xff]
  %v2048 = vld [vmem:[%s2 + $0x288] sm:$0xff]
  %v2049 = vld [vmem:[%s2 + $0x290] sm:$0xff]
  %v2050 = vld [vmem:[%s2 + $0x298] sm:$0xff]
  %v2051 = vld [vmem:[%s2 + $0x2a0] sm:$0xff]
  %v2052 = vld [vmem:[%s2 + $0x2a8] sm:$0xff]
  %v2053 = vld [vmem:[%s2 + $0x2b0] sm:$0xff]
  %v2054 = vld [vmem:[%s2 + $0x2b8] sm:$0xff]
  %v2055 = vld [vmem:[%s2 + $0x2c0] sm:$0xff]
  %v2056 = vld [vmem:[%s2 + $0x2c8] sm:$0xff]
  %v2057 = vld [vmem:[%s2 + $0x2d0] sm:$0xff]
  %v2058 = vld [vmem:[%s2 + $0x2d8] sm:$0xff]
  %v2059 = vld [vmem:[%s2 + $0x2e0] sm:$0xff]
  %v2060 = vld [vmem:[%s2 + $0x2e8] sm:$0xff]
  %v2061 = vld [vmem:[%s2 + $0x2f0] sm:$0xff]
  %v2062 = vld [vmem:[%s2 + $0x2f8] sm:$0xff]
  %v2063 = vld [vmem:[%s2 + $0x300] sm:$0xff]
  %v2064 = vld [vmem:[%s2 + $0x308] sm:$0xff]
  %v2065 = vld [vmem:[%s2 + $0x310] sm:$0xff]
  %v2066 = vld [vmem:[%s2 + $0x318] sm:$0xff]
  %v2067 = vld [vmem:[%s2 + $0x320] sm:$0xff]
  %v2068 = vld [vmem:[%s2 + $0x328] sm:$0xff]
  %v2069 = vld [vmem:[%s2 + $0x330] sm:$0xff]
  %v2070 = vld [vmem:[%s2 + $0x338] sm:$0xff]
  %v2071 = vld [vmem:[%s2 + $0x340] sm:$0xff]
  %v2072 = vld [vmem:[%s2 + $0x348] sm:$0xff]
  %v2073 = vld [vmem:[%s2 + $0x350] sm:$0xff]
  %v2074 = vld [vmem:[%s2 + $0x358] sm:$0xff]
  %v2075 = vld [vmem:[%s2 + $0x360] sm:$0xff]
  %v2076 = vld [vmem:[%s2 + $0x368] sm:$0xff]
  %v2077 = vld [vmem:[%s2 + $0x370] sm:$0xff]
  %v2078 = vld [vmem:[%s2 + $0x378] sm:$0xff]
  %v2079 = vld [vmem:[%s2 + $0x380] sm:$0xff]
  %v2080 = vld [vmem:[%s2 + $0x388] sm:$0xff]
  %v2081 = vld [vmem:[%s2 + $0x390] sm:$0xff]
  %v2082 = vld [vmem:[%s2 + $0x398] sm:$0xff]
  %v2083 = vld [vmem:[%s2 + $0x3a0] sm:$0xff]
  %v2084 = vld [vmem:[%s2 + $0x3a8] sm:$0xff]
  %v2085 = vld [vmem:[%s2 + $0x3b0] sm:$0xff]
  %v2086 = vld [vmem:[%s2 + $0x3b8] sm:$0xff]
  %v2087 = vld [vmem:[%s2 + $0x3c0] sm:$0xff]
  %v2088 = vld [vmem:[%s2 + $0x3c8] sm:$0xff]
  %v2089 = vld [vmem:[%s2 + $0x3d0] sm:$0xff]
  %v2090 = vld [vmem:[%s2 + $0x3d8] sm:$0xff]
  %v2091 = vld [vmem:[%s2 + $0x3e0] sm:$0xff]
  %v2092 = vld [vmem:[%s2 + $0x3e8] sm:$0xff]
  %v2093 = vld [vmem:[%s2 + $0x3f0] sm:$0xff]
  %v2094 = vld [vmem:[%s2 + $0x3f8] sm:$0xff]
  %v2095 = vld [vmem:[%s2 + $0x400] sm:$0xff]
  %v2096 = vld [vmem:[%s2 + $0x408] sm:$0xff]
  %v2097 = vld [vmem:[%s2 + $0x410] sm:$0xff]
  %v2098 = vld [vmem:[%s2 + $0x418] sm:$0xff]
  %v2099 = vld [vmem:[%s2 + $0x420] sm:$0xff]
  %v2100 = vld [vmem:[%s2 + $0x428] sm:$0xff]
  %v2101 = vld [vmem:[%s2 + $0x430] sm:$0xff]
  %v2102 = vld [vmem:[%s2 + $0x438] sm:$0xff]
  %v2103 = vld [vmem:[%s2 + $0x440] sm:$0xff]
  %v2104 = vld [vmem:[%s2 + $0x448] sm:$0xff]
  %v2105 = vld [vmem:[%s2 + $0x450] sm:$0xff]
  %v2106 = vld [vmem:[%s2 + $0x458] sm:$0xff]
  %v2107 = vld [vmem:[%s2 + $0x460] sm:$0xff]
  %v2108 = vld [vmem:[%s2 + $0x468] sm:$0xff]
  %v2109 = vld [vmem:[%s2 + $0x470] sm:$0xff]
  %v2110 = vld [vmem:[%s2 + $0x478] sm:$0xff]
  %v2111 = vld [vmem:[%s2 + $0x480] sm:$0xff]
  %v2112 = vld [vmem:[%s2 + $0x488] sm:$0xff]
  %v2113 = vld [vmem:[%s2 + $0x490] sm:$0xff]
  %v2114 = vld [vmem:[%s2 + $0x498] sm:$0xff]
  %v2115 = vld [vmem:[%s2 + $0x4a0] sm:$0xff]
  %v2116 = vld [vmem:[%s2 + $0x4a8] sm:$0xff]
  %v2117 = vld [vmem:[%s2 + $0x4b0] sm:$0xff]
  %v2118 = vld [vmem:[%s2 + $0x4b8] sm:$0xff]
  %v2119 = vld [vmem:[%s2 + $0x4c0] sm:$0xff]
  %v2120 = vld [vmem:[%s2 + $0x4c8] sm:$0xff]
  %v2121 = vld [vmem:[%s2 + $0x4d0] sm:$0xff]
  %v2122 = vld [vmem:[%s2 + $0x4d8] sm:$0xff]
  %v2123 = vld [vmem:[%s2 + $0x4e0] sm:$0xff]
  %v2124 = vld [vmem:[%s2 + $0x4e8] sm:$0xff]
  %v2125 = vld [vmem:[%s2 + $0x4f0] sm:$0xff]
  %v2126 = vld [vmem:[%s2 + $0x4f8] sm:$0xff]
  %v2127 = vld [vmem:[%s2 + $0x500] sm:$0xff]
  %v2128 = vld [vmem:[%s2 + $0x508] sm:$0xff]
  %v2129 = vld [vmem:[%s2 + $0x510] sm:$0xff]
  %v2130 = vld [vmem:[%s2 + $0x518] sm:$0xff]
  %v2131 = vld [vmem:[%s2 + $0x520] sm:$0xff]
  %v2132 = vld [vmem:[%s2 + $0x528] sm:$0xff]
  %v2133 = vld [vmem:[%s2 + $0x530] sm:$0xff]
  %v2134 = vld [vmem:[%s2 + $0x538] sm:$0xff]
  %v2135 = vld [vmem:[%s2 + $0x540] sm:$0xff]
  %v2136 = vld [vmem:[%s2 + $0x548] sm:$0xff]
  %v2137 = vld [vmem:[%s2 + $0x550] sm:$0xff]
  %v2138 = vld [vmem:[%s2 + $0x558] sm:$0xff]
  %v2139 = vld [vmem:[%s2 + $0x560] sm:$0xff]
  %v2140 = vld [vmem:[%s2 + $0x568] sm:$0xff]
  %v2141 = vld [vmem:[%s2 + $0x570] sm:$0xff]
  %v2142 = vld [vmem:[%s2 + $0x578] sm:$0xff]
  %v2143 = vld [vmem:[%s2 + $0x580] sm:$0xff]
  %v2144 = vld [vmem:[%s2 + $0x588] sm:$0xff]
  %v2145 = vld [vmem:[%s2 + $0x590] sm:$0xff]
  %v2146 = vld [vmem:[%s2 + $0x598] sm:$0xff]
  %v2147 = vld [vmem:[%s2 + $0x5a0] sm:$0xff]
  %v2148 = vld [vmem:[%s2 + $0x5a8] sm:$0xff]
  %v2149 = vld [vmem:[%s2 + $0x5b0] sm:$0xff]
  %v2150 = vld [vmem:[%s2 + $0x5b8] sm:$0xff]
  %v2151 = vld [vmem:[%s2 + $0x5c0] sm:$0xff]
  %v2152 = vld [vmem:[%s2 + $0x5c8] sm:$0xff]
  %v2153 = vld [vmem:[%s2 + $0x5d0] sm:$0xff]
  %v2154 = vld [vmem:[%s2 + $0x5d8] sm:$0xff]
  %v2155 = vld [vmem:[%s2 + $0x5e0] sm:$0xff]
  %v2156 = vld [vmem:[%s2 + $0x5e8] sm:$0xff]
  %v2157 = vld [vmem:[%s2 + $0x5f0] sm:$0xff]
  %v2158 = vld [vmem:[%s2 + $0x5f8] sm:$0xff]
  %v2159 = vld [vmem:[%s2 + $0x600] sm:$0xff]
  %v2160 = vld [vmem:[%s2 + $0x608] sm:$0xff]
  %v2161 = vld [vmem:[%s2 + $0x610] sm:$0xff]
  %v2162 = vld [vmem:[%s2 + $0x618] sm:$0xff]
  %v2163 = vld [vmem:[%s2 + $0x620] sm:$0xff]
  %v2164 = vld [vmem:[%s2 + $0x628] sm:$0xff]
  %v2165 = vld [vmem:[%s2 + $0x630] sm:$0xff]
  %v2166 = vld [vmem:[%s2 + $0x638] sm:$0xff]
  %v2167 = vld [vmem:[%s2 + $0x640] sm:$0xff]
  %v2168 = vld [vmem:[%s2 + $0x648] sm:$0xff]
  %v2169 = vld [vmem:[%s2 + $0x650] sm:$0xff]
  %v2170 = vld [vmem:[%s2 + $0x658] sm:$0xff]
  %v2171 = vld [vmem:[%s2 + $0x660] sm:$0xff]
  %v2172 = vld [vmem:[%s2 + $0x668] sm:$0xff]
  %v2173 = vld [vmem:[%s2 + $0x670] sm:$0xff]
  %v2174 = vld [vmem:[%s2 + $0x678] sm:$0xff]
  %v2175 = vld [vmem:[%s2 + $0x680] sm:$0xff]
  %v2176 = vld [vmem:[%s2 + $0x688] sm:$0xff]
  %v2177 = vld [vmem:[%s2 + $0x690] sm:$0xff]
  %v2178 = vld [vmem:[%s2 + $0x698] sm:$0xff]
  %v2179 = vld [vmem:[%s2 + $0x6a0] sm:$0xff]
  %v2180 = vld [vmem:[%s2 + $0x6a8] sm:$0xff]
  %v2181 = vld [vmem:[%s2 + $0x6b0] sm:$0xff]
  %v2182 = vld [vmem:[%s2 + $0x6b8] sm:$0xff]
  %v2183 = vld [vmem:[%s2 + $0x6c0] sm:$0xff]
  %v2184 = vld [vmem:[%s2 + $0x6c8] sm:$0xff]
  %v2185 = vld [vmem:[%s2 + $0x6d0] sm:$0xff]
  %v2186 = vld [vmem:[%s2 + $0x6d8] sm:$0xff]
  %v2187 = vld [vmem:[%s2 + $0x6e0] sm:$0xff]
  %v2188 = vld [vmem:[%s2 + $0x6e8] sm:$0xff]
  %v2189 = vld [vmem:[%s2 + $0x6f0] sm:$0xff]
  %v2190 = vld [vmem:[%s2 + $0x6f8] sm:$0xff]
  %v2191 = vld [vmem:[%s2 + $0x700] sm:$0xff]
  %v2192 = vld [vmem:[%s2 + $0x708] sm:$0xff]
  %v2193 = vld [vmem:[%s2 + $0x710] sm:$0xff]
  %v2194 = vld [vmem:[%s2 + $0x718] sm:$0xff]
  %v2195 = vld [vmem:[%s2 + $0x720] sm:$0xff]
  %v2196 = vld [vmem:[%s2 + $0x728] sm:$0xff]
  %v2197 = vld [vmem:[%s2 + $0x730] sm:$0xff]
  %v2198 = vld [vmem:[%s2 + $0x738] sm:$0xff]
  %v2199 = vld [vmem:[%s2 + $0x740] sm:$0xff]
  %v2200 = vld [vmem:[%s2 + $0x748] sm:$0xff]
  %v2201 = vld [vmem:[%s2 + $0x750] sm:$0xff]
  %v2202 = vld [vmem:[%s2 + $0x758] sm:$0xff]
  %v2203 = vld [vmem:[%s2 + $0x760] sm:$0xff]
  %v2204 = vld [vmem:[%s2 + $0x768] sm:$0xff]
  %v2205 = vld [vmem:[%s2 + $0x770] sm:$0xff]
  %v2206 = vld [vmem:[%s2 + $0x778] sm:$0xff]
  %v2207 = vld [vmem:[%s2 + $0x780] sm:$0xff]
  %v2208 = vld [vmem:[%s2 + $0x788] sm:$0xff]
  %v2209 = vld [vmem:[%s2 + $0x790] sm:$0xff]
  %v2210 = vld [vmem:[%s2 + $0x798] sm:$0xff]
  %v2211 = vld [vmem:[%s2 + $0x7a0] sm:$0xff]
  %v2212 = vld [vmem:[%s2 + $0x7a8] sm:$0xff]
  %v2213 = vld [vmem:[%s2 + $0x7b0] sm:$0xff]
  %v2214 = vld [vmem:[%s2 + $0x7b8] sm:$0xff]
  %v2215 = vld [vmem:[%s2 + $0x7c0] sm:$0xff]
  %v2216 = vld [vmem:[%s2 + $0x7c8] sm:$0xff]
  %v2217 = vld [vmem:[%s2 + $0x7d0] sm:$0xff]
  %v2218 = vld [vmem:[%s2 + $0x7d8] sm:$0xff]
  %v2219 = vld [vmem:[%s2 + $0x7e0] sm:$0xff]
  %v2220 = vld [vmem:[%s2 + $0x7e8] sm:$0xff]
  %v2221 = vld [vmem:[%s2 + $0x7f0] sm:$0xff]
  %v2222 = vld [vmem:[%s2 + $0x7f8] sm:$0xff]
  %v2223 = vld [vmem:[%s2 + $0x800] sm:$0xff]
  %v2224 = vld [vmem:[%s2 + $0x808] sm:$0xff]
  %v2225 = vld [vmem:[%s2 + $0x810] sm:$0xff]
  %v2226 = vld [vmem:[%s2 + $0x818] sm:$0xff]
  %v2227 = vld [vmem:[%s2 + $0x820] sm:$0xff]
  %v2228 = vld [vmem:[%s2 + $0x828] sm:$0xff]
  %v2229 = vld [vmem:[%s2 + $0x830] sm:$0xff]
  %v2230 = vld [vmem:[%s2 + $0x838] sm:$0xff]
  %v2231 = vld [vmem:[%s2 + $0x840] sm:$0xff]
  %v2232 = vld [vmem:[%s2 + $0x848] sm:$0xff]
  %v2233 = vld [vmem:[%s2 + $0x850] sm:$0xff]
  %v2234 = vld [vmem:[%s2 + $0x858] sm:$0xff]
  %v2235 = vld [vmem:[%s2 + $0x860] sm:$0xff]
  %v2236 = vld [vmem:[%s2 + $0x868] sm:$0xff]
  %v2237 = vld [vmem:[%s2 + $0x870] sm:$0xff]
  %v2238 = vld [vmem:[%s2 + $0x878] sm:$0xff]
  %v2239 = vld [vmem:[%s2 + $0x880] sm:$0xff]
  %v2240 = vld [vmem:[%s2 + $0x888] sm:$0xff]
  %v2241 = vld [vmem:[%s2 + $0x890] sm:$0xff]
  %v2242 = vld [vmem:[%s2 + $0x898] sm:$0xff]
  %v2243 = vld [vmem:[%s2 + $0x8a0] sm:$0xff]
  %v2244 = vld [vmem:[%s2 + $0x8a8] sm:$0xff]
  %v2245 = vld [vmem:[%s2 + $0x8b0] sm:$0xff]
  %v2246 = vld [vmem:[%s2 + $0x8b8] sm:$0xff]
  %v2247 = vld [vmem:[%s2 + $0x8c0] sm:$0xff]
  %v2248 = vld [vmem:[%s2 + $0x8c8] sm:$0xff]
  %v2249 = vld [vmem:[%s2 + $0x8d0] sm:$0xff]
  %v2250 = vld [vmem:[%s2 + $0x8d8] sm:$0xff]
  %v2251 = vld [vmem:[%s2 + $0x8e0] sm:$0xff]
  %v2252 = vld [vmem:[%s2 + $0x8e8] sm:$0xff]
  %v2253 = vld [vmem:[%s2 + $0x8f0] sm:$0xff]
  %v2254 = vld [vmem:[%s2 + $0x8f8] sm:$0xff]
  %2255 = vmatprep.subr.mxu0 %v2058
  %2256 = vmatpush1.msra.mxu0 %v2057
  %2257 = vmatprep.subr.mxu0 %v2052
  %2258 = vmatpush1.msra.mxu0 %v2051
  %2259 = vmatprep.subr.mxu0 %v2046
  %2260 = vmatpush1.msra.mxu0 %v2045
  %2261 = vmatprep.subr.mxu0 %v2040
  %2262 = vmatpush1.msra.mxu0 %v2039
  %2263 = vmatprep.subr.mxu0 %v2034
  %2264 = vmatpush1.msra.mxu0 %v2033
  %2265 = vmatprep.subr.mxu0 %v2028
  %2266 = vmatpush1.msra.mxu0 %v2027
  %2267 = vmatprep.subr.mxu0 %v2022
  %2268 = vmatpush1.msra.mxu0 %v2021
  %2269 = vmatprep.subr.mxu0 %v2016
  %2270 = vmatpush1.msra.mxu0 %v2015
  %2271 = vmatprep.subr.mxu0 %v2010
  %2272 = vmatpush1.msra.mxu0 %v2009
  %2273 = vmatprep.subr.mxu0 %v2004
  %2274 = vmatpush1.msra.mxu0 %v2003
  %2275 = vmatprep.subr.mxu0 %v1998
  %2276 = vmatpush1.msra.mxu0 %v1997
  %2277 = vmatprep.subr.mxu0 %v1992
  %2278 = vmatpush1.msra.mxu0 %v1991
  %2279 = vmatprep.subr.mxu0 %v1986
  %2280 = vmatpush1.msra.mxu0 %v1985
  %2281 = vmatprep.subr.mxu0 %v1980
  %2282 = vmatpush1.msra.mxu0 %v1979
  %2283 = vmatprep.subr.mxu0 %v1974
  %2284 = vmatpush1.msra.mxu0 %v1973
  %2285 = vmatprep.subr.mxu0 %v1968
  %2286 = vmatpush1.msra.mxu0 %v1967
  %2287 = vmatprep.subr.mxu0 %v2154
  %2288 = vmatpush2.msra.mxu0 %v2153
  %2289 = vmatprep.subr.mxu0 %v2148
  %2290 = vmatpush2.msra.mxu0 %v2147
  %2291 = vmatprep.subr.mxu0 %v2142
  %2292 = vmatpush2.msra.mxu0 %v2141
  %2293 = vmatprep.subr.mxu0 %v2136
  %2294 = vmatpush2.msra.mxu0 %v2135
  %2295 = vmatprep.subr.mxu0 %v2130
  %2296 = vmatpush2.msra.mxu0 %v2129
  %2297 = vmatprep.subr.mxu0 %v2124
  %2298 = vmatpush2.msra.mxu0 %v2123
  %2299 = vmatprep.subr.mxu0 %v2118
  %2300 = vmatpush2.msra.mxu0 %v2117
  %2301 = vmatprep.subr.mxu0 %v2112
  %2302 = vmatpush2.msra.mxu0 %v2111
  %2303 = vmatprep.subr.mxu0 %v2106
  %2304 = vmatpush2.msra.mxu0 %v2105
  %2305 = vmatprep.subr.mxu0 %v2100
  %2306 = vmatpush2.msra.mxu0 %v2099
  %2307 = vmatprep.subr.mxu0 %v2094
  %2308 = vmatpush2.msra.mxu0 %v2093
  %2309 = vmatprep.subr.mxu0 %v2088
  %2310 = vmatpush2.msra.mxu0 %v2087
  %2311 = vmatprep.subr.mxu0 %v2082
  %2312 = vmatpush2.msra.mxu0 %v2081
  %2313 = vmatprep.subr.mxu0 %v2076
  %2314 = vmatpush2.msra.mxu0 %v2075
  %2315 = vmatprep.subr.mxu0 %v2070
  %2316 = vmatpush2.msra.mxu0 %v2069
  %2317 = vmatprep.subr.mxu0 %v2064
  %2318 = vmatpush2.msra.mxu0 %v2063
  %2319 = vmatprep.mubr.f32.mxu0 %v1212
  %2320 = vmatmul.mubr.f32.gmra.mxu0 %v580
  %v2321 = vpop.f32.mrf.mxu0
  %v2322 = vadd.f32 0.0, %v2321
  %v2323 = vpop.f32.mrf.mxu0
  %v2324 = vadd.f32 0.0, %v2323
  %2325 = vmatprep.mubr.f32.mxu0 %v1217
  %2326 = vmatmul.mubr.f32.gmra.mxu0 %v585
  %v2327 = vpop.f32.mrf.mxu0
  %v2328 = vadd.f32 0.0, %v2327
  %v2329 = vpop.f32.mrf.mxu0
  %v2330 = vadd.f32 0.0, %v2329
  %2331 = vmatprep.mubr.f32.mxu0 %v1222
  %2332 = vmatmul.mubr.f32.gmra.mxu0 %v590
  %v2333 = vpop.f32.mrf.mxu0
  %v2334 = vadd.f32 0.0, %v2333
  %v2335 = vpop.f32.mrf.mxu0
  %v2336 = vadd.f32 0.0, %v2335
  %2337 = vmatprep.mubr.f32.mxu0 %v1227
  %2338 = vmatmul.mubr.f32.gmra.mxu0 %v595
  %v2339 = vpop.f32.mrf.mxu0
  %v2340 = vadd.f32 0.0, %v2339
  %v2341 = vpop.f32.mrf.mxu0
  %v2342 = vadd.f32 0.0, %v2341
  %2343 = vmatprep.mubr.f32.mxu0 %v1232
  %2344 = vmatmul.mubr.f32.gmra.mxu0 %v600
  %v2345 = vpop.f32.mrf.mxu0
  %v2346 = vadd.f32 0.0, %v2345
  %v2347 = vpop.f32.mrf.mxu0
  %v2348 = vadd.f32 0.0, %v2347
  %2349 = vmatprep.mubr.f32.mxu0 %v1237
  %2350 = vmatmul.mubr.f32.gmra.mxu0 %v605
  %v2351 = vpop.f32.mrf.mxu0
  %v2352 = vadd.f32 0.0, %v2351
  %v2353 = vpop.f32.mrf.mxu0
  %v2354 = vadd.f32 0.0, %v2353
  %2355 = vmatprep.mubr.f32.mxu0 %v1242
  %2356 = vmatmul.mubr.f32.gmra.mxu0 %v610
  %v2357 = vpop.f32.mrf.mxu0
  %v2358 = vadd.f32 0.0, %v2357
  %v2359 = vpop.f32.mrf.mxu0
  %v2360 = vadd.f32 0.0, %v2359
  %2361 = vmatprep.mubr.f32.mxu0 %v1247
  %2362 = vmatmul.mubr.f32.gmra.mxu0 %v615
  %v2363 = vpop.f32.mrf.mxu0
  %v2364 = vadd.f32 0.0, %v2363
  %v2365 = vpop.f32.mrf.mxu0
  %v2366 = vadd.f32 0.0, %v2365
  %2367 = vmatprep.mubr.f32.mxu0 %v1252
  %2368 = vmatmul.mubr.f32.gmra.mxu0 %v620
  %v2369 = vpop.f32.mrf.mxu0
  %v2370 = vadd.f32 0.0, %v2369
  %v2371 = vpop.f32.mrf.mxu0
  %v2372 = vadd.f32 0.0, %v2371
  %2373 = vmatprep.mubr.f32.mxu0 %v1257
  %2374 = vmatmul.mubr.f32.gmra.mxu0 %v625
  %v2375 = vpop.f32.mrf.mxu0
  %v2376 = vadd.f32 0.0, %v2375
  %v2377 = vpop.f32.mrf.mxu0
  %v2378 = vadd.f32 0.0, %v2377
  %2379 = vmatprep.mubr.f32.mxu0 %v1262
  %2380 = vmatmul.mubr.f32.gmra.mxu0 %v630
  %v2381 = vpop.f32.mrf.mxu0
  %v2382 = vadd.f32 0.0, %v2381
  %v2383 = vpop.f32.mrf.mxu0
  %v2384 = vadd.f32 0.0, %v2383
  %2385 = vmatprep.mubr.f32.mxu0 %v1267
  %2386 = vmatmul.mubr.f32.gmra.mxu0 %v635
  %v2387 = vpop.f32.mrf.mxu0
  %v2388 = vadd.f32 0.0, %v2387
  %v2389 = vpop.f32.mrf.mxu0
  %v2390 = vadd.f32 0.0, %v2389
  %2391 = vmatprep.mubr.f32.mxu0 %v1272
  %2392 = vmatmul.mubr.f32.gmra.mxu0 %v640
  %v2393 = vpop.f32.mrf.mxu0
  %v2394 = vadd.f32 0.0, %v2393
  %v2395 = vpop.f32.mrf.mxu0
  %v2396 = vadd.f32 0.0, %v2395
  %2397 = vmatprep.mubr.f32.mxu0 %v1277
  %2398 = vmatmul.mubr.f32.gmra.mxu0 %v645
  %v2399 = vpop.f32.mrf.mxu0
  %v2400 = vadd.f32 0.0, %v2399
  %v2401 = vpop.f32.mrf.mxu0
  %v2402 = vadd.f32 0.0, %v2401
  %2403 = vmatprep.mubr.f32.mxu0 %v1282
  %2404 = vmatmul.mubr.f32.gmra.mxu0 %v650
  %v2405 = vpop.f32.mrf.mxu0
  %v2406 = vadd.f32 0.0, %v2405
  %v2407 = vpop.f32.mrf.mxu0
  %v2408 = vadd.f32 0.0, %v2407
  %2409 = vmatprep.mubr.f32.mxu0 %v1287
  %2410 = vmatmul.mubr.f32.gmra.mxu0 %v655
  %v2411 = vpop.f32.mrf.mxu0
  %v2412 = vadd.f32 0.0, %v2411
  %v2413 = vpop.f32.mrf.mxu0
  %v2414 = vadd.f32 0.0, %v2413
  %2415 = vmatprep.mubr.f32.mxu0 %v1292
  %2416 = vmatmul.mubr.f32.gmra.mxu0 %v660
  %v2417 = vpop.f32.mrf.mxu0
  %v2418 = vadd.f32 0.0, %v2417
  %v2419 = vpop.f32.mrf.mxu0
  %v2420 = vadd.f32 0.0, %v2419
  %2421 = vmatprep.mubr.f32.mxu0 %v1297
  %2422 = vmatmul.mubr.f32.gmra.mxu0 %v665
  %v2423 = vpop.f32.mrf.mxu0
  %v2424 = vadd.f32 0.0, %v2423
  %v2425 = vpop.f32.mrf.mxu0
  %v2426 = vadd.f32 0.0, %v2425
  %2427 = vmatprep.mubr.f32.mxu0 %v1302
  %2428 = vmatmul.mubr.f32.gmra.mxu0 %v670
  %v2429 = vpop.f32.mrf.mxu0
  %v2430 = vadd.f32 0.0, %v2429
  %v2431 = vpop.f32.mrf.mxu0
  %v2432 = vadd.f32 0.0, %v2431
  %2433 = vmatprep.mubr.f32.mxu0 %v1307
  %2434 = vmatmul.mubr.f32.gmra.mxu0 %v675
  %v2435 = vpop.f32.mrf.mxu0
  %v2436 = vadd.f32 0.0, %v2435
  %v2437 = vpop.f32.mrf.mxu0
  %v2438 = vadd.f32 0.0, %v2437
  %2439 = vmatprep.mubr.f32.mxu0 %v1312
  %2440 = vmatmul.mubr.f32.gmra.mxu0 %v680
  %v2441 = vpop.f32.mrf.mxu0
  %v2442 = vadd.f32 0.0, %v2441
  %v2443 = vpop.f32.mrf.mxu0
  %v2444 = vadd.f32 0.0, %v2443
  %2445 = vmatprep.mubr.f32.mxu0 %v1317
  %2446 = vmatmul.mubr.f32.gmra.mxu0 %v685
  %v2447 = vpop.f32.mrf.mxu0
  %v2448 = vadd.f32 0.0, %v2447
  %v2449 = vpop.f32.mrf.mxu0
  %v2450 = vadd.f32 0.0, %v2449
  %2451 = vmatprep.mubr.f32.mxu0 %v1322
  %2452 = vmatmul.mubr.f32.gmra.mxu0 %v690
  %v2453 = vpop.f32.mrf.mxu0
  %v2454 = vadd.f32 0.0, %v2453
  %v2455 = vpop.f32.mrf.mxu0
  %v2456 = vadd.f32 0.0, %v2455
  %2457 = vmatprep.mubr.f32.mxu0 %v1327
  %2458 = vmatmul.mubr.f32.gmra.mxu0 %v695
  %v2459 = vpop.f32.mrf.mxu0
  %v2460 = vadd.f32 0.0, %v2459
  %v2461 = vpop.f32.mrf.mxu0
  %v2462 = vadd.f32 0.0, %v2461
  %2463 = vmatprep.mubr.f32.mxu0 %v1332
  %2464 = vmatmul.mubr.f32.gmra.mxu0 %v700
  %v2465 = vpop.f32.mrf.mxu0
  %v2466 = vadd.f32 0.0, %v2465
  %v2467 = vpop.f32.mrf.mxu0
  %v2468 = vadd.f32 0.0, %v2467
  %2469 = vdwg.mxu0
  %2470 = vmatprep.subr.mxu0 %v2250
  %2471 = vmatpush1.msra.mxu0 %v2249
  %2472 = vmatprep.subr.mxu0 %v2244
  %2473 = vmatpush1.msra.mxu0 %v2243
  %2474 = vmatprep.subr.mxu0 %v2238
  %2475 = vmatpush1.msra.mxu0 %v2237
  %2476 = vmatprep.subr.mxu0 %v2232
  %2477 = vmatpush1.msra.mxu0 %v2231
  %2478 = vmatprep.subr.mxu0 %v2226
  %2479 = vmatpush1.msra.mxu0 %v2225
  %2480 = vmatprep.subr.mxu0 %v2220
  %2481 = vmatpush1.msra.mxu0 %v2219
  %2482 = vmatprep.subr.mxu0 %v2214
  %2483 = vmatpush1.msra.mxu0 %v2213
  %2484 = vmatprep.subr.mxu0 %v2208
  %2485 = vmatpush1.msra.mxu0 %v2207
  %2486 = vmatprep.subr.mxu0 %v2202
  %2487 = vmatpush1.msra.mxu0 %v2201
  %2488 = vmatprep.subr.mxu0 %v2196
  %2489 = vmatpush1.msra.mxu0 %v2195
  %2490 = vmatprep.subr.mxu0 %v2190
  %2491 = vmatpush1.msra.mxu0 %v2189
  %2492 = vmatprep.subr.mxu0 %v2184
  %2493 = vmatpush1.msra.mxu0 %v2183
  %2494 = vmatprep.subr.mxu0 %v2178
  %2495 = vmatpush1.msra.mxu0 %v2177
  %2496 = vmatprep.subr.mxu0 %v2172
  %2497 = vmatpush1.msra.mxu0 %v2171
  %2498 = vmatprep.subr.mxu0 %v2166
  %2499 = vmatpush1.msra.mxu0 %v2165
  %2500 = vmatprep.subr.mxu0 %v2160
  %2501 = vmatpush1.msra.mxu0 %v2159
  %2502 = vmatprep.subr.mxu0 0.0
  %2503 = vmatpush2.msra.mxu0 0.0
  %2504 = vmatprep.subr.mxu0 0.0
  %2505 = vmatpush2.msra.mxu0 0.0
  %2506 = vmatprep.subr.mxu0 0.0
  %2507 = vmatpush2.msra.mxu0 0.0
  %2508 = vmatprep.subr.mxu0 0.0
  %2509 = vmatpush2.msra.mxu0 0.0
  %2510 = vmatprep.subr.mxu0 0.0
  %2511 = vmatpush2.msra.mxu0 0.0
  %2512 = vmatprep.subr.mxu0 0.0
  %2513 = vmatpush2.msra.mxu0 0.0
  %2514 = vmatprep.subr.mxu0 0.0
  %2515 = vmatpush2.msra.mxu0 0.0
  %2516 = vmatprep.subr.mxu0 0.0
  %2517 = vmatpush2.msra.mxu0 0.0
  %2518 = vmatprep.subr.mxu0 0.0
  %2519 = vmatpush2.msra.mxu0 0.0
  %2520 = vmatprep.subr.mxu0 0.0
  %2521 = vmatpush2.msra.mxu0 0.0
  %2522 = vmatprep.subr.mxu0 0.0
  %2523 = vmatpush2.msra.mxu0 0.0
  %2524 = vmatprep.subr.mxu0 0.0
  %2525 = vmatpush2.msra.mxu0 0.0
  %2526 = vmatprep.subr.mxu0 0.0
  %2527 = vmatpush2.msra.mxu0 0.0
  %2528 = vmatprep.subr.mxu0 0.0
  %2529 = vmatpush2.msra.mxu0 0.0
  %2530 = vmatprep.subr.mxu0 0.0
  %2531 = vmatpush2.msra.mxu0 0.0
  %2532 = vmatprep.subr.mxu0 0.0
  %2533 = vmatpush2.msra.mxu0 0.0
  %2534 = vmatprep.mubr.f32.mxu0 0.0
  %2535 = vmatmul.mubr.f32.gmra.mxu0 %v1844
  %v2536 = vpop.f32.mrf.mxu0
  %v2537 = vadd.f32 %v2322, %v2536
  %v2538 = vpop.f32.mrf.mxu0
  %v2539 = vadd.f32 %v2324, %v2538
  %2540 = vmatprep.mubr.f32.mxu0 0.0
  %2541 = vmatmul.mubr.f32.gmra.mxu0 %v1849
  %v2542 = vpop.f32.mrf.mxu0
  %v2543 = vadd.f32 %v2328, %v2542
  %v2544 = vpop.f32.mrf.mxu0
  %v2545 = vadd.f32 %v2330, %v2544
  %2546 = vmatprep.mubr.f32.mxu0 0.0
  %2547 = vmatmul.mubr.f32.gmra.mxu0 %v1854
  %v2548 = vpop.f32.mrf.mxu0
  %v2549 = vadd.f32 %v2334, %v2548
  %v2550 = vpop.f32.mrf.mxu0
  %v2551 = vadd.f32 %v2336, %v2550
  %2552 = vmatprep.mubr.f32.mxu0 0.0
  %2553 = vmatmul.mubr.f32.gmra.mxu0 %v1859
  %v2554 = vpop.f32.mrf.mxu0
  %v2555 = vadd.f32 %v2340, %v2554
  %v2556 = vpop.f32.mrf.mxu0
  %v2557 = vadd.f32 %v2342, %v2556
  %2558 = vmatprep.mubr.f32.mxu0 0.0
  %2559 = vmatmul.mubr.f32.gmra.mxu0 %v1864
  %v2560 = vpop.f32.mrf.mxu0
  %v2561 = vadd.f32 %v2346, %v2560
  %v2562 = vpop.f32.mrf.mxu0
  %v2563 = vadd.f32 %v2348, %v2562
  %2564 = vmatprep.mubr.f32.mxu0 0.0
  %2565 = vmatmul.mubr.f32.gmra.mxu0 %v1869
  %v2566 = vpop.f32.mrf.mxu0
  %v2567 = vadd.f32 %v2352, %v2566
  %v2568 = vpop.f32.mrf.mxu0
  %v2569 = vadd.f32 %v2354, %v2568
  %2570 = vmatprep.mubr.f32.mxu0 0.0
  %2571 = vmatmul.mubr.f32.gmra.mxu0 %v1874
  %v2572 = vpop.f32.mrf.mxu0
  %v2573 = vadd.f32 %v2358, %v2572
  %v2574 = vpop.f32.mrf.mxu0
  %v2575 = vadd.f32 %v2360, %v2574
  %2576 = vmatprep.mubr.f32.mxu0 0.0
  %2577 = vmatmul.mubr.f32.gmra.mxu0 %v1879
  %v2578 = vpop.f32.mrf.mxu0
  %v2579 = vadd.f32 %v2364, %v2578
  %v2580 = vpop.f32.mrf.mxu0
  %v2581 = vadd.f32 %v2366, %v2580
  %2582 = vmatprep.mubr.f32.mxu0 0.0
  %2583 = vmatmul.mubr.f32.gmra.mxu0 %v1884
  %v2584 = vpop.f32.mrf.mxu0
  %v2585 = vadd.f32 %v2370, %v2584
  %v2586 = vpop.f32.mrf.mxu0
  %v2587 = vadd.f32 %v2372, %v2586
  %2588 = vmatprep.mubr.f32.mxu0 0.0
  %2589 = vmatmul.mubr.f32.gmra.mxu0 %v1889
  %v2590 = vpop.f32.mrf.mxu0
  %v2591 = vadd.f32 %v2376, %v2590
  %v2592 = vpop.f32.mrf.mxu0
  %v2593 = vadd.f32 %v2378, %v2592
  %2594 = vmatprep.mubr.f32.mxu0 0.0
  %2595 = vmatmul.mubr.f32.gmra.mxu0 %v1894
  %v2596 = vpop.f32.mrf.mxu0
  %v2597 = vadd.f32 %v2382, %v2596
  %v2598 = vpop.f32.mrf.mxu0
  %v2599 = vadd.f32 %v2384, %v2598
  %2600 = vmatprep.mubr.f32.mxu0 0.0
  %2601 = vmatmul.mubr.f32.gmra.mxu0 %v1899
  %v2602 = vpop.f32.mrf.mxu0
  %v2603 = vadd.f32 %v2388, %v2602
  %v2604 = vpop.f32.mrf.mxu0
  %v2605 = vadd.f32 %v2390, %v2604
  %2606 = vmatprep.mubr.f32.mxu0 0.0
  %2607 = vmatmul.mubr.f32.gmra.mxu0 %v1904
  %v2608 = vpop.f32.mrf.mxu0
  %v2609 = vadd.f32 %v2394, %v2608
  %v2610 = vpop.f32.mrf.mxu0
  %v2611 = vadd.f32 %v2396, %v2610
  %2612 = vmatprep.mubr.f32.mxu0 0.0
  %2613 = vmatmul.mubr.f32.gmra.mxu0 %v1909
  %v2614 = vpop.f32.mrf.mxu0
  %v2615 = vadd.f32 %v2400, %v2614
  %v2616 = vpop.f32.mrf.mxu0
  %v2617 = vadd.f32 %v2402, %v2616
  %2618 = vmatprep.mubr.f32.mxu0 0.0
  %2619 = vmatmul.mubr.f32.gmra.mxu0 %v1914
  %v2620 = vpop.f32.mrf.mxu0
  %v2621 = vadd.f32 %v2406, %v2620
  %v2622 = vpop.f32.mrf.mxu0
  %v2623 = vadd.f32 %v2408, %v2622
  %2624 = vmatprep.mubr.f32.mxu0 0.0
  %2625 = vmatmul.mubr.f32.gmra.mxu0 %v1919
  %v2626 = vpop.f32.mrf.mxu0
  %v2627 = vadd.f32 %v2412, %v2626
  %v2628 = vpop.f32.mrf.mxu0
  %v2629 = vadd.f32 %v2414, %v2628
  %2630 = vmatprep.mubr.f32.mxu0 0.0
  %2631 = vmatmul.mubr.f32.gmra.mxu0 %v1924
  %v2632 = vpop.f32.mrf.mxu0
  %v2633 = vadd.f32 %v2418, %v2632
  %v2634 = vpop.f32.mrf.mxu0
  %v2635 = vadd.f32 %v2420, %v2634
  %2636 = vmatprep.mubr.f32.mxu0 0.0
  %2637 = vmatmul.mubr.f32.gmra.mxu0 %v1929
  %v2638 = vpop.f32.mrf.mxu0
  %v2639 = vadd.f32 %v2424, %v2638
  %v2640 = vpop.f32.mrf.mxu0
  %v2641 = vadd.f32 %v2426, %v2640
  %2642 = vmatprep.mubr.f32.mxu0 0.0
  %2643 = vmatmul.mubr.f32.gmra.mxu0 %v1934
  %v2644 = vpop.f32.mrf.mxu0
  %v2645 = vadd.f32 %v2430, %v2644
  %v2646 = vpop.f32.mrf.mxu0
  %v2647 = vadd.f32 %v2432, %v2646
  %2648 = vmatprep.mubr.f32.mxu0 0.0
  %2649 = vmatmul.mubr.f32.gmra.mxu0 %v1939
  %v2650 = vpop.f32.mrf.mxu0
  %v2651 = vadd.f32 %v2436, %v2650
  %v2652 = vpop.f32.mrf.mxu0
  %v2653 = vadd.f32 %v2438, %v2652
  %2654 = vmatprep.mubr.f32.mxu0 0.0
  %2655 = vmatmul.mubr.f32.gmra.mxu0 %v1944
  %v2656 = vpop.f32.mrf.mxu0
  %v2657 = vadd.f32 %v2442, %v2656
  %v2658 = vpop.f32.mrf.mxu0
  %v2659 = vadd.f32 %v2444, %v2658
  %2660 = vmatprep.mubr.f32.mxu0 0.0
  %2661 = vmatmul.mubr.f32.gmra.mxu0 %v1949
  %v2662 = vpop.f32.mrf.mxu0
  %v2663 = vadd.f32 %v2448, %v2662
  %v2664 = vpop.f32.mrf.mxu0
  %v2665 = vadd.f32 %v2450, %v2664
  %2666 = vmatprep.mubr.f32.mxu0 0.0
  %2667 = vmatmul.mubr.f32.gmra.mxu0 %v1954
  %v2668 = vpop.f32.mrf.mxu0
  %v2669 = vadd.f32 %v2454, %v2668
  %v2670 = vpop.f32.mrf.mxu0
  %v2671 = vadd.f32 %v2456, %v2670
  %2672 = vmatprep.mubr.f32.mxu0 0.0
  %2673 = vmatmul.mubr.f32.gmra.mxu0 %v1959
  %v2674 = vpop.f32.mrf.mxu0
  %v2675 = vadd.f32 %v2460, %v2674
  %v2676 = vpop.f32.mrf.mxu0
  %v2677 = vadd.f32 %v2462, %v2676
  %2678 = vmatprep.mubr.f32.mxu0 0.0
  %2679 = vmatmul.mubr.f32.gmra.mxu0 %v1964
  %v2680 = vpop.f32.mrf.mxu0
  %v2681 = vadd.f32 %v2466, %v2680
  %v2682 = vpop.f32.mrf.mxu0
  %v2683 = vadd.f32 %v2468, %v2682
  %2684 = vdwg.mxu0
  %2685 = vmatprep.subr.mxu0 %v2060
  %2686 = vmatpush1.msra.mxu0 %v2059
  %2687 = vmatprep.subr.mxu0 %v2054
  %2688 = vmatpush1.msra.mxu0 %v2053
  %2689 = vmatprep.subr.mxu0 %v2048
  %2690 = vmatpush1.msra.mxu0 %v2047
  %2691 = vmatprep.subr.mxu0 %v2042
  %2692 = vmatpush1.msra.mxu0 %v2041
  %2693 = vmatprep.subr.mxu0 %v2036
  %2694 = vmatpush1.msra.mxu0 %v2035
  %2695 = vmatprep.subr.mxu0 %v2030
  %2696 = vmatpush1.msra.mxu0 %v2029
  %2697 = vmatprep.subr.mxu0 %v2024
  %2698 = vmatpush1.msra.mxu0 %v2023
  %2699 = vmatprep.subr.mxu0 %v2018
  %2700 = vmatpush1.msra.mxu0 %v2017
  %2701 = vmatprep.subr.mxu0 %v2012
  %2702 = vmatpush1.msra.mxu0 %v2011
  %2703 = vmatprep.subr.mxu0 %v2006
  %2704 = vmatpush1.msra.mxu0 %v2005
  %2705 = vmatprep.subr.mxu0 %v2000
  %2706 = vmatpush1.msra.mxu0 %v1999
  %2707 = vmatprep.subr.mxu0 %v1994
  %2708 = vmatpush1.msra.mxu0 %v1993
  %2709 = vmatprep.subr.mxu0 %v1988
  %2710 = vmatpush1.msra.mxu0 %v1987
  %2711 = vmatprep.subr.mxu0 %v1982
  %2712 = vmatpush1.msra.mxu0 %v1981
  %2713 = vmatprep.subr.mxu0 %v1976
  %2714 = vmatpush1.msra.mxu0 %v1975
  %2715 = vmatprep.subr.mxu0 %v1970
  %2716 = vmatpush1.msra.mxu0 %v1969
  %2717 = vmatprep.subr.mxu0 %v2156
  %2718 = vmatpush2.msra.mxu0 %v2155
  %2719 = vmatprep.subr.mxu0 %v2150
  %2720 = vmatpush2.msra.mxu0 %v2149
  %2721 = vmatprep.subr.mxu0 %v2144
  %2722 = vmatpush2.msra.mxu0 %v2143
  %2723 = vmatprep.subr.mxu0 %v2138
  %2724 = vmatpush2.msra.mxu0 %v2137
  %2725 = vmatprep.subr.mxu0 %v2132
  %2726 = vmatpush2.msra.mxu0 %v2131
  %2727 = vmatprep.subr.mxu0 %v2126
  %2728 = vmatpush2.msra.mxu0 %v2125
  %2729 = vmatprep.subr.mxu0 %v2120
  %2730 = vmatpush2.msra.mxu0 %v2119
  %2731 = vmatprep.subr.mxu0 %v2114
  %2732 = vmatpush2.msra.mxu0 %v2113
  %2733 = vmatprep.subr.mxu0 %v2108
  %2734 = vmatpush2.msra.mxu0 %v2107
  %2735 = vmatprep.subr.mxu0 %v2102
  %2736 = vmatpush2.msra.mxu0 %v2101
  %2737 = vmatprep.subr.mxu0 %v2096
  %2738 = vmatpush2.msra.mxu0 %v2095
  %2739 = vmatprep.subr.mxu0 %v2090
  %2740 = vmatpush2.msra.mxu0 %v2089
  %2741 = vmatprep.subr.mxu0 %v2084
  %2742 = vmatpush2.msra.mxu0 %v2083
  %2743 = vmatprep.subr.mxu0 %v2078
  %2744 = vmatpush2.msra.mxu0 %v2077
  %2745 = vmatprep.subr.mxu0 %v2072
  %2746 = vmatpush2.msra.mxu0 %v2071
  %2747 = vmatprep.subr.mxu0 %v2066
  %2748 = vmatpush2.msra.mxu0 %v2065
  %2749 = vmatprep.mubr.f32.mxu0 %v1212
  %2750 = vmatmul.mubr.f32.gmra.mxu0 %v580
  %v2751 = vpop.f32.mrf.mxu0
  %v2752 = vadd.f32 0.0, %v2751
  %v2753 = vpop.f32.mrf.mxu0
  %v2754 = vadd.f32 0.0, %v2753
  %2755 = vmatprep.mubr.f32.mxu0 %v1217
  %2756 = vmatmul.mubr.f32.gmra.mxu0 %v585
  %v2757 = vpop.f32.mrf.mxu0
  %v2758 = vadd.f32 0.0, %v2757
  %v2759 = vpop.f32.mrf.mxu0
  %v2760 = vadd.f32 0.0, %v2759
  %2761 = vmatprep.mubr.f32.mxu0 %v1222
  %2762 = vmatmul.mubr.f32.gmra.mxu0 %v590
  %v2763 = vpop.f32.mrf.mxu0
  %v2764 = vadd.f32 0.0, %v2763
  %v2765 = vpop.f32.mrf.mxu0
  %v2766 = vadd.f32 0.0, %v2765
  %2767 = vmatprep.mubr.f32.mxu0 %v1227
  %2768 = vmatmul.mubr.f32.gmra.mxu0 %v595
  %v2769 = vpop.f32.mrf.mxu0
  %v2770 = vadd.f32 0.0, %v2769
  %v2771 = vpop.f32.mrf.mxu0
  %v2772 = vadd.f32 0.0, %v2771
  %2773 = vmatprep.mubr.f32.mxu0 %v1232
  %2774 = vmatmul.mubr.f32.gmra.mxu0 %v600
  %v2775 = vpop.f32.mrf.mxu0
  %v2776 = vadd.f32 0.0, %v2775
  %v2777 = vpop.f32.mrf.mxu0
  %v2778 = vadd.f32 0.0, %v2777
  %2779 = vmatprep.mubr.f32.mxu0 %v1237
  %2780 = vmatmul.mubr.f32.gmra.mxu0 %v605
  %v2781 = vpop.f32.mrf.mxu0
  %v2782 = vadd.f32 0.0, %v2781
  %v2783 = vpop.f32.mrf.mxu0
  %v2784 = vadd.f32 0.0, %v2783
  %2785 = vmatprep.mubr.f32.mxu0 %v1242
  %2786 = vmatmul.mubr.f32.gmra.mxu0 %v610
  %v2787 = vpop.f32.mrf.mxu0
  %v2788 = vadd.f32 0.0, %v2787
  %v2789 = vpop.f32.mrf.mxu0
  %v2790 = vadd.f32 0.0, %v2789
  %2791 = vmatprep.mubr.f32.mxu0 %v1247
  %2792 = vmatmul.mubr.f32.gmra.mxu0 %v615
  %v2793 = vpop.f32.mrf.mxu0
  %v2794 = vadd.f32 0.0, %v2793
  %v2795 = vpop.f32.mrf.mxu0
  %v2796 = vadd.f32 0.0, %v2795
  %2797 = vmatprep.mubr.f32.mxu0 %v1252
  %2798 = vmatmul.mubr.f32.gmra.mxu0 %v620
  %v2799 = vpop.f32.mrf.mxu0
  %v2800 = vadd.f32 0.0, %v2799
  %v2801 = vpop.f32.mrf.mxu0
  %v2802 = vadd.f32 0.0, %v2801
  %2803 = vmatprep.mubr.f32.mxu0 %v1257
  %2804 = vmatmul.mubr.f32.gmra.mxu0 %v625
  %v2805 = vpop.f32.mrf.mxu0
  %v2806 = vadd.f32 0.0, %v2805
  %v2807 = vpop.f32.mrf.mxu0
  %v2808 = vadd.f32 0.0, %v2807
  %2809 = vmatprep.mubr.f32.mxu0 %v1262
  %2810 = vmatmul.mubr.f32.gmra.mxu0 %v630
  %v2811 = vpop.f32.mrf.mxu0
  %v2812 = vadd.f32 0.0, %v2811
  %v2813 = vpop.f32.mrf.mxu0
  %v2814 = vadd.f32 0.0, %v2813
  %2815 = vmatprep.mubr.f32.mxu0 %v1267
  %2816 = vmatmul.mubr.f32.gmra.mxu0 %v635
  %v2817 = vpop.f32.mrf.mxu0
  %v2818 = vadd.f32 0.0, %v2817
  %v2819 = vpop.f32.mrf.mxu0
  %v2820 = vadd.f32 0.0, %v2819
  %2821 = vmatprep.mubr.f32.mxu0 %v1272
  %2822 = vmatmul.mubr.f32.gmra.mxu0 %v640
  %v2823 = vpop.f32.mrf.mxu0
  %v2824 = vadd.f32 0.0, %v2823
  %v2825 = vpop.f32.mrf.mxu0
  %v2826 = vadd.f32 0.0, %v2825
  %2827 = vmatprep.mubr.f32.mxu0 %v1277
  %2828 = vmatmul.mubr.f32.gmra.mxu0 %v645
  %v2829 = vpop.f32.mrf.mxu0
  %v2830 = vadd.f32 0.0, %v2829
  %v2831 = vpop.f32.mrf.mxu0
  %v2832 = vadd.f32 0.0, %v2831
  %2833 = vmatprep.mubr.f32.mxu0 %v1282
  %2834 = vmatmul.mubr.f32.gmra.mxu0 %v650
  %v2835 = vpop.f32.mrf.mxu0
  %v2836 = vadd.f32 0.0, %v2835
  %v2837 = vpop.f32.mrf.mxu0
  %v2838 = vadd.f32 0.0, %v2837
  %2839 = vmatprep.mubr.f32.mxu0 %v1287
  %2840 = vmatmul.mubr.f32.gmra.mxu0 %v655
  %v2841 = vpop.f32.mrf.mxu0
  %v2842 = vadd.f32 0.0, %v2841
  %v2843 = vpop.f32.mrf.mxu0
  %v2844 = vadd.f32 0.0, %v2843
  %2845 = vmatprep.mubr.f32.mxu0 %v1292
  %2846 = vmatmul.mubr.f32.gmra.mxu0 %v660
  %v2847 = vpop.f32.mrf.mxu0
  %v2848 = vadd.f32 0.0, %v2847
  %v2849 = vpop.f32.mrf.mxu0
  %v2850 = vadd.f32 0.0, %v2849
  %2851 = vmatprep.mubr.f32.mxu0 %v1297
  %2852 = vmatmul.mubr.f32.gmra.mxu0 %v665
  %v2853 = vpop.f32.mrf.mxu0
  %v2854 = vadd.f32 0.0, %v2853
  %v2855 = vpop.f32.mrf.mxu0
  %v2856 = vadd.f32 0.0, %v2855
  %2857 = vmatprep.mubr.f32.mxu0 %v1302
  %2858 = vmatmul.mubr.f32.gmra.mxu0 %v670
  %v2859 = vpop.f32.mrf.mxu0
  %v2860 = vadd.f32 0.0, %v2859
  %v2861 = vpop.f32.mrf.mxu0
  %v2862 = vadd.f32 0.0, %v2861
  %2863 = vmatprep.mubr.f32.mxu0 %v1307
  %2864 = vmatmul.mubr.f32.gmra.mxu0 %v675
  %v2865 = vpop.f32.mrf.mxu0
  %v2866 = vadd.f32 0.0, %v2865
  %v2867 = vpop.f32.mrf.mxu0
  %v2868 = vadd.f32 0.0, %v2867
  %2869 = vmatprep.mubr.f32.mxu0 %v1312
  %2870 = vmatmul.mubr.f32.gmra.mxu0 %v680
  %v2871 = vpop.f32.mrf.mxu0
  %v2872 = vadd.f32 0.0, %v2871
  %v2873 = vpop.f32.mrf.mxu0
  %v2874 = vadd.f32 0.0, %v2873
  %2875 = vmatprep.mubr.f32.mxu0 %v1317
  %2876 = vmatmul.mubr.f32.gmra.mxu0 %v685
  %v2877 = vpop.f32.mrf.mxu0
  %v2878 = vadd.f32 0.0, %v2877
  %v2879 = vpop.f32.mrf.mxu0
  %v2880 = vadd.f32 0.0, %v2879
  %2881 = vmatprep.mubr.f32.mxu0 %v1322
  %2882 = vmatmul.mubr.f32.gmra.mxu0 %v690
  %v2883 = vpop.f32.mrf.mxu0
  %v2884 = vadd.f32 0.0, %v2883
  %v2885 = vpop.f32.mrf.mxu0
  %v2886 = vadd.f32 0.0, %v2885
  %2887 = vmatprep.mubr.f32.mxu0 %v1327
  %2888 = vmatmul.mubr.f32.gmra.mxu0 %v695
  %v2889 = vpop.f32.mrf.mxu0
  %v2890 = vadd.f32 0.0, %v2889
  %v2891 = vpop.f32.mrf.mxu0
  %v2892 = vadd.f32 0.0, %v2891
  %2893 = vmatprep.mubr.f32.mxu0 %v1332
  %2894 = vmatmul.mubr.f32.gmra.mxu0 %v700
  %v2895 = vpop.f32.mrf.mxu0
  %v2896 = vadd.f32 0.0, %v2895
  %v2897 = vpop.f32.mrf.mxu0
  %v2898 = vadd.f32 0.0, %v2897
  %2899 = vdwg.mxu0
  %2900 = vmatprep.subr.mxu0 %v2252
  %2901 = vmatpush1.msra.mxu0 %v2251
  %2902 = vmatprep.subr.mxu0 %v2246
  %2903 = vmatpush1.msra.mxu0 %v2245
  %2904 = vmatprep.subr.mxu0 %v2240
  %2905 = vmatpush1.msra.mxu0 %v2239
  %2906 = vmatprep.subr.mxu0 %v2234
  %2907 = vmatpush1.msra.mxu0 %v2233
  %2908 = vmatprep.subr.mxu0 %v2228
  %2909 = vmatpush1.msra.mxu0 %v2227
  %2910 = vmatprep.subr.mxu0 %v2222
  %2911 = vmatpush1.msra.mxu0 %v2221
  %2912 = vmatprep.subr.mxu0 %v2216
  %2913 = vmatpush1.msra.mxu0 %v2215
  %2914 = vmatprep.subr.mxu0 %v2210
  %2915 = vmatpush1.msra.mxu0 %v2209
  %2916 = vmatprep.subr.mxu0 %v2204
  %2917 = vmatpush1.msra.mxu0 %v2203
  %2918 = vmatprep.subr.mxu0 %v2198
  %2919 = vmatpush1.msra.mxu0 %v2197
  %2920 = vmatprep.subr.mxu0 %v2192
  %2921 = vmatpush1.msra.mxu0 %v2191
  %2922 = vmatprep.subr.mxu0 %v2186
  %2923 = vmatpush1.msra.mxu0 %v2185
  %2924 = vmatprep.subr.mxu0 %v2180
  %2925 = vmatpush1.msra.mxu0 %v2179
  %2926 = vmatprep.subr.mxu0 %v2174
  %2927 = vmatpush1.msra.mxu0 %v2173
  %2928 = vmatprep.subr.mxu0 %v2168
  %2929 = vmatpush1.msra.mxu0 %v2167
  %2930 = vmatprep.subr.mxu0 %v2162
  %2931 = vmatpush1.msra.mxu0 %v2161
  %2932 = vmatprep.subr.mxu0 0.0
  %2933 = vmatpush2.msra.mxu0 0.0
  %2934 = vmatprep.subr.mxu0 0.0
  %2935 = vmatpush2.msra.mxu0 0.0
  %2936 = vmatprep.subr.mxu0 0.0
  %2937 = vmatpush2.msra.mxu0 0.0
  %2938 = vmatprep.subr.mxu0 0.0
  %2939 = vmatpush2.msra.mxu0 0.0
  %2940 = vmatprep.subr.mxu0 0.0
  %2941 = vmatpush2.msra.mxu0 0.0
  %2942 = vmatprep.subr.mxu0 0.0
  %2943 = vmatpush2.msra.mxu0 0.0
  %2944 = vmatprep.subr.mxu0 0.0
  %2945 = vmatpush2.msra.mxu0 0.0
  %2946 = vmatprep.subr.mxu0 0.0
  %2947 = vmatpush2.msra.mxu0 0.0
  %2948 = vmatprep.subr.mxu0 0.0
  %2949 = vmatpush2.msra.mxu0 0.0
  %2950 = vmatprep.subr.mxu0 0.0
  %2951 = vmatpush2.msra.mxu0 0.0
  %2952 = vmatprep.subr.mxu0 0.0
  %2953 = vmatpush2.msra.mxu0 0.0
  %2954 = vmatprep.subr.mxu0 0.0
  %2955 = vmatpush2.msra.mxu0 0.0
  %2956 = vmatprep.subr.mxu0 0.0
  %2957 = vmatpush2.msra.mxu0 0.0
  %2958 = vmatprep.subr.mxu0 0.0
  %2959 = vmatpush2.msra.mxu0 0.0
  %2960 = vmatprep.subr.mxu0 0.0
  %2961 = vmatpush2.msra.mxu0 0.0
  %2962 = vmatprep.subr.mxu0 0.0
  %2963 = vmatpush2.msra.mxu0 0.0
  %2964 = vmatprep.mubr.f32.mxu0 0.0
  %2965 = vmatmul.mubr.f32.gmra.mxu0 %v1844
  %v2966 = vpop.f32.mrf.mxu0
  %v2967 = vadd.f32 %v2752, %v2966
  %v2968 = vpop.f32.mrf.mxu0
  %v2969 = vadd.f32 %v2754, %v2968
  %2970 = vmatprep.mubr.f32.mxu0 0.0
  %2971 = vmatmul.mubr.f32.gmra.mxu0 %v1849
  %v2972 = vpop.f32.mrf.mxu0
  %v2973 = vadd.f32 %v2758, %v2972
  %v2974 = vpop.f32.mrf.mxu0
  %v2975 = vadd.f32 %v2760, %v2974
  %2976 = vmatprep.mubr.f32.mxu0 0.0
  %2977 = vmatmul.mubr.f32.gmra.mxu0 %v1854
  %v2978 = vpop.f32.mrf.mxu0
  %v2979 = vadd.f32 %v2764, %v2978
  %v2980 = vpop.f32.mrf.mxu0
  %v2981 = vadd.f32 %v2766, %v2980
  %2982 = vmatprep.mubr.f32.mxu0 0.0
  %2983 = vmatmul.mubr.f32.gmra.mxu0 %v1859
  %v2984 = vpop.f32.mrf.mxu0
  %v2985 = vadd.f32 %v2770, %v2984
  %v2986 = vpop.f32.mrf.mxu0
  %v2987 = vadd.f32 %v2772, %v2986
  %2988 = vmatprep.mubr.f32.mxu0 0.0
  %2989 = vmatmul.mubr.f32.gmra.mxu0 %v1864
  %v2990 = vpop.f32.mrf.mxu0
  %v2991 = vadd.f32 %v2776, %v2990
  %v2992 = vpop.f32.mrf.mxu0
  %v2993 = vadd.f32 %v2778, %v2992
  %2994 = vmatprep.mubr.f32.mxu0 0.0
  %2995 = vmatmul.mubr.f32.gmra.mxu0 %v1869
  %v2996 = vpop.f32.mrf.mxu0
  %v2997 = vadd.f32 %v2782, %v2996
  %v2998 = vpop.f32.mrf.mxu0
  %v2999 = vadd.f32 %v2784, %v2998
  %3000 = vmatprep.mubr.f32.mxu0 0.0
  %3001 = vmatmul.mubr.f32.gmra.mxu0 %v1874
  %v3002 = vpop.f32.mrf.mxu0
  %v3003 = vadd.f32 %v2788, %v3002
  %v3004 = vpop.f32.mrf.mxu0
  %v3005 = vadd.f32 %v2790, %v3004
  %3006 = vmatprep.mubr.f32.mxu0 0.0
  %3007 = vmatmul.mubr.f32.gmra.mxu0 %v1879
  %v3008 = vpop.f32.mrf.mxu0
  %v3009 = vadd.f32 %v2794, %v3008
  %v3010 = vpop.f32.mrf.mxu0
  %v3011 = vadd.f32 %v2796, %v3010
  %3012 = vmatprep.mubr.f32.mxu0 0.0
  %3013 = vmatmul.mubr.f32.gmra.mxu0 %v1884
  %v3014 = vpop.f32.mrf.mxu0
  %v3015 = vadd.f32 %v2800, %v3014
  %v3016 = vpop.f32.mrf.mxu0
  %v3017 = vadd.f32 %v2802, %v3016
  %3018 = vmatprep.mubr.f32.mxu0 0.0
  %3019 = vmatmul.mubr.f32.gmra.mxu0 %v1889
  %v3020 = vpop.f32.mrf.mxu0
  %v3021 = vadd.f32 %v2806, %v3020
  %v3022 = vpop.f32.mrf.mxu0
  %v3023 = vadd.f32 %v2808, %v3022
  %3024 = vmatprep.mubr.f32.mxu0 0.0
  %3025 = vmatmul.mubr.f32.gmra.mxu0 %v1894
  %v3026 = vpop.f32.mrf.mxu0
  %v3027 = vadd.f32 %v2812, %v3026
  %v3028 = vpop.f32.mrf.mxu0
  %v3029 = vadd.f32 %v2814, %v3028
  %3030 = vmatprep.mubr.f32.mxu0 0.0
  %3031 = vmatmul.mubr.f32.gmra.mxu0 %v1899
  %v3032 = vpop.f32.mrf.mxu0
  %v3033 = vadd.f32 %v2818, %v3032
  %v3034 = vpop.f32.mrf.mxu0
  %v3035 = vadd.f32 %v2820, %v3034
  %3036 = vmatprep.mubr.f32.mxu0 0.0
  %3037 = vmatmul.mubr.f32.gmra.mxu0 %v1904
  %v3038 = vpop.f32.mrf.mxu0
  %v3039 = vadd.f32 %v2824, %v3038
  %v3040 = vpop.f32.mrf.mxu0
  %v3041 = vadd.f32 %v2826, %v3040
  %3042 = vmatprep.mubr.f32.mxu0 0.0
  %3043 = vmatmul.mubr.f32.gmra.mxu0 %v1909
  %v3044 = vpop.f32.mrf.mxu0
  %v3045 = vadd.f32 %v2830, %v3044
  %v3046 = vpop.f32.mrf.mxu0
  %v3047 = vadd.f32 %v2832, %v3046
  %3048 = vmatprep.mubr.f32.mxu0 0.0
  %3049 = vmatmul.mubr.f32.gmra.mxu0 %v1914
  %v3050 = vpop.f32.mrf.mxu0
  %v3051 = vadd.f32 %v2836, %v3050
  %v3052 = vpop.f32.mrf.mxu0
  %v3053 = vadd.f32 %v2838, %v3052
  %3054 = vmatprep.mubr.f32.mxu0 0.0
  %3055 = vmatmul.mubr.f32.gmra.mxu0 %v1919
  %v3056 = vpop.f32.mrf.mxu0
  %v3057 = vadd.f32 %v2842, %v3056
  %v3058 = vpop.f32.mrf.mxu0
  %v3059 = vadd.f32 %v2844, %v3058
  %3060 = vmatprep.mubr.f32.mxu0 0.0
  %3061 = vmatmul.mubr.f32.gmra.mxu0 %v1924
  %v3062 = vpop.f32.mrf.mxu0
  %v3063 = vadd.f32 %v2848, %v3062
  %v3064 = vpop.f32.mrf.mxu0
  %v3065 = vadd.f32 %v2850, %v3064
  %3066 = vmatprep.mubr.f32.mxu0 0.0
  %3067 = vmatmul.mubr.f32.gmra.mxu0 %v1929
  %v3068 = vpop.f32.mrf.mxu0
  %v3069 = vadd.f32 %v2854, %v3068
  %v3070 = vpop.f32.mrf.mxu0
  %v3071 = vadd.f32 %v2856, %v3070
  %3072 = vmatprep.mubr.f32.mxu0 0.0
  %3073 = vmatmul.mubr.f32.gmra.mxu0 %v1934
  %v3074 = vpop.f32.mrf.mxu0
  %v3075 = vadd.f32 %v2860, %v3074
  %v3076 = vpop.f32.mrf.mxu0
  %v3077 = vadd.f32 %v2862, %v3076
  %3078 = vmatprep.mubr.f32.mxu0 0.0
  %3079 = vmatmul.mubr.f32.gmra.mxu0 %v1939
  %v3080 = vpop.f32.mrf.mxu0
  %v3081 = vadd.f32 %v2866, %v3080
  %v3082 = vpop.f32.mrf.mxu0
  %v3083 = vadd.f32 %v2868, %v3082
  %3084 = vmatprep.mubr.f32.mxu0 0.0
  %3085 = vmatmul.mubr.f32.gmra.mxu0 %v1944
  %v3086 = vpop.f32.mrf.mxu0
  %v3087 = vadd.f32 %v2872, %v3086
  %v3088 = vpop.f32.mrf.mxu0
  %v3089 = vadd.f32 %v2874, %v3088
  %3090 = vmatprep.mubr.f32.mxu0 0.0
  %3091 = vmatmul.mubr.f32.gmra.mxu0 %v1949
  %v3092 = vpop.f32.mrf.mxu0
  %v3093 = vadd.f32 %v2878, %v3092
  %v3094 = vpop.f32.mrf.mxu0
  %v3095 = vadd.f32 %v2880, %v3094
  %3096 = vmatprep.mubr.f32.mxu0 0.0
  %3097 = vmatmul.mubr.f32.gmra.mxu0 %v1954
  %v3098 = vpop.f32.mrf.mxu0
  %v3099 = vadd.f32 %v2884, %v3098
  %v3100 = vpop.f32.mrf.mxu0
  %v3101 = vadd.f32 %v2886, %v3100
  %3102 = vmatprep.mubr.f32.mxu0 0.0
  %3103 = vmatmul.mubr.f32.gmra.mxu0 %v1959
  %v3104 = vpop.f32.mrf.mxu0
  %v3105 = vadd.f32 %v2890, %v3104
  %v3106 = vpop.f32.mrf.mxu0
  %v3107 = vadd.f32 %v2892, %v3106
  %3108 = vmatprep.mubr.f32.mxu0 0.0
  %3109 = vmatmul.mubr.f32.gmra.mxu0 %v1964
  %v3110 = vpop.f32.mrf.mxu0
  %v3111 = vadd.f32 %v2896, %v3110
  %v3112 = vpop.f32.mrf.mxu0
  %v3113 = vadd.f32 %v2898, %v3112
  %3114 = vdwg.mxu0
  %3115 = vmatprep.subr.mxu0 %v2062
  %3116 = vmatpush1.msra.mxu0 %v2061
  %3117 = vmatprep.subr.mxu0 %v2056
  %3118 = vmatpush1.msra.mxu0 %v2055
  %3119 = vmatprep.subr.mxu0 %v2050
  %3120 = vmatpush1.msra.mxu0 %v2049
  %3121 = vmatprep.subr.mxu0 %v2044
  %3122 = vmatpush1.msra.mxu0 %v2043
  %3123 = vmatprep.subr.mxu0 %v2038
  %3124 = vmatpush1.msra.mxu0 %v2037
  %3125 = vmatprep.subr.mxu0 %v2032
  %3126 = vmatpush1.msra.mxu0 %v2031
  %3127 = vmatprep.subr.mxu0 %v2026
  %3128 = vmatpush1.msra.mxu0 %v2025
  %3129 = vmatprep.subr.mxu0 %v2020
  %3130 = vmatpush1.msra.mxu0 %v2019
  %3131 = vmatprep.subr.mxu0 %v2014
  %3132 = vmatpush1.msra.mxu0 %v2013
  %3133 = vmatprep.subr.mxu0 %v2008
  %3134 = vmatpush1.msra.mxu0 %v2007
  %3135 = vmatprep.subr.mxu0 %v2002
  %3136 = vmatpush1.msra.mxu0 %v2001
  %3137 = vmatprep.subr.mxu0 %v1996
  %3138 = vmatpush1.msra.mxu0 %v1995
  %3139 = vmatprep.subr.mxu0 %v1990
  %3140 = vmatpush1.msra.mxu0 %v1989
  %3141 = vmatprep.subr.mxu0 %v1984
  %3142 = vmatpush1.msra.mxu0 %v1983
  %3143 = vmatprep.subr.mxu0 %v1978
  %3144 = vmatpush1.msra.mxu0 %v1977
  %3145 = vmatprep.subr.mxu0 %v1972
  %3146 = vmatpush1.msra.mxu0 %v1971
  %3147 = vmatprep.subr.mxu0 %v2158
  %3148 = vmatpush2.msra.mxu0 %v2157
  %3149 = vmatprep.subr.mxu0 %v2152
  %3150 = vmatpush2.msra.mxu0 %v2151
  %3151 = vmatprep.subr.mxu0 %v2146
  %3152 = vmatpush2.msra.mxu0 %v2145
  %3153 = vmatprep.subr.mxu0 %v2140
  %3154 = vmatpush2.msra.mxu0 %v2139
  %3155 = vmatprep.subr.mxu0 %v2134
  %3156 = vmatpush2.msra.mxu0 %v2133
  %3157 = vmatprep.subr.mxu0 %v2128
  %3158 = vmatpush2.msra.mxu0 %v2127
  %3159 = vmatprep.subr.mxu0 %v2122
  %3160 = vmatpush2.msra.mxu0 %v2121
  %3161 = vmatprep.subr.mxu0 %v2116
  %3162 = vmatpush2.msra.mxu0 %v2115
  %3163 = vmatprep.subr.mxu0 %v2110
  %3164 = vmatpush2.msra.mxu0 %v2109
  %3165 = vmatprep.subr.mxu0 %v2104
  %3166 = vmatpush2.msra.mxu0 %v2103
  %3167 = vmatprep.subr.mxu0 %v2098
  %3168 = vmatpush2.msra.mxu0 %v2097
  %3169 = vmatprep.subr.mxu0 %v2092
  %3170 = vmatpush2.msra.mxu0 %v2091
  %3171 = vmatprep.subr.mxu0 %v2086
  %3172 = vmatpush2.msra.mxu0 %v2085
  %3173 = vmatprep.subr.mxu0 %v2080
  %3174 = vmatpush2.msra.mxu0 %v2079
  %3175 = vmatprep.subr.mxu0 %v2074
  %3176 = vmatpush2.msra.mxu0 %v2073
  %3177 = vmatprep.subr.mxu0 %v2068
  %3178 = vmatpush2.msra.mxu0 %v2067
  %3179 = vmatprep.mubr.f32.mxu0 %v1212
  %3180 = vmatmul.mubr.f32.gmra.mxu0 %v580
  %v3181 = vpop.f32.mrf.mxu0
  %v3182 = vadd.f32 0.0, %v3181
  %v3183 = vpop.f32.mrf.mxu0
  %v3184 = vadd.f32 0.0, %v3183
  %3185 = vmatprep.mubr.f32.mxu0 %v1217
  %3186 = vmatmul.mubr.f32.gmra.mxu0 %v585
  %v3187 = vpop.f32.mrf.mxu0
  %v3188 = vadd.f32 0.0, %v3187
  %v3189 = vpop.f32.mrf.mxu0
  %v3190 = vadd.f32 0.0, %v3189
  %3191 = vmatprep.mubr.f32.mxu0 %v1222
  %3192 = vmatmul.mubr.f32.gmra.mxu0 %v590
  %v3193 = vpop.f32.mrf.mxu0
  %v3194 = vadd.f32 0.0, %v3193
  %v3195 = vpop.f32.mrf.mxu0
  %v3196 = vadd.f32 0.0, %v3195
  %3197 = vmatprep.mubr.f32.mxu0 %v1227
  %3198 = vmatmul.mubr.f32.gmra.mxu0 %v595
  %v3199 = vpop.f32.mrf.mxu0
  %v3200 = vadd.f32 0.0, %v3199
  %v3201 = vpop.f32.mrf.mxu0
  %v3202 = vadd.f32 0.0, %v3201
  %3203 = vmatprep.mubr.f32.mxu0 %v1232
  %3204 = vmatmul.mubr.f32.gmra.mxu0 %v600
  %v3205 = vpop.f32.mrf.mxu0
  %v3206 = vadd.f32 0.0, %v3205
  %v3207 = vpop.f32.mrf.mxu0
  %v3208 = vadd.f32 0.0, %v3207
  %3209 = vmatprep.mubr.f32.mxu0 %v1237
  %3210 = vmatmul.mubr.f32.gmra.mxu0 %v605
  %v3211 = vpop.f32.mrf.mxu0
  %v3212 = vadd.f32 0.0, %v3211
  %v3213 = vpop.f32.mrf.mxu0
  %v3214 = vadd.f32 0.0, %v3213
  %3215 = vmatprep.mubr.f32.mxu0 %v1242
  %3216 = vmatmul.mubr.f32.gmra.mxu0 %v610
  %v3217 = vpop.f32.mrf.mxu0
  %v3218 = vadd.f32 0.0, %v3217
  %v3219 = vpop.f32.mrf.mxu0
  %v3220 = vadd.f32 0.0, %v3219
  %3221 = vmatprep.mubr.f32.mxu0 %v1247
  %3222 = vmatmul.mubr.f32.gmra.mxu0 %v615
  %v3223 = vpop.f32.mrf.mxu0
  %v3224 = vadd.f32 0.0, %v3223
  %v3225 = vpop.f32.mrf.mxu0
  %v3226 = vadd.f32 0.0, %v3225
  %3227 = vmatprep.mubr.f32.mxu0 %v1252
  %3228 = vmatmul.mubr.f32.gmra.mxu0 %v620
  %v3229 = vpop.f32.mrf.mxu0
  %v3230 = vadd.f32 0.0, %v3229
  %v3231 = vpop.f32.mrf.mxu0
  %v3232 = vadd.f32 0.0, %v3231
  %3233 = vmatprep.mubr.f32.mxu0 %v1257
  %3234 = vmatmul.mubr.f32.gmra.mxu0 %v625
  %v3235 = vpop.f32.mrf.mxu0
  %v3236 = vadd.f32 0.0, %v3235
  %v3237 = vpop.f32.mrf.mxu0
  %v3238 = vadd.f32 0.0, %v3237
  %3239 = vmatprep.mubr.f32.mxu0 %v1262
  %3240 = vmatmul.mubr.f32.gmra.mxu0 %v630
  %v3241 = vpop.f32.mrf.mxu0
  %v3242 = vadd.f32 0.0, %v3241
  %v3243 = vpop.f32.mrf.mxu0
  %v3244 = vadd.f32 0.0, %v3243
  %3245 = vmatprep.mubr.f32.mxu0 %v1267
  %3246 = vmatmul.mubr.f32.gmra.mxu0 %v635
  %v3247 = vpop.f32.mrf.mxu0
  %v3248 = vadd.f32 0.0, %v3247
  %v3249 = vpop.f32.mrf.mxu0
  %v3250 = vadd.f32 0.0, %v3249
  %3251 = vmatprep.mubr.f32.mxu0 %v1272
  %3252 = vmatmul.mubr.f32.gmra.mxu0 %v640
  %v3253 = vpop.f32.mrf.mxu0
  %v3254 = vadd.f32 0.0, %v3253
  %v3255 = vpop.f32.mrf.mxu0
  %v3256 = vadd.f32 0.0, %v3255
  %3257 = vmatprep.mubr.f32.mxu0 %v1277
  %3258 = vmatmul.mubr.f32.gmra.mxu0 %v645
  %v3259 = vpop.f32.mrf.mxu0
  %v3260 = vadd.f32 0.0, %v3259
  %v3261 = vpop.f32.mrf.mxu0
  %v3262 = vadd.f32 0.0, %v3261
  %3263 = vmatprep.mubr.f32.mxu0 %v1282
  %3264 = vmatmul.mubr.f32.gmra.mxu0 %v650
  %v3265 = vpop.f32.mrf.mxu0
  %v3266 = vadd.f32 0.0, %v3265
  %v3267 = vpop.f32.mrf.mxu0
  %v3268 = vadd.f32 0.0, %v3267
  %3269 = vmatprep.mubr.f32.mxu0 %v1287
  %3270 = vmatmul.mubr.f32.gmra.mxu0 %v655
  %v3271 = vpop.f32.mrf.mxu0
  %v3272 = vadd.f32 0.0, %v3271
  %v3273 = vpop.f32.mrf.mxu0
  %v3274 = vadd.f32 0.0, %v3273
  %3275 = vmatprep.mubr.f32.mxu0 %v1292
  %3276 = vmatmul.mubr.f32.gmra.mxu0 %v660
  %v3277 = vpop.f32.mrf.mxu0
  %v3278 = vadd.f32 0.0, %v3277
  %v3279 = vpop.f32.mrf.mxu0
  %v3280 = vadd.f32 0.0, %v3279
  %3281 = vmatprep.mubr.f32.mxu0 %v1297
  %3282 = vmatmul.mubr.f32.gmra.mxu0 %v665
  %v3283 = vpop.f32.mrf.mxu0
  %v3284 = vadd.f32 0.0, %v3283
  %v3285 = vpop.f32.mrf.mxu0
  %v3286 = vadd.f32 0.0, %v3285
  %3287 = vmatprep.mubr.f32.mxu0 %v1302
  %3288 = vmatmul.mubr.f32.gmra.mxu0 %v670
  %v3289 = vpop.f32.mrf.mxu0
  %v3290 = vadd.f32 0.0, %v3289
  %v3291 = vpop.f32.mrf.mxu0
  %v3292 = vadd.f32 0.0, %v3291
  %3293 = vmatprep.mubr.f32.mxu0 %v1307
  %3294 = vmatmul.mubr.f32.gmra.mxu0 %v675
  %v3295 = vpop.f32.mrf.mxu0
  %v3296 = vadd.f32 0.0, %v3295
  %v3297 = vpop.f32.mrf.mxu0
  %v3298 = vadd.f32 0.0, %v3297
  %3299 = vmatprep.mubr.f32.mxu0 %v1312
  %3300 = vmatmul.mubr.f32.gmra.mxu0 %v680
  %v3301 = vpop.f32.mrf.mxu0
  %v3302 = vadd.f32 0.0, %v3301
  %v3303 = vpop.f32.mrf.mxu0
  %v3304 = vadd.f32 0.0, %v3303
  %3305 = vmatprep.mubr.f32.mxu0 %v1317
  %3306 = vmatmul.mubr.f32.gmra.mxu0 %v685
  %v3307 = vpop.f32.mrf.mxu0
  %v3308 = vadd.f32 0.0, %v3307
  %v3309 = vpop.f32.mrf.mxu0
  %v3310 = vadd.f32 0.0, %v3309
  %3311 = vmatprep.mubr.f32.mxu0 %v1322
  %3312 = vmatmul.mubr.f32.gmra.mxu0 %v690
  %v3313 = vpop.f32.mrf.mxu0
  %v3314 = vadd.f32 0.0, %v3313
  %v3315 = vpop.f32.mrf.mxu0
  %v3316 = vadd.f32 0.0, %v3315
  %3317 = vmatprep.mubr.f32.mxu0 %v1327
  %3318 = vmatmul.mubr.f32.gmra.mxu0 %v695
  %v3319 = vpop.f32.mrf.mxu0
  %v3320 = vadd.f32 0.0, %v3319
  %v3321 = vpop.f32.mrf.mxu0
  %v3322 = vadd.f32 0.0, %v3321
  %3323 = vmatprep.mubr.f32.mxu0 %v1332
  %3324 = vmatmul.mubr.f32.gmra.mxu0 %v700
  %v3325 = vpop.f32.mrf.mxu0
  %v3326 = vadd.f32 0.0, %v3325
  %v3327 = vpop.f32.mrf.mxu0
  %v3328 = vadd.f32 0.0, %v3327
  %3329 = vdwg.mxu0
  %3330 = vmatprep.subr.mxu0 %v2254
  %3331 = vmatpush1.msra.mxu0 %v2253
  %3332 = vmatprep.subr.mxu0 %v2248
  %3333 = vmatpush1.msra.mxu0 %v2247
  %3334 = vmatprep.subr.mxu0 %v2242
  %3335 = vmatpush1.msra.mxu0 %v2241
  %3336 = vmatprep.subr.mxu0 %v2236
  %3337 = vmatpush1.msra.mxu0 %v2235
  %3338 = vmatprep.subr.mxu0 %v2230
  %3339 = vmatpush1.msra.mxu0 %v2229
  %3340 = vmatprep.subr.mxu0 %v2224
  %3341 = vmatpush1.msra.mxu0 %v2223
  %3342 = vmatprep.subr.mxu0 %v2218
  %3343 = vmatpush1.msra.mxu0 %v2217
  %3344 = vmatprep.subr.mxu0 %v2212
  %3345 = vmatpush1.msra.mxu0 %v2211
  %3346 = vmatprep.subr.mxu0 %v2206
  %3347 = vmatpush1.msra.mxu0 %v2205
  %3348 = vmatprep.subr.mxu0 %v2200
  %3349 = vmatpush1.msra.mxu0 %v2199
  %3350 = vmatprep.subr.mxu0 %v2194
  %3351 = vmatpush1.msra.mxu0 %v2193
  %3352 = vmatprep.subr.mxu0 %v2188
  %3353 = vmatpush1.msra.mxu0 %v2187
  %3354 = vmatprep.subr.mxu0 %v2182
  %3355 = vmatpush1.msra.mxu0 %v2181
  %3356 = vmatprep.subr.mxu0 %v2176
  %3357 = vmatpush1.msra.mxu0 %v2175
  %3358 = vmatprep.subr.mxu0 %v2170
  %3359 = vmatpush1.msra.mxu0 %v2169
  %3360 = vmatprep.subr.mxu0 %v2164
  %3361 = vmatpush1.msra.mxu0 %v2163
  %3362 = vmatprep.subr.mxu0 0.0
  %3363 = vmatpush2.msra.mxu0 0.0
  %3364 = vmatprep.subr.mxu0 0.0
  %3365 = vmatpush2.msra.mxu0 0.0
  %3366 = vmatprep.subr.mxu0 0.0
  %3367 = vmatpush2.msra.mxu0 0.0
  %3368 = vmatprep.subr.mxu0 0.0
  %3369 = vmatpush2.msra.mxu0 0.0
  %3370 = vmatprep.subr.mxu0 0.0
  %3371 = vmatpush2.msra.mxu0 0.0
  %3372 = vmatprep.subr.mxu0 0.0
  %3373 = vmatpush2.msra.mxu0 0.0
  %3374 = vmatprep.subr.mxu0 0.0
  %3375 = vmatpush2.msra.mxu0 0.0
  %3376 = vmatprep.subr.mxu0 0.0
  %3377 = vmatpush2.msra.mxu0 0.0
  %3378 = vmatprep.subr.mxu0 0.0
  %3379 = vmatpush2.msra.mxu0 0.0
  %3380 = vmatprep.subr.mxu0 0.0
  %3381 = vmatpush2.msra.mxu0 0.0
  %3382 = vmatprep.subr.mxu0 0.0
  %3383 = vmatpush2.msra.mxu0 0.0
  %3384 = vmatprep.subr.mxu0 0.0
  %3385 = vmatpush2.msra.mxu0 0.0
  %3386 = vmatprep.subr.mxu0 0.0
  %3387 = vmatpush2.msra.mxu0 0.0
  %3388 = vmatprep.subr.mxu0 0.0
  %3389 = vmatpush2.msra.mxu0 0.0
  %3390 = vmatprep.subr.mxu0 0.0
  %3391 = vmatpush2.msra.mxu0 0.0
  %3392 = vmatprep.subr.mxu0 0.0
  %3393 = vmatpush2.msra.mxu0 0.0
  %3394 = vmatprep.mubr.f32.mxu0 0.0
  %3395 = vmatmul.mubr.f32.gmra.mxu0 %v1844
  %v3396 = vpop.f32.mrf.mxu0
  %v3397 = vadd.f32 %v3182, %v3396
  %v3398 = vpop.f32.mrf.mxu0
  %v3399 = vadd.f32 %v3184, %v3398
  %3400 = vmatprep.mubr.f32.mxu0 0.0
  %3401 = vmatmul.mubr.f32.gmra.mxu0 %v1849
  %v3402 = vpop.f32.mrf.mxu0
  %v3403 = vadd.f32 %v3188, %v3402
  %v3404 = vpop.f32.mrf.mxu0
  %v3405 = vadd.f32 %v3190, %v3404
  %3406 = vmatprep.mubr.f32.mxu0 0.0
  %3407 = vmatmul.mubr.f32.gmra.mxu0 %v1854
  %v3408 = vpop.f32.mrf.mxu0
  %v3409 = vadd.f32 %v3194, %v3408
  %v3410 = vpop.f32.mrf.mxu0
  %v3411 = vadd.f32 %v3196, %v3410
  %3412 = vmatprep.mubr.f32.mxu0 0.0
  %3413 = vmatmul.mubr.f32.gmra.mxu0 %v1859
  %v3414 = vpop.f32.mrf.mxu0
  %v3415 = vadd.f32 %v3200, %v3414
  %v3416 = vpop.f32.mrf.mxu0
  %v3417 = vadd.f32 %v3202, %v3416
  %3418 = vmatprep.mubr.f32.mxu0 0.0
  %3419 = vmatmul.mubr.f32.gmra.mxu0 %v1864
  %v3420 = vpop.f32.mrf.mxu0
  %v3421 = vadd.f32 %v3206, %v3420
  %v3422 = vpop.f32.mrf.mxu0
  %v3423 = vadd.f32 %v3208, %v3422
  %3424 = vmatprep.mubr.f32.mxu0 0.0
  %3425 = vmatmul.mubr.f32.gmra.mxu0 %v1869
  %v3426 = vpop.f32.mrf.mxu0
  %v3427 = vadd.f32 %v3212, %v3426
  %v3428 = vpop.f32.mrf.mxu0
  %v3429 = vadd.f32 %v3214, %v3428
  %3430 = vmatprep.mubr.f32.mxu0 0.0
  %3431 = vmatmul.mubr.f32.gmra.mxu0 %v1874
  %v3432 = vpop.f32.mrf.mxu0
  %v3433 = vadd.f32 %v3218, %v3432
  %v3434 = vpop.f32.mrf.mxu0
  %v3435 = vadd.f32 %v3220, %v3434
  %3436 = vmatprep.mubr.f32.mxu0 0.0
  %3437 = vmatmul.mubr.f32.gmra.mxu0 %v1879
  %v3438 = vpop.f32.mrf.mxu0
  %v3439 = vadd.f32 %v3224, %v3438
  %v3440 = vpop.f32.mrf.mxu0
  %v3441 = vadd.f32 %v3226, %v3440
  %3442 = vmatprep.mubr.f32.mxu0 0.0
  %3443 = vmatmul.mubr.f32.gmra.mxu0 %v1884
  %v3444 = vpop.f32.mrf.mxu0
  %v3445 = vadd.f32 %v3230, %v3444
  %v3446 = vpop.f32.mrf.mxu0
  %v3447 = vadd.f32 %v3232, %v3446
  %3448 = vmatprep.mubr.f32.mxu0 0.0
  %3449 = vmatmul.mubr.f32.gmra.mxu0 %v1889
  %v3450 = vpop.f32.mrf.mxu0
  %v3451 = vadd.f32 %v3236, %v3450
  %v3452 = vpop.f32.mrf.mxu0
  %v3453 = vadd.f32 %v3238, %v3452
  %3454 = vmatprep.mubr.f32.mxu0 0.0
  %3455 = vmatmul.mubr.f32.gmra.mxu0 %v1894
  %v3456 = vpop.f32.mrf.mxu0
  %v3457 = vadd.f32 %v3242, %v3456
  %v3458 = vpop.f32.mrf.mxu0
  %v3459 = vadd.f32 %v3244, %v3458
  %3460 = vmatprep.mubr.f32.mxu0 0.0
  %3461 = vmatmul.mubr.f32.gmra.mxu0 %v1899
  %v3462 = vpop.f32.mrf.mxu0
  %v3463 = vadd.f32 %v3248, %v3462
  %v3464 = vpop.f32.mrf.mxu0
  %v3465 = vadd.f32 %v3250, %v3464
  %3466 = vmatprep.mubr.f32.mxu0 0.0
  %3467 = vmatmul.mubr.f32.gmra.mxu0 %v1904
  %v3468 = vpop.f32.mrf.mxu0
  %v3469 = vadd.f32 %v3254, %v3468
  %v3470 = vpop.f32.mrf.mxu0
  %v3471 = vadd.f32 %v3256, %v3470
  %3472 = vmatprep.mubr.f32.mxu0 0.0
  %3473 = vmatmul.mubr.f32.gmra.mxu0 %v1909
  %v3474 = vpop.f32.mrf.mxu0
  %v3475 = vadd.f32 %v3260, %v3474
  %v3476 = vpop.f32.mrf.mxu0
  %v3477 = vadd.f32 %v3262, %v3476
  %3478 = vmatprep.mubr.f32.mxu0 0.0
  %3479 = vmatmul.mubr.f32.gmra.mxu0 %v1914
  %v3480 = vpop.f32.mrf.mxu0
  %v3481 = vadd.f32 %v3266, %v3480
  %v3482 = vpop.f32.mrf.mxu0
  %v3483 = vadd.f32 %v3268, %v3482
  %3484 = vmatprep.mubr.f32.mxu0 0.0
  %3485 = vmatmul.mubr.f32.gmra.mxu0 %v1919
  %v3486 = vpop.f32.mrf.mxu0
  %v3487 = vadd.f32 %v3272, %v3486
  %v3488 = vpop.f32.mrf.mxu0
  %v3489 = vadd.f32 %v3274, %v3488
  %3490 = vmatprep.mubr.f32.mxu0 0.0
  %3491 = vmatmul.mubr.f32.gmra.mxu0 %v1924
  %v3492 = vpop.f32.mrf.mxu0
  %v3493 = vadd.f32 %v3278, %v3492
  %v3494 = vpop.f32.mrf.mxu0
  %v3495 = vadd.f32 %v3280, %v3494
  %3496 = vmatprep.mubr.f32.mxu0 0.0
  %3497 = vmatmul.mubr.f32.gmra.mxu0 %v1929
  %v3498 = vpop.f32.mrf.mxu0
  %v3499 = vadd.f32 %v3284, %v3498
  %v3500 = vpop.f32.mrf.mxu0
  %v3501 = vadd.f32 %v3286, %v3500
  %3502 = vmatprep.mubr.f32.mxu0 0.0
  %3503 = vmatmul.mubr.f32.gmra.mxu0 %v1934
  %v3504 = vpop.f32.mrf.mxu0
  %v3505 = vadd.f32 %v3290, %v3504
  %v3506 = vpop.f32.mrf.mxu0
  %v3507 = vadd.f32 %v3292, %v3506
  %3508 = vmatprep.mubr.f32.mxu0 0.0
  %3509 = vmatmul.mubr.f32.gmra.mxu0 %v1939
  %v3510 = vpop.f32.mrf.mxu0
  %v3511 = vadd.f32 %v3296, %v3510
  %v3512 = vpop.f32.mrf.mxu0
  %v3513 = vadd.f32 %v3298, %v3512
  %3514 = vmatprep.mubr.f32.mxu0 0.0
  %3515 = vmatmul.mubr.f32.gmra.mxu0 %v1944
  %v3516 = vpop.f32.mrf.mxu0
  %v3517 = vadd.f32 %v3302, %v3516
  %v3518 = vpop.f32.mrf.mxu0
  %v3519 = vadd.f32 %v3304, %v3518
  %3520 = vmatprep.mubr.f32.mxu0 0.0
  %3521 = vmatmul.mubr.f32.gmra.mxu0 %v1949
  %v3522 = vpop.f32.mrf.mxu0
  %v3523 = vadd.f32 %v3308, %v3522
  %v3524 = vpop.f32.mrf.mxu0
  %v3525 = vadd.f32 %v3310, %v3524
  %3526 = vmatprep.mubr.f32.mxu0 0.0
  %3527 = vmatmul.mubr.f32.gmra.mxu0 %v1954
  %v3528 = vpop.f32.mrf.mxu0
  %v3529 = vadd.f32 %v3314, %v3528
  %v3530 = vpop.f32.mrf.mxu0
  %v3531 = vadd.f32 %v3316, %v3530
  %3532 = vmatprep.mubr.f32.mxu0 0.0
  %3533 = vmatmul.mubr.f32.gmra.mxu0 %v1959
  %v3534 = vpop.f32.mrf.mxu0
  %v3535 = vadd.f32 %v3320, %v3534
  %v3536 = vpop.f32.mrf.mxu0
  %v3537 = vadd.f32 %v3322, %v3536
  %3538 = vmatprep.mubr.f32.mxu0 0.0
  %3539 = vmatmul.mubr.f32.gmra.mxu0 %v1964
  %v3540 = vpop.f32.mrf.mxu0
  %v3541 = vadd.f32 %v3326, %v3540
  %v3542 = vpop.f32.mrf.mxu0
  %v3543 = vadd.f32 %v3328, %v3542
  %3544 = vdwg.mxu0
  %s3545 = scalar_lea.vmem %s1, 2400
  %v3546 = vld [vmem:[%s3545] sm:$0xff]
  %v3547 = vld [vmem:[%s3545 + $0x8] sm:$0xff]
  %v3548 = vld [vmem:[%s3545 + $0x10] sm:$0xff]
  %v3549 = vld [vmem:[%s3545 + $0x18] sm:$0xff]
  %v3550 = vld [vmem:[%s3545 + $0x20] sm:$0xff]
  %v3551 = vld [vmem:[%s3545 + $0x28] sm:$0xff]
  %v3552 = vld [vmem:[%s3545 + $0x30] sm:$0xff]
  %v3553 = vld [vmem:[%s3545 + $0x38] sm:$0xff]
  %v3554 = vld [vmem:[%s3545 + $0x40] sm:$0xff]
  %v3555 = vld [vmem:[%s3545 + $0x48] sm:$0xff]
  %v3556 = vld [vmem:[%s3545 + $0x50] sm:$0xff]
  %v3557 = vld [vmem:[%s3545 + $0x58] sm:$0xff]
  %v3558 = vld [vmem:[%s3545 + $0x60] sm:$0xff]
  %v3559 = vld [vmem:[%s3545 + $0x68] sm:$0xff]
  %v3560 = vld [vmem:[%s3545 + $0x70] sm:$0xff]
  %v3561 = vld [vmem:[%s3545 + $0x78] sm:$0xff]
  %v3562 = vld [vmem:[%s3545 + $0x80] sm:$0xff]
  %v3563 = vld [vmem:[%s3545 + $0x88] sm:$0xff]
  %v3564 = vld [vmem:[%s3545 + $0x90] sm:$0xff]
  %v3565 = vld [vmem:[%s3545 + $0x98] sm:$0xff]
  %v3566 = vld [vmem:[%s3545 + $0xa0] sm:$0xff]
  %v3567 = vld [vmem:[%s3545 + $0xa8] sm:$0xff]
  %v3568 = vld [vmem:[%s3545 + $0xb0] sm:$0xff]
  %v3569 = vld [vmem:[%s3545 + $0xb8] sm:$0xff]
  %v3570 = vld [vmem:[%s3545 + $0xc0] sm:$0xff]
  %v3571 = vld [vmem:[%s3545 + $0xc8] sm:$0xff]
  %v3572 = vld [vmem:[%s3545 + $0xd0] sm:$0xff]
  %v3573 = vld [vmem:[%s3545 + $0xd8] sm:$0xff]
  %v3574 = vld [vmem:[%s3545 + $0xe0] sm:$0xff]
  %v3575 = vld [vmem:[%s3545 + $0xe8] sm:$0xff]
  %v3576 = vld [vmem:[%s3545 + $0xf0] sm:$0xff]
  %v3577 = vld [vmem:[%s3545 + $0xf8] sm:$0xff]
  %v3578 = vld [vmem:[%s3545 + $0x100] sm:$0xff]
  %v3579 = vld [vmem:[%s3545 + $0x108] sm:$0xff]
  %v3580 = vld [vmem:[%s3545 + $0x110] sm:$0xff]
  %v3581 = vld [vmem:[%s3545 + $0x118] sm:$0xff]
  %v3582 = vld [vmem:[%s3545 + $0x120] sm:$0xff]
  %v3583 = vld [vmem:[%s3545 + $0x128] sm:$0xff]
  %v3584 = vld [vmem:[%s3545 + $0x130] sm:$0xff]
  %v3585 = vld [vmem:[%s3545 + $0x138] sm:$0xff]
  %v3586 = vld [vmem:[%s3545 + $0x140] sm:$0xff]
  %v3587 = vld [vmem:[%s3545 + $0x148] sm:$0xff]
  %v3588 = vld [vmem:[%s3545 + $0x150] sm:$0xff]
  %v3589 = vld [vmem:[%s3545 + $0x158] sm:$0xff]
  %v3590 = vld [vmem:[%s3545 + $0x160] sm:$0xff]
  %v3591 = vld [vmem:[%s3545 + $0x168] sm:$0xff]
  %v3592 = vld [vmem:[%s3545 + $0x170] sm:$0xff]
  %v3593 = vld [vmem:[%s3545 + $0x178] sm:$0xff]
  %v3594 = vld [vmem:[%s3545 + $0x180] sm:$0xf]
  %v3595 = vld [vmem:[%s3545 + $0x188] sm:$0xf]
  %v3597 = vsel %vm165, %v3547, 0
  %v3600 = vsel %vm165, %v3549, 0
  %v3603 = vsel %vm165, %v3551, 0
  %v3606 = vsel %vm165, %v3553, 0
  %v3609 = vsel %vm165, %v3555, 0
  %v3612 = vsel %vm165, %v3557, 0
  %v3615 = vsel %vm165, %v3559, 0
  %v3618 = vsel %vm165, %v3561, 0
  %v3621 = vsel %vm165, %v3563, 0
  %v3624 = vsel %vm165, %v3565, 0
  %v3627 = vsel %vm165, %v3567, 0
  %v3630 = vsel %vm165, %v3569, 0
  %v3633 = vsel %vm165, %v3571, 0
  %v3636 = vsel %vm165, %v3573, 0
  %v3639 = vsel %vm165, %v3575, 0
  %v3642 = vsel %vm165, %v3577, 0
  %v3645 = vsel %vm165, %v3579, 0
  %v3648 = vsel %vm165, %v3581, 0
  %v3651 = vsel %vm165, %v3583, 0
  %v3654 = vsel %vm165, %v3585, 0
  %v3657 = vsel %vm165, %v3587, 0
  %v3660 = vsel %vm165, %v3589, 0
  %v3663 = vsel %vm165, %v3591, 0
  %v3666 = vsel %vm165, %v3593, 0
  %v3669 = vsel %vm165, %v3595, 0
  %v3672 = vsel %vm241, %v2681, 0
  %v3675 = vsel %vm241, %v2683, 0
  %3677 = vmatprep.subr.mxu0 %v2629
  %3678 = vmatpush1.msra.mxu0 %v2627
  %3679 = vmatprep.subr.mxu0 %v2623
  %3680 = vmatpush1.msra.mxu0 %v2621
  %3681 = vmatprep.subr.mxu0 %v2617
  %3682 = vmatpush1.msra.mxu0 %v2615
  %3683 = vmatprep.subr.mxu0 %v2611
  %3684 = vmatpush1.msra.mxu0 %v2609
  %3685 = vmatprep.subr.mxu0 %v2605
  %3686 = vmatpush1.msra.mxu0 %v2603
  %3687 = vmatprep.subr.mxu0 %v2599
  %3688 = vmatpush1.msra.mxu0 %v2597
  %3689 = vmatprep.subr.mxu0 %v2593
  %3690 = vmatpush1.msra.mxu0 %v2591
  %3691 = vmatprep.subr.mxu0 %v2587
  %3692 = vmatpush1.msra.mxu0 %v2585
  %3693 = vmatprep.subr.mxu0 %v2581
  %3694 = vmatpush1.msra.mxu0 %v2579
  %3695 = vmatprep.subr.mxu0 %v2575
  %3696 = vmatpush1.msra.mxu0 %v2573
  %3697 = vmatprep.subr.mxu0 %v2569
  %3698 = vmatpush1.msra.mxu0 %v2567
  %3699 = vmatprep.subr.mxu0 %v2563
  %3700 = vmatpush1.msra.mxu0 %v2561
  %3701 = vmatprep.subr.mxu0 %v2557
  %3702 = vmatpush1.msra.mxu0 %v2555
  %3703 = vmatprep.subr.mxu0 %v2551
  %3704 = vmatpush1.msra.mxu0 %v2549
  %3705 = vmatprep.subr.mxu0 %v2545
  %3706 = vmatpush1.msra.mxu0 %v2543
  %3707 = vmatprep.subr.mxu0 %v2539
  %3708 = vmatpush1.msra.mxu0 %v2537
  %3709 = vmatprep.subr.mxu0 0.0
  %3710 = vmatpush2.msra.mxu0 0.0
  %3711 = vmatprep.subr.mxu0 0.0
  %3712 = vmatpush2.msra.mxu0 0.0
  %3713 = vmatprep.subr.mxu0 0.0
  %3714 = vmatpush2.msra.mxu0 0.0
  %3715 = vmatprep.subr.mxu0 0.0
  %3716 = vmatpush2.msra.mxu0 0.0
  %3717 = vmatprep.subr.mxu0 0.0
  %3718 = vmatpush2.msra.mxu0 0.0
  %3719 = vmatprep.subr.mxu0 0.0
  %3720 = vmatpush2.msra.mxu0 0.0
  %3721 = vmatprep.subr.mxu0 0.0
  %3722 = vmatpush2.msra.mxu0 0.0
  %3723 = vmatprep.subr.mxu0 %v3675
  %3724 = vmatpush2.msra.mxu0 %v3672
  %3725 = vmatprep.subr.mxu0 %v2677
  %3726 = vmatpush2.msra.mxu0 %v2675
  %3727 = vmatprep.subr.mxu0 %v2671
  %3728 = vmatpush2.msra.mxu0 %v2669
  %3729 = vmatprep.subr.mxu0 %v2665
  %3730 = vmatpush2.msra.mxu0 %v2663
  %3731 = vmatprep.subr.mxu0 %v2659
  %3732 = vmatpush2.msra.mxu0 %v2657
  %3733 = vmatprep.subr.mxu0 %v2653
  %3734 = vmatpush2.msra.mxu0 %v2651
  %3735 = vmatprep.subr.mxu0 %v2647
  %3736 = vmatpush2.msra.mxu0 %v2645
  %3737 = vmatprep.subr.mxu0 %v2641
  %3738 = vmatpush2.msra.mxu0 %v2639
  %3739 = vmatprep.subr.mxu0 %v2635
  %3740 = vmatpush2.msra.mxu0 %v2633
  %3741 = vmatprep.mubr.f32.mxu0 %v3597
  %3742 = vmatmul.mubr.f32.gmra.mxu0 %v3546
  %v3743 = vpop.f32.mrf.mxu0
  %v3744 = vadd.f32 %v2967, %v3743
  %v3745 = vpop.f32.mrf.mxu0
  %v3746 = vadd.f32 %v2969, %v3745
  %3747 = vmatprep.mubr.f32.mxu0 %v3600
  %3748 = vmatmul.mubr.f32.gmra.mxu0 %v3548
  %v3749 = vpop.f32.mrf.mxu0
  %v3750 = vadd.f32 %v2973, %v3749
  %v3751 = vpop.f32.mrf.mxu0
  %v3752 = vadd.f32 %v2975, %v3751
  %3753 = vmatprep.mubr.f32.mxu0 %v3603
  %3754 = vmatmul.mubr.f32.gmra.mxu0 %v3550
  %v3755 = vpop.f32.mrf.mxu0
  %v3756 = vadd.f32 %v2979, %v3755
  %v3757 = vpop.f32.mrf.mxu0
  %v3758 = vadd.f32 %v2981, %v3757
  %3759 = vmatprep.mubr.f32.mxu0 %v3606
  %3760 = vmatmul.mubr.f32.gmra.mxu0 %v3552
  %v3761 = vpop.f32.mrf.mxu0
  %v3762 = vadd.f32 %v2985, %v3761
  %v3763 = vpop.f32.mrf.mxu0
  %v3764 = vadd.f32 %v2987, %v3763
  %3765 = vmatprep.mubr.f32.mxu0 %v3609
  %3766 = vmatmul.mubr.f32.gmra.mxu0 %v3554
  %v3767 = vpop.f32.mrf.mxu0
  %v3768 = vadd.f32 %v2991, %v3767
  %v3769 = vpop.f32.mrf.mxu0
  %v3770 = vadd.f32 %v2993, %v3769
  %3771 = vmatprep.mubr.f32.mxu0 %v3612
  %3772 = vmatmul.mubr.f32.gmra.mxu0 %v3556
  %v3773 = vpop.f32.mrf.mxu0
  %v3774 = vadd.f32 %v2997, %v3773
  %v3775 = vpop.f32.mrf.mxu0
  %v3776 = vadd.f32 %v2999, %v3775
  %3777 = vmatprep.mubr.f32.mxu0 %v3615
  %3778 = vmatmul.mubr.f32.gmra.mxu0 %v3558
  %v3779 = vpop.f32.mrf.mxu0
  %v3780 = vadd.f32 %v3003, %v3779
  %v3781 = vpop.f32.mrf.mxu0
  %v3782 = vadd.f32 %v3005, %v3781
  %3783 = vmatprep.mubr.f32.mxu0 %v3618
  %3784 = vmatmul.mubr.f32.gmra.mxu0 %v3560
  %v3785 = vpop.f32.mrf.mxu0
  %v3786 = vadd.f32 %v3009, %v3785
  %v3787 = vpop.f32.mrf.mxu0
  %v3788 = vadd.f32 %v3011, %v3787
  %3789 = vmatprep.mubr.f32.mxu0 %v3621
  %3790 = vmatmul.mubr.f32.gmra.mxu0 %v3562
  %v3791 = vpop.f32.mrf.mxu0
  %v3792 = vadd.f32 %v3015, %v3791
  %v3793 = vpop.f32.mrf.mxu0
  %v3794 = vadd.f32 %v3017, %v3793
  %3795 = vmatprep.mubr.f32.mxu0 %v3624
  %3796 = vmatmul.mubr.f32.gmra.mxu0 %v3564
  %v3797 = vpop.f32.mrf.mxu0
  %v3798 = vadd.f32 %v3021, %v3797
  %v3799 = vpop.f32.mrf.mxu0
  %v3800 = vadd.f32 %v3023, %v3799
  %3801 = vmatprep.mubr.f32.mxu0 %v3627
  %3802 = vmatmul.mubr.f32.gmra.mxu0 %v3566
  %v3803 = vpop.f32.mrf.mxu0
  %v3804 = vadd.f32 %v3027, %v3803
  %v3805 = vpop.f32.mrf.mxu0
  %v3806 = vadd.f32 %v3029, %v3805
  %3807 = vmatprep.mubr.f32.mxu0 %v3630
  %3808 = vmatmul.mubr.f32.gmra.mxu0 %v3568
  %v3809 = vpop.f32.mrf.mxu0
  %v3810 = vadd.f32 %v3033, %v3809
  %v3811 = vpop.f32.mrf.mxu0
  %v3812 = vadd.f32 %v3035, %v3811
  %3813 = vmatprep.mubr.f32.mxu0 %v3633
  %3814 = vmatmul.mubr.f32.gmra.mxu0 %v3570
  %v3815 = vpop.f32.mrf.mxu0
  %v3816 = vadd.f32 %v3039, %v3815
  %v3817 = vpop.f32.mrf.mxu0
  %v3818 = vadd.f32 %v3041, %v3817
  %3819 = vmatprep.mubr.f32.mxu0 %v3636
  %3820 = vmatmul.mubr.f32.gmra.mxu0 %v3572
  %v3821 = vpop.f32.mrf.mxu0
  %v3822 = vadd.f32 %v3045, %v3821
  %v3823 = vpop.f32.mrf.mxu0
  %v3824 = vadd.f32 %v3047, %v3823
  %3825 = vmatprep.mubr.f32.mxu0 %v3639
  %3826 = vmatmul.mubr.f32.gmra.mxu0 %v3574
  %v3827 = vpop.f32.mrf.mxu0
  %v3828 = vadd.f32 %v3051, %v3827
  %v3829 = vpop.f32.mrf.mxu0
  %v3830 = vadd.f32 %v3053, %v3829
  %3831 = vmatprep.mubr.f32.mxu0 %v3642
  %3832 = vmatmul.mubr.f32.gmra.mxu0 %v3576
  %v3833 = vpop.f32.mrf.mxu0
  %v3834 = vadd.f32 %v3057, %v3833
  %v3835 = vpop.f32.mrf.mxu0
  %v3836 = vadd.f32 %v3059, %v3835
  %3837 = vmatprep.mubr.f32.mxu0 %v3645
  %3838 = vmatmul.mubr.f32.gmra.mxu0 %v3578
  %v3839 = vpop.f32.mrf.mxu0
  %v3840 = vadd.f32 %v3063, %v3839
  %v3841 = vpop.f32.mrf.mxu0
  %v3842 = vadd.f32 %v3065, %v3841
  %3843 = vmatprep.mubr.f32.mxu0 %v3648
  %3844 = vmatmul.mubr.f32.gmra.mxu0 %v3580
  %v3845 = vpop.f32.mrf.mxu0
  %v3846 = vadd.f32 %v3069, %v3845
  %v3847 = vpop.f32.mrf.mxu0
  %v3848 = vadd.f32 %v3071, %v3847
  %3849 = vmatprep.mubr.f32.mxu0 %v3651
  %3850 = vmatmul.mubr.f32.gmra.mxu0 %v3582
  %v3851 = vpop.f32.mrf.mxu0
  %v3852 = vadd.f32 %v3075, %v3851
  %v3853 = vpop.f32.mrf.mxu0
  %v3854 = vadd.f32 %v3077, %v3853
  %3855 = vmatprep.mubr.f32.mxu0 %v3654
  %3856 = vmatmul.mubr.f32.gmra.mxu0 %v3584
  %v3857 = vpop.f32.mrf.mxu0
  %v3858 = vadd.f32 %v3081, %v3857
  %v3859 = vpop.f32.mrf.mxu0
  %v3860 = vadd.f32 %v3083, %v3859
  %3861 = vmatprep.mubr.f32.mxu0 %v3657
  %3862 = vmatmul.mubr.f32.gmra.mxu0 %v3586
  %v3863 = vpop.f32.mrf.mxu0
  %v3864 = vadd.f32 %v3087, %v3863
  %v3865 = vpop.f32.mrf.mxu0
  %v3866 = vadd.f32 %v3089, %v3865
  %3867 = vmatprep.mubr.f32.mxu0 %v3660
  %3868 = vmatmul.mubr.f32.gmra.mxu0 %v3588
  %v3869 = vpop.f32.mrf.mxu0
  %v3870 = vadd.f32 %v3093, %v3869
  %v3871 = vpop.f32.mrf.mxu0
  %v3872 = vadd.f32 %v3095, %v3871
  %3873 = vmatprep.mubr.f32.mxu0 %v3663
  %3874 = vmatmul.mubr.f32.gmra.mxu0 %v3590
  %v3875 = vpop.f32.mrf.mxu0
  %v3876 = vadd.f32 %v3099, %v3875
  %v3877 = vpop.f32.mrf.mxu0
  %v3878 = vadd.f32 %v3101, %v3877
  %3879 = vmatprep.mubr.f32.mxu0 %v3666
  %3880 = vmatmul.mubr.f32.gmra.mxu0 %v3592
  %v3881 = vpop.f32.mrf.mxu0
  %v3882 = vadd.f32 %v3105, %v3881
  %v3883 = vpop.f32.mrf.mxu0
  %v3884 = vadd.f32 %v3107, %v3883
  %3885 = vmatprep.mubr.f32.mxu0 %v3669
  %3886 = vmatmul.mubr.f32.gmra.mxu0 %v3594
  %v3887 = vpop.f32.mrf.mxu0
  %v3888 = vadd.f32 %v3111, %v3887
  %v3889 = vpop.f32.mrf.mxu0
  %v3890 = vadd.f32 %v3113, %v3889
  %3891 = vdwg.mxu0
  %s3892 = scalar_lea.vmem %s1, 2800
  %v3893 = vld [vmem:[%s3892] sm:$0xff]
  %v3894 = vld [vmem:[%s3892 + $0x8] sm:$0xff]
  %v3895 = vld [vmem:[%s3892 + $0x10] sm:$0xff]
  %v3896 = vld [vmem:[%s3892 + $0x18] sm:$0xff]
  %v3897 = vld [vmem:[%s3892 + $0x20] sm:$0xff]
  %v3898 = vld [vmem:[%s3892 + $0x28] sm:$0xff]
  %v3899 = vld [vmem:[%s3892 + $0x30] sm:$0xff]
  %v3900 = vld [vmem:[%s3892 + $0x38] sm:$0xff]
  %v3901 = vld [vmem:[%s3892 + $0x40] sm:$0xff]
  %v3902 = vld [vmem:[%s3892 + $0x48] sm:$0xff]
  %v3903 = vld [vmem:[%s3892 + $0x50] sm:$0xff]
  %v3904 = vld [vmem:[%s3892 + $0x58] sm:$0xff]
  %v3905 = vld [vmem:[%s3892 + $0x60] sm:$0xff]
  %v3906 = vld [vmem:[%s3892 + $0x68] sm:$0xff]
  %v3907 = vld [vmem:[%s3892 + $0x70] sm:$0xff]
  %v3908 = vld [vmem:[%s3892 + $0x78] sm:$0xff]
  %v3909 = vld [vmem:[%s3892 + $0x80] sm:$0xff]
  %v3910 = vld [vmem:[%s3892 + $0x88] sm:$0xff]
  %v3911 = vld [vmem:[%s3892 + $0x90] sm:$0xff]
  %v3912 = vld [vmem:[%s3892 + $0x98] sm:$0xff]
  %v3913 = vld [vmem:[%s3892 + $0xa0] sm:$0xff]
  %v3914 = vld [vmem:[%s3892 + $0xa8] sm:$0xff]
  %v3915 = vld [vmem:[%s3892 + $0xb0] sm:$0xff]
  %v3916 = vld [vmem:[%s3892 + $0xb8] sm:$0xff]
  %v3917 = vld [vmem:[%s3892 + $0xc0] sm:$0xff]
  %v3918 = vld [vmem:[%s3892 + $0xc8] sm:$0xff]
  %v3919 = vld [vmem:[%s3892 + $0xd0] sm:$0xff]
  %v3920 = vld [vmem:[%s3892 + $0xd8] sm:$0xff]
  %v3921 = vld [vmem:[%s3892 + $0xe0] sm:$0xff]
  %v3922 = vld [vmem:[%s3892 + $0xe8] sm:$0xff]
  %v3923 = vld [vmem:[%s3892 + $0xf0] sm:$0xff]
  %v3924 = vld [vmem:[%s3892 + $0xf8] sm:$0xff]
  %v3925 = vld [vmem:[%s3892 + $0x100] sm:$0xff]
  %v3926 = vld [vmem:[%s3892 + $0x108] sm:$0xff]
  %v3927 = vld [vmem:[%s3892 + $0x110] sm:$0xff]
  %v3928 = vld [vmem:[%s3892 + $0x118] sm:$0xff]
  %v3929 = vld [vmem:[%s3892 + $0x120] sm:$0xff]
  %v3930 = vld [vmem:[%s3892 + $0x128] sm:$0xff]
  %v3931 = vld [vmem:[%s3892 + $0x130] sm:$0xff]
  %v3932 = vld [vmem:[%s3892 + $0x138] sm:$0xff]
  %v3933 = vld [vmem:[%s3892 + $0x140] sm:$0xff]
  %v3934 = vld [vmem:[%s3892 + $0x148] sm:$0xff]
  %v3935 = vld [vmem:[%s3892 + $0x150] sm:$0xff]
  %v3936 = vld [vmem:[%s3892 + $0x158] sm:$0xff]
  %v3937 = vld [vmem:[%s3892 + $0x160] sm:$0xff]
  %v3938 = vld [vmem:[%s3892 + $0x168] sm:$0xff]
  %v3939 = vld [vmem:[%s3892 + $0x170] sm:$0xff]
  %v3940 = vld [vmem:[%s3892 + $0x178] sm:$0xff]
  %v3941 = vld [vmem:[%s3892 + $0x180] sm:$0xf]
  %v3942 = vld [vmem:[%s3892 + $0x188] sm:$0xf]
  %v3944 = vsel %vm165, %v3894, 0
  %v3947 = vsel %vm165, %v3896, 0
  %v3950 = vsel %vm165, %v3898, 0
  %v3953 = vsel %vm165, %v3900, 0
  %v3956 = vsel %vm165, %v3902, 0
  %v3959 = vsel %vm165, %v3904, 0
  %v3962 = vsel %vm165, %v3906, 0
  %v3965 = vsel %vm165, %v3908, 0
  %v3968 = vsel %vm165, %v3910, 0
  %v3971 = vsel %vm165, %v3912, 0
  %v3974 = vsel %vm165, %v3914, 0
  %v3977 = vsel %vm165, %v3916, 0
  %v3980 = vsel %vm165, %v3918, 0
  %v3983 = vsel %vm165, %v3920, 0
  %v3986 = vsel %vm165, %v3922, 0
  %v3989 = vsel %vm165, %v3924, 0
  %v3992 = vsel %vm165, %v3926, 0
  %v3995 = vsel %vm165, %v3928, 0
  %v3998 = vsel %vm165, %v3930, 0
  %v4001 = vsel %vm165, %v3932, 0
  %v4004 = vsel %vm165, %v3934, 0
  %v4007 = vsel %vm165, %v3936, 0
  %v4010 = vsel %vm165, %v3938, 0
  %v4013 = vsel %vm165, %v3940, 0
  %v4016 = vsel %vm165, %v3942, 0
  %v4019 = vsel %vm241, %v3541, 0
  %v4022 = vsel %vm241, %v3543, 0
  %4024 = vmatprep.subr.mxu0 %v3489
  %4025 = vmatpush1.msra.mxu0 %v3487
  %4026 = vmatprep.subr.mxu0 %v3483
  %4027 = vmatpush1.msra.mxu0 %v3481
  %4028 = vmatprep.subr.mxu0 %v3477
  %4029 = vmatpush1.msra.mxu0 %v3475
  %4030 = vmatprep.subr.mxu0 %v3471
  %4031 = vmatpush1.msra.mxu0 %v3469
  %4032 = vmatprep.subr.mxu0 %v3465
  %4033 = vmatpush1.msra.mxu0 %v3463
  %4034 = vmatprep.subr.mxu0 %v3459
  %4035 = vmatpush1.msra.mxu0 %v3457
  %4036 = vmatprep.subr.mxu0 %v3453
  %4037 = vmatpush1.msra.mxu0 %v3451
  %4038 = vmatprep.subr.mxu0 %v3447
  %4039 = vmatpush1.msra.mxu0 %v3445
  %4040 = vmatprep.subr.mxu0 %v3441
  %4041 = vmatpush1.msra.mxu0 %v3439
  %4042 = vmatprep.subr.mxu0 %v3435
  %4043 = vmatpush1.msra.mxu0 %v3433
  %4044 = vmatprep.subr.mxu0 %v3429
  %4045 = vmatpush1.msra.mxu0 %v3427
  %4046 = vmatprep.subr.mxu0 %v3423
  %4047 = vmatpush1.msra.mxu0 %v3421
  %4048 = vmatprep.subr.mxu0 %v3417
  %4049 = vmatpush1.msra.mxu0 %v3415
  %4050 = vmatprep.subr.mxu0 %v3411
  %4051 = vmatpush1.msra.mxu0 %v3409
  %4052 = vmatprep.subr.mxu0 %v3405
  %4053 = vmatpush1.msra.mxu0 %v3403
  %4054 = vmatprep.subr.mxu0 %v3399
  %4055 = vmatpush1.msra.mxu0 %v3397
  %4056 = vmatprep.subr.mxu0 0.0
  %4057 = vmatpush2.msra.mxu0 0.0
  %4058 = vmatprep.subr.mxu0 0.0
  %4059 = vmatpush2.msra.mxu0 0.0
  %4060 = vmatprep.subr.mxu0 0.0
  %4061 = vmatpush2.msra.mxu0 0.0
  %4062 = vmatprep.subr.mxu0 0.0
  %4063 = vmatpush2.msra.mxu0 0.0
  %4064 = vmatprep.subr.mxu0 0.0
  %4065 = vmatpush2.msra.mxu0 0.0
  %4066 = vmatprep.subr.mxu0 0.0
  %4067 = vmatpush2.msra.mxu0 0.0
  %4068 = vmatprep.subr.mxu0 0.0
  %4069 = vmatpush2.msra.mxu0 0.0
  %4070 = vmatprep.subr.mxu0 %v4022
  %4071 = vmatpush2.msra.mxu0 %v4019
  %4072 = vmatprep.subr.mxu0 %v3537
  %4073 = vmatpush2.msra.mxu0 %v3535
  %4074 = vmatprep.subr.mxu0 %v3531
  %4075 = vmatpush2.msra.mxu0 %v3529
  %4076 = vmatprep.subr.mxu0 %v3525
  %4077 = vmatpush2.msra.mxu0 %v3523
  %4078 = vmatprep.subr.mxu0 %v3519
  %4079 = vmatpush2.msra.mxu0 %v3517
  %4080 = vmatprep.subr.mxu0 %v3513
  %4081 = vmatpush2.msra.mxu0 %v3511
  %4082 = vmatprep.subr.mxu0 %v3507
  %4083 = vmatpush2.msra.mxu0 %v3505
  %4084 = vmatprep.subr.mxu0 %v3501
  %4085 = vmatpush2.msra.mxu0 %v3499
  %4086 = vmatprep.subr.mxu0 %v3495
  %4087 = vmatpush2.msra.mxu0 %v3493
  %4088 = vmatprep.mubr.f32.mxu0 %v3944
  %4089 = vmatmul.mubr.f32.gmra.mxu0 %v3893
  %v4090 = vpop.f32.mrf.mxu0
  %v4091 = vadd.f32 0.0, %v4090
  %v4092 = vpop.f32.mrf.mxu0
  %v4093 = vadd.f32 0.0, %v4092
  %4094 = vmatprep.mubr.f32.mxu0 %v3947
  %4095 = vmatmul.mubr.f32.gmra.mxu0 %v3895
  %v4096 = vpop.f32.mrf.mxu0
  %v4097 = vadd.f32 0.0, %v4096
  %v4098 = vpop.f32.mrf.mxu0
  %v4099 = vadd.f32 0.0, %v4098
  %4100 = vmatprep.mubr.f32.mxu0 %v3950
  %4101 = vmatmul.mubr.f32.gmra.mxu0 %v3897
  %v4102 = vpop.f32.mrf.mxu0
  %v4103 = vadd.f32 0.0, %v4102
  %v4104 = vpop.f32.mrf.mxu0
  %v4105 = vadd.f32 0.0, %v4104
  %4106 = vmatprep.mubr.f32.mxu0 %v3953
  %4107 = vmatmul.mubr.f32.gmra.mxu0 %v3899
  %v4108 = vpop.f32.mrf.mxu0
  %v4109 = vadd.f32 0.0, %v4108
  %v4110 = vpop.f32.mrf.mxu0
  %v4111 = vadd.f32 0.0, %v4110
  %4112 = vmatprep.mubr.f32.mxu0 %v3956
  %4113 = vmatmul.mubr.f32.gmra.mxu0 %v3901
  %v4114 = vpop.f32.mrf.mxu0
  %v4115 = vadd.f32 0.0, %v4114
  %v4116 = vpop.f32.mrf.mxu0
  %v4117 = vadd.f32 0.0, %v4116
  %4118 = vmatprep.mubr.f32.mxu0 %v3959
  %4119 = vmatmul.mubr.f32.gmra.mxu0 %v3903
  %v4120 = vpop.f32.mrf.mxu0
  %v4121 = vadd.f32 0.0, %v4120
  %v4122 = vpop.f32.mrf.mxu0
  %v4123 = vadd.f32 0.0, %v4122
  %4124 = vmatprep.mubr.f32.mxu0 %v3962
  %4125 = vmatmul.mubr.f32.gmra.mxu0 %v3905
  %v4126 = vpop.f32.mrf.mxu0
  %v4127 = vadd.f32 0.0, %v4126
  %v4128 = vpop.f32.mrf.mxu0
  %v4129 = vadd.f32 0.0, %v4128
  %4130 = vmatprep.mubr.f32.mxu0 %v3965
  %4131 = vmatmul.mubr.f32.gmra.mxu0 %v3907
  %v4132 = vpop.f32.mrf.mxu0
  %v4133 = vadd.f32 0.0, %v4132
  %v4134 = vpop.f32.mrf.mxu0
  %v4135 = vadd.f32 0.0, %v4134
  %4136 = vmatprep.mubr.f32.mxu0 %v3968
  %4137 = vmatmul.mubr.f32.gmra.mxu0 %v3909
  %v4138 = vpop.f32.mrf.mxu0
  %v4139 = vadd.f32 0.0, %v4138
  %v4140 = vpop.f32.mrf.mxu0
  %v4141 = vadd.f32 0.0, %v4140
  %4142 = vmatprep.mubr.f32.mxu0 %v3971
  %4143 = vmatmul.mubr.f32.gmra.mxu0 %v3911
  %v4144 = vpop.f32.mrf.mxu0
  %v4145 = vadd.f32 0.0, %v4144
  %v4146 = vpop.f32.mrf.mxu0
  %v4147 = vadd.f32 0.0, %v4146
  %4148 = vmatprep.mubr.f32.mxu0 %v3974
  %4149 = vmatmul.mubr.f32.gmra.mxu0 %v3913
  %v4150 = vpop.f32.mrf.mxu0
  %v4151 = vadd.f32 0.0, %v4150
  %v4152 = vpop.f32.mrf.mxu0
  %v4153 = vadd.f32 0.0, %v4152
  %4154 = vmatprep.mubr.f32.mxu0 %v3977
  %4155 = vmatmul.mubr.f32.gmra.mxu0 %v3915
  %v4156 = vpop.f32.mrf.mxu0
  %v4157 = vadd.f32 0.0, %v4156
  %v4158 = vpop.f32.mrf.mxu0
  %v4159 = vadd.f32 0.0, %v4158
  %4160 = vmatprep.mubr.f32.mxu0 %v3980
  %4161 = vmatmul.mubr.f32.gmra.mxu0 %v3917
  %v4162 = vpop.f32.mrf.mxu0
  %v4163 = vadd.f32 0.0, %v4162
  %v4164 = vpop.f32.mrf.mxu0
  %v4165 = vadd.f32 0.0, %v4164
  %4166 = vmatprep.mubr.f32.mxu0 %v3983
  %4167 = vmatmul.mubr.f32.gmra.mxu0 %v3919
  %v4168 = vpop.f32.mrf.mxu0
  %v4169 = vadd.f32 0.0, %v4168
  %v4170 = vpop.f32.mrf.mxu0
  %v4171 = vadd.f32 0.0, %v4170
  %4172 = vmatprep.mubr.f32.mxu0 %v3986
  %4173 = vmatmul.mubr.f32.gmra.mxu0 %v3921
  %v4174 = vpop.f32.mrf.mxu0
  %v4175 = vadd.f32 0.0, %v4174
  %v4176 = vpop.f32.mrf.mxu0
  %v4177 = vadd.f32 0.0, %v4176
  %4178 = vmatprep.mubr.f32.mxu0 %v3989
  %4179 = vmatmul.mubr.f32.gmra.mxu0 %v3923
  %v4180 = vpop.f32.mrf.mxu0
  %v4181 = vadd.f32 0.0, %v4180
  %v4182 = vpop.f32.mrf.mxu0
  %v4183 = vadd.f32 0.0, %v4182
  %4184 = vmatprep.mubr.f32.mxu0 %v3992
  %4185 = vmatmul.mubr.f32.gmra.mxu0 %v3925
  %v4186 = vpop.f32.mrf.mxu0
  %v4187 = vadd.f32 0.0, %v4186
  %v4188 = vpop.f32.mrf.mxu0
  %v4189 = vadd.f32 0.0, %v4188
  %4190 = vmatprep.mubr.f32.mxu0 %v3995
  %4191 = vmatmul.mubr.f32.gmra.mxu0 %v3927
  %v4192 = vpop.f32.mrf.mxu0
  %v4193 = vadd.f32 0.0, %v4192
  %v4194 = vpop.f32.mrf.mxu0
  %v4195 = vadd.f32 0.0, %v4194
  %4196 = vmatprep.mubr.f32.mxu0 %v3998
  %4197 = vmatmul.mubr.f32.gmra.mxu0 %v3929
  %v4198 = vpop.f32.mrf.mxu0
  %v4199 = vadd.f32 0.0, %v4198
  %v4200 = vpop.f32.mrf.mxu0
  %v4201 = vadd.f32 0.0, %v4200
  %4202 = vmatprep.mubr.f32.mxu0 %v4001
  %4203 = vmatmul.mubr.f32.gmra.mxu0 %v3931
  %v4204 = vpop.f32.mrf.mxu0
  %v4205 = vadd.f32 0.0, %v4204
  %v4206 = vpop.f32.mrf.mxu0
  %v4207 = vadd.f32 0.0, %v4206
  %4208 = vmatprep.mubr.f32.mxu0 %v4004
  %4209 = vmatmul.mubr.f32.gmra.mxu0 %v3933
  %v4210 = vpop.f32.mrf.mxu0
  %v4211 = vadd.f32 0.0, %v4210
  %v4212 = vpop.f32.mrf.mxu0
  %v4213 = vadd.f32 0.0, %v4212
  %4214 = vmatprep.mubr.f32.mxu0 %v4007
  %4215 = vmatmul.mubr.f32.gmra.mxu0 %v3935
  %v4216 = vpop.f32.mrf.mxu0
  %v4217 = vadd.f32 0.0, %v4216
  %v4218 = vpop.f32.mrf.mxu0
  %v4219 = vadd.f32 0.0, %v4218
  %4220 = vmatprep.mubr.f32.mxu0 %v4010
  %4221 = vmatmul.mubr.f32.gmra.mxu0 %v3937
  %v4222 = vpop.f32.mrf.mxu0
  %v4223 = vadd.f32 0.0, %v4222
  %v4224 = vpop.f32.mrf.mxu0
  %v4225 = vadd.f32 0.0, %v4224
  %4226 = vmatprep.mubr.f32.mxu0 %v4013
  %4227 = vmatmul.mubr.f32.gmra.mxu0 %v3939
  %v4228 = vpop.f32.mrf.mxu0
  %v4229 = vadd.f32 0.0, %v4228
  %v4230 = vpop.f32.mrf.mxu0
  %v4231 = vadd.f32 0.0, %v4230
  %4232 = vmatprep.mubr.f32.mxu0 %v4016
  %4233 = vmatmul.mubr.f32.gmra.mxu0 %v3941
  %v4234 = vpop.f32.mrf.mxu0
  %v4235 = vadd.f32 0.0, %v4234
  %v4236 = vpop.f32.mrf.mxu0
  %v4237 = vadd.f32 0.0, %v4236
  %4238 = vdwg.mxu0
  %v4239 = vadd.f32 %v3744, %v4091
  %v4240 = vadd.f32 %v3746, %v4093
  %v4241 = vadd.f32 %v3750, %v4097
  %v4242 = vadd.f32 %v3752, %v4099
  %v4243 = vadd.f32 %v3756, %v4103
  %v4244 = vadd.f32 %v3758, %v4105
  %v4245 = vadd.f32 %v3762, %v4109
  %v4246 = vadd.f32 %v3764, %v4111
  %v4247 = vadd.f32 %v3768, %v4115
  %v4248 = vadd.f32 %v3770, %v4117
  %v4249 = vadd.f32 %v3774, %v4121
  %v4250 = vadd.f32 %v3776, %v4123
  %v4251 = vadd.f32 %v3780, %v4127
  %v4252 = vadd.f32 %v3782, %v4129
  %v4253 = vadd.f32 %v3786, %v4133
  %v4254 = vadd.f32 %v3788, %v4135
  %v4255 = vadd.f32 %v3792, %v4139
  %v4256 = vadd.f32 %v3794, %v4141
  %v4257 = vadd.f32 %v3798, %v4145
  %v4258 = vadd.f32 %v3800, %v4147
  %v4259 = vadd.f32 %v3804, %v4151
  %v4260 = vadd.f32 %v3806, %v4153
  %v4261 = vadd.f32 %v3810, %v4157
  %v4262 = vadd.f32 %v3812, %v4159
  %v4263 = vadd.f32 %v3816, %v4163
  %v4264 = vadd.f32 %v3818, %v4165
  %v4265 = vadd.f32 %v3822, %v4169
  %v4266 = vadd.f32 %v3824, %v4171
  %v4267 = vadd.f32 %v3828, %v4175
  %v4268 = vadd.f32 %v3830, %v4177
  %v4269 = vadd.f32 %v3834, %v4181
  %v4270 = vadd.f32 %v3836, %v4183
  %v4271 = vadd.f32 %v3840, %v4187
  %v4272 = vadd.f32 %v3842, %v4189
  %v4273 = vadd.f32 %v3846, %v4193
  %v4274 = vadd.f32 %v3848, %v4195
  %v4275 = vadd.f32 %v3852, %v4199
  %v4276 = vadd.f32 %v3854, %v4201
  %v4277 = vadd.f32 %v3858, %v4205
  %v4278 = vadd.f32 %v3860, %v4207
  %v4279 = vadd.f32 %v3864, %v4211
  %v4280 = vadd.f32 %v3866, %v4213
  %v4281 = vadd.f32 %v3870, %v4217
  %v4282 = vadd.f32 %v3872, %v4219
  %v4283 = vadd.f32 %v3876, %v4223
  %v4284 = vadd.f32 %v3878, %v4225
  %v4285 = vadd.f32 %v3882, %v4229
  %v4286 = vadd.f32 %v3884, %v4231
  %v4287 = vadd.f32 %v3888, %v4235
  %v4288 = vadd.f32 %v3890, %v4237
  %4289 = vst [vmem:[%s3] sm:$0xff] %v4239
  %4290 = vst [vmem:[%s3 + $0x8] sm:$0xff] %v4240
  %4291 = vst [vmem:[%s3 + $0x10] sm:$0xff] %v4241
  %4292 = vst [vmem:[%s3 + $0x18] sm:$0xff] %v4242
  %4293 = vst [vmem:[%s3 + $0x20] sm:$0xff] %v4243
  %4294 = vst [vmem:[%s3 + $0x28] sm:$0xff] %v4244
  %4295 = vst [vmem:[%s3 + $0x30] sm:$0xff] %v4245
  %4296 = vst [vmem:[%s3 + $0x38] sm:$0xff] %v4246
  %4297 = vst [vmem:[%s3 + $0x40] sm:$0xff] %v4247
  %4298 = vst [vmem:[%s3 + $0x48] sm:$0xff] %v4248
  %4299 = vst [vmem:[%s3 + $0x50] sm:$0xff] %v4249
  %4300 = vst [vmem:[%s3 + $0x58] sm:$0xff] %v4250
  %4301 = vst [vmem:[%s3 + $0x60] sm:$0xff] %v4251
  %4302 = vst [vmem:[%s3 + $0x68] sm:$0xff] %v4252
  %4303 = vst [vmem:[%s3 + $0x70] sm:$0xff] %v4253
  %4304 = vst [vmem:[%s3 + $0x78] sm:$0xff] %v4254
  %4305 = vst [vmem:[%s3 + $0x80] sm:$0xff] %v4255
  %4306 = vst [vmem:[%s3 + $0x88] sm:$0xff] %v4256
  %4307 = vst [vmem:[%s3 + $0x90] sm:$0xff] %v4257
  %4308 = vst [vmem:[%s3 + $0x98] sm:$0xff] %v4258
  %4309 = vst [vmem:[%s3 + $0xa0] sm:$0xff] %v4259
  %4310 = vst [vmem:[%s3 + $0xa8] sm:$0xff] %v4260
  %4311 = vst [vmem:[%s3 + $0xb0] sm:$0xff] %v4261
  %4312 = vst [vmem:[%s3 + $0xb8] sm:$0xff] %v4262
  %4313 = vst [vmem:[%s3 + $0xc0] sm:$0xff] %v4263
  %4314 = vst [vmem:[%s3 + $0xc8] sm:$0xff] %v4264
  %4315 = vst [vmem:[%s3 + $0xd0] sm:$0xff] %v4265
  %4316 = vst [vmem:[%s3 + $0xd8] sm:$0xff] %v4266
  %4317 = vst [vmem:[%s3 + $0xe0] sm:$0xff] %v4267
  %4318 = vst [vmem:[%s3 + $0xe8] sm:$0xff] %v4268
  %4319 = vst [vmem:[%s3 + $0xf0] sm:$0xff] %v4269
  %4320 = vst [vmem:[%s3 + $0xf8] sm:$0xff] %v4270
  %4321 = vst [vmem:[%s3 + $0x100] sm:$0xff] %v4271
  %4322 = vst [vmem:[%s3 + $0x108] sm:$0xff] %v4272
  %4323 = vst [vmem:[%s3 + $0x110] sm:$0xff] %v4273
  %4324 = vst [vmem:[%s3 + $0x118] sm:$0xff] %v4274
  %4325 = vst [vmem:[%s3 + $0x120] sm:$0xff] %v4275
  %4326 = vst [vmem:[%s3 + $0x128] sm:$0xff] %v4276
  %4327 = vst [vmem:[%s3 + $0x130] sm:$0xff] %v4277
  %4328 = vst [vmem:[%s3 + $0x138] sm:$0xff] %v4278
  %4329 = vst [vmem:[%s3 + $0x140] sm:$0xff] %v4279
  %4330 = vst [vmem:[%s3 + $0x148] sm:$0xff] %v4280
  %4331 = vst [vmem:[%s3 + $0x150] sm:$0xff] %v4281
  %4332 = vst [vmem:[%s3 + $0x158] sm:$0xff] %v4282
  %4333 = vst [vmem:[%s3 + $0x160] sm:$0xff] %v4283
  %4334 = vst [vmem:[%s3 + $0x168] sm:$0xff] %v4284
  %4335 = vst [vmem:[%s3 + $0x170] sm:$0xff] %v4285
  %4336 = vst [vmem:[%s3 + $0x178] sm:$0xff] %v4286
  %4337 = vst [vmem:[%s3 + $0x180] sm:$0xf] %v4287
  %4338 = vst [vmem:[%s3 + $0x188] sm:$0xf] %v4288
  // Predicated region
  $region14: #{_fused_forward.1} parent=0 // pred_check
    _
  $region15: #{_fused_forward.1} parent=0 // pred_check_branch
    %4340 = sbr.rel (0) target = $region17
  $region16: #{_fused_forward.1} parent=0 // pred_region
    _
  $region17: #{_fused_forward.1} parent=0 // pred_fallthru
    _
  // Predicated region
  $region18: #{_fused_forward.1} parent=0 // pred_check
    _
  $region19: #{_fused_forward.1} parent=0 // pred_check_branch
    %4342 = sbr.rel (0) target = $region21
  $region20: #{_fused_forward.1} parent=0 // pred_region
    _
  $region21: #{_fused_forward.1} parent=0 // pred_fallthru
    _

</llo_original>
